<compile_context>
chip_gen: v5e
topology: v5e:2x2
jax: 0.10.0
libtpu: 0.0.40
codegen_flags: <defaults>
</compile_context>

<pallas_src>
import jax
import jax.numpy as jnp
from jax.experimental import pallas as pl
from jax.experimental.pallas import tpu as pltpu

EPS = 1e-5


# ------------------------- in-kernel helpers ------------------------------
def _reflect_pad_hw(x):
    """Reflect-pad by 1 (edge excluded, matches torch 'reflect'). x:(H,W,C).
    Assumes H >= 2 and W >= 2."""
    H, W, _ = x.shape
    x = jnp.concatenate([x[1:2], x, x[H - 2:H - 1]], axis=0)
    x = jnp.concatenate([x[:, 1:2], x, x[:, W - 2:W - 1]], axis=1)
    return x                                            # (H+2, W+2, C)


def _conv3x3_im2col(xp, w, b, H, W):
    """3x3 conv as a single im2col matmul.

    xp: (H+2, W+2, Cin) pre-padded input, f32.
    w : (9*Cin, Cout) weights, rows ordered (dy, dx, ci) row-major.
    b : (1, Cout) bias (kept f32).
    Returns (out (H*W, Cout) f32, center (H*W, Cin)) where `center` is the
    unpadded input xp[1:H+1, 1:W+1] (the dy=1, dx=1 tap), reused for free
    as the residual term.
    """
    Cin = xp.shape[-1]
    taps = []
    for dy in range(3):
        rows = xp[dy:dy + H]                            # leading-dim slice
        for dx in range(3):
            taps.append(rows[:, dx:dx + W, :])          # (H, W, Cin)
    center = taps[4].reshape(H * W, Cin)                # == original x
    patches = jnp.concatenate(taps, axis=-1)            # (H, W, 9*Cin) lanes
    patches = patches.reshape(H * W, 9 * Cin).astype(w.dtype)
    out = jnp.dot(patches, w, preferred_element_type=jnp.float32)
    return out + b.astype(jnp.float32), center


def _instance_norm(yf, inv_hw):
    """Single-pass IN: per-channel (lane) stats over flattened spatial rows.
    Biased variance via E[x^2] - mean^2, clamped at 0 before rsqrt."""
    s = jnp.sum(yf, axis=0, keepdims=True)
    s2 = jnp.sum(yf * yf, axis=0, keepdims=True)
    mean = s * inv_hw
    var = jnp.maximum(s2 * inv_hw - mean * mean, 0.0)
    return (yf - mean) * jax.lax.rsqrt(var + EPS)


# ------------------------------ kernel -------------------------------------
def residual_block_kernel(xp_ref, w1_ref, b1_ref, w2_ref, b2_ref, o_ref):
    _, H, W, C = o_ref.shape
    inv_hw = 1.0 / float(H * W)

    xp = xp_ref[0].astype(jnp.float32)                   # (H+2, W+2, C)

    h, x_flat = _conv3x3_im2col(xp, w1_ref[...], b1_ref[...], H, W)
    h = jnp.maximum(_instance_norm(h, inv_hw), 0.0)      # ReLU(IN(conv1))

    hp = _reflect_pad_hw(h.reshape(H, W, C))             # re-pad intermediate
    h, _ = _conv3x3_im2col(hp, w2_ref[...], b2_ref[...], H, W)
    h = _instance_norm(h, inv_hw)                        # IN(conv2)

    o_ref[0] = (h + x_flat).reshape(H, W, C).astype(o_ref.dtype)


# ------------------------------ wrappers ------------------------------------
def residual_block_nhwc(x_nhwc, w1, b1, w2, b2, *, conv_dtype=jnp.float32):
    """NHWC-native entry point (use this across consecutive blocks).

    x_nhwc: (N, H, W, C);  w*: (Cout, Cin, 3, 3) PyTorch layout;  b*: (C,).
    conv_dtype: matmul-operand dtype (jnp.bfloat16 is a good choice on
    v6e/v7x when precision allows; keep f32 on v5e).
    """
    N, H, W, C = x_nhwc.shape

    # Reflect pre-pad in HBM: removes all in-kernel concats for conv1.
    xp = jnp.pad(x_nhwc, ((0, 0), (1, 1), (1, 1), (0, 0)), mode="reflect")

    # PyTorch (Cout, Cin, ky, kx) -> im2col (9*Cin, Cout),
    # row index = (ky*3 + kx)*Cin + ci  (matches tap order in the kernel).
    def to_im2col(w):
        return jnp.transpose(w, (2, 3, 1, 0)).reshape(9 * C, C).astype(conv_dtype)

    w1m, w2m = to_im2col(w1), to_im2col(w2)
    b1r, b2r = b1.reshape(1, C), b2.reshape(1, C)

    Hp, Wp = H + 2, W + 2
    return pl.pallas_call(
        residual_block_kernel,
        out_shape=jax.ShapeDtypeStruct((N, H, W, C), x_nhwc.dtype),
        grid_spec=pltpu.PrefetchScalarGridSpec(
            num_scalar_prefetch=0,
            grid=(N,),
            in_specs=[
                pl.BlockSpec((1, Hp, Wp, C), lambda n: (n, 0, 0, 0)),
                pl.BlockSpec((9 * C, C), lambda n: (0, 0)),
                pl.BlockSpec((1, C), lambda n: (0, 0)),
                pl.BlockSpec((9 * C, C), lambda n: (0, 0)),
                pl.BlockSpec((1, C), lambda n: (0, 0)),
            ],
            out_specs=pl.BlockSpec((1, H, W, C), lambda n: (n, 0, 0, 0)),
        ),
        compiler_params=pltpu.CompilerParams(
            dimension_semantics=("parallel",),      # v7x: samples across TCs
            vmem_limit_bytes=32 * 1024 * 1024,      # raise / band-tile for big images
        ),
    )(xp, w1m, b1r, w2m, b2r)


def residual_block(x_nchw, w1, b1, w2, b2):
    """NCHW adapter (PyTorch interface).  In a full network keep activations
    NHWC across blocks so the two transposes are paid once per network."""
    out = residual_block_nhwc(jnp.transpose(x_nchw, (0, 2, 3, 1)),
                              w1, b1, w2, b2)
    return jnp.transpose(out, (0, 3, 1, 2))


# --------------------------- pure-JAX reference ------------------------------
def residual_block_ref(x, w1, b1, w2, b2):
    def conv(x, w, b):
        xp = jnp.pad(x, ((0, 0), (0, 0), (1, 1), (1, 1)), mode="reflect")
        y = jax.lax.conv_general_dilated(
            xp, w, (1, 1), "VALID",
            dimension_numbers=("NCHW", "OIHW", "NCHW"))
        return y + b[None, :, None, None]

    def inorm(y):
        mean = y.mean(axis=(2, 3), keepdims=True)
        var = ((y - mean) ** 2).mean(axis=(2, 3), keepdims=True)
        return (y - mean) * jax.lax.rsqrt(var + EPS)

    h = jnp.maximum(inorm(conv(x, w1, b1)), 0.0)
    h = inorm(conv(h, w2, b2))
    return h + x


# ------------------------------- main ---------------------------------------
if __name__ == "__main__":
    N, C, H, W = 2, 4, 16, 16
    key = jax.random.PRNGKey(0)
    kx, kw1, kb1, kw2, kb2 = jax.random.split(key, 5)

    x = jax.random.normal(kx, (N, C, H, W), jnp.float32)

    # Deterministic params, PyTorch-default-style uniform init.
    bound = 1.0 / (C * 9) ** 0.5
    w1 = jax.random.uniform(kw1, (C, C, 3, 3), jnp.float32, -bound, bound)
    b1 = jax.random.uniform(kb1, (C,), jnp.float32, -bound, bound)
    w2 = jax.random.uniform(kw2, (C, C, 3, 3), jnp.float32, -bound, bound)
    b2 = jax.random.uniform(kb2, (C,), jnp.float32, -bound, bound)

    out = jax.block_until_ready(residual_block(x, w1, b1, w2, b2))
    ref = jax.block_until_ready(residual_block_ref(x, w1, b1, w2, b2))

    assert out.shape == (N, C, H, W)
    assert jnp.allclose(out, ref, rtol=1e-4, atol=1e-4), (
        float(jnp.max(jnp.abs(out - ref))))
    print("KERNEL_OK")
</pallas_src>

<mosaic_0001>
module attributes {stable_mosaic.version = 11 : i64} {
  func.func @residual_block_kernel(%arg0: i32, %arg1: memref<1x18x18x4xf32, #tpu.memory_space<vmem>>, %arg2: memref<36x4xf32, #tpu.memory_space<vmem>>, %arg3: memref<1x4xf32, #tpu.memory_space<vmem>>, %arg4: memref<36x4xf32, #tpu.memory_space<vmem>>, %arg5: memref<1x4xf32, #tpu.memory_space<vmem>>, %arg6: memref<1x16x16x4xf32, #tpu.memory_space<vmem>>) attributes {dimension_semantics = [#tpu.dimension_semantics<parallel>], iteration_bounds = array<i64: 2>, scalar_prefetch = 0 : i64, scratch_operands = 0 : i64, tpu.core_type = #tpu.core_type<tc>, window_params = [{transform_indices = @transform_0, window_bounds = array<i64: 1, 18, 18, 4>}, {pipeline_mode = #tpu.pipeline_mode<synchronous>, transform_indices = @transform_1, window_bounds = array<i64: 36, 4>}, {pipeline_mode = #tpu.pipeline_mode<synchronous>, transform_indices = @transform_2, window_bounds = array<i64: 1, 4>}, {pipeline_mode = #tpu.pipeline_mode<synchronous>, transform_indices = @transform_3, window_bounds = array<i64: 36, 4>}, {pipeline_mode = #tpu.pipeline_mode<synchronous>, transform_indices = @transform_4, window_bounds = array<i64: 1, 4>}, {transform_indices = @transform_5, window_bounds = array<i64: 1, 16, 16, 4>}]} {
    %c0 = arith.constant 0 : index
    %c0_0 = arith.constant 0 : index
    %c0_1 = arith.constant 0 : index
    %c0_2 = arith.constant 0 : index
    %0 = vector.load %arg1[%c0, %c0_0, %c0_1, %c0_2] : memref<1x18x18x4xf32, #tpu.memory_space<vmem>>, vector<1x18x18x4xf32>
    %1 = vector.shape_cast %0 : vector<1x18x18x4xf32> to vector<18x18x4xf32>
    %c0_3 = arith.constant 0 : index
    %c0_4 = arith.constant 0 : index
    %2 = vector.load %arg2[%c0_3, %c0_4] : memref<36x4xf32, #tpu.memory_space<vmem>>, vector<36x4xf32>
    %c0_5 = arith.constant 0 : index
    %c0_6 = arith.constant 0 : index
    %3 = vector.load %arg3[%c0_5, %c0_6] : memref<1x4xf32, #tpu.memory_space<vmem>>, vector<1x4xf32>
    %4 = vector.extract_strided_slice %1 {offsets = [0, 0, 0], sizes = [16, 18, 4], strides = [1, 1, 1]} : vector<18x18x4xf32> to vector<16x18x4xf32>
    %5 = vector.extract_strided_slice %4 {offsets = [0, 0, 0], sizes = [16, 16, 4], strides = [1, 1, 1]} : vector<16x18x4xf32> to vector<16x16x4xf32>
    %6 = vector.extract_strided_slice %4 {offsets = [0, 1, 0], sizes = [16, 16, 4], strides = [1, 1, 1]} : vector<16x18x4xf32> to vector<16x16x4xf32>
    %7 = vector.extract_strided_slice %4 {offsets = [0, 2, 0], sizes = [16, 16, 4], strides = [1, 1, 1]} : vector<16x18x4xf32> to vector<16x16x4xf32>
    %8 = vector.extract_strided_slice %1 {offsets = [1, 0, 0], sizes = [16, 18, 4], strides = [1, 1, 1]} : vector<18x18x4xf32> to vector<16x18x4xf32>
    %9 = vector.extract_strided_slice %8 {offsets = [0, 0, 0], sizes = [16, 16, 4], strides = [1, 1, 1]} : vector<16x18x4xf32> to vector<16x16x4xf32>
    %10 = vector.extract_strided_slice %8 {offsets = [0, 1, 0], sizes = [16, 16, 4], strides = [1, 1, 1]} : vector<16x18x4xf32> to vector<16x16x4xf32>
    %11 = vector.extract_strided_slice %8 {offsets = [0, 2, 0], sizes = [16, 16, 4], strides = [1, 1, 1]} : vector<16x18x4xf32> to vector<16x16x4xf32>
    %12 = vector.extract_strided_slice %1 {offsets = [2, 0, 0], sizes = [16, 18, 4], strides = [1, 1, 1]} : vector<18x18x4xf32> to vector<16x18x4xf32>
    %13 = vector.extract_strided_slice %12 {offsets = [0, 0, 0], sizes = [16, 16, 4], strides = [1, 1, 1]} : vector<16x18x4xf32> to vector<16x16x4xf32>
    %14 = vector.extract_strided_slice %12 {offsets = [0, 1, 0], sizes = [16, 16, 4], strides = [1, 1, 1]} : vector<16x18x4xf32> to vector<16x16x4xf32>
    %15 = vector.extract_strided_slice %12 {offsets = [0, 2, 0], sizes = [16, 16, 4], strides = [1, 1, 1]} : vector<16x18x4xf32> to vector<16x16x4xf32>
    %16 = vector.shape_cast %10 : vector<16x16x4xf32> to vector<256x4xf32>
    %17 = tpu.concatenate %5, %6, %7, %9, %10, %11, %13, %14, %15 in 2 : vector<16x16x4xf32>, vector<16x16x4xf32>, vector<16x16x4xf32>, vector<16x16x4xf32>, vector<16x16x4xf32>, vector<16x16x4xf32>, vector<16x16x4xf32>, vector<16x16x4xf32>, vector<16x16x4xf32> -> vector<16x16x36xf32>
    %18 = vector.shape_cast %17 : vector<16x16x36xf32> to vector<256x36xf32>
    %cst = arith.constant dense<0.000000e+00> : vector<256x4xf32>
    %19 = tpu.matmul %18, %2, %cst {dimension_numbers = #tpu.dot_dimension_numbers<[1], [0], [0], [1], [0, 0, 1, 1], [], []>} : vector<256x36xf32>, vector<36x4xf32>, vector<256x4xf32> -> vector<256x4xf32>
    %20 = vector.broadcast %3 : vector<1x4xf32> to vector<256x4xf32>
    %21 = arith.addf %19, %20 : vector<256x4xf32>
    %cst_7 = arith.constant dense<0.000000e+00> : vector<4xf32>
    %22 = vector.multi_reduction <add>, %21, %cst_7 [0] : vector<256x4xf32> to vector<4xf32>
    %23 = vector.shape_cast %22 : vector<4xf32> to vector<1x4xf32>
    %24 = arith.mulf %21, %21 : vector<256x4xf32>
    %cst_8 = arith.constant dense<0.000000e+00> : vector<4xf32>
    %25 = vector.multi_reduction <add>, %24, %cst_8 [0] : vector<256x4xf32> to vector<4xf32>
    %26 = vector.shape_cast %25 : vector<4xf32> to vector<1x4xf32>
    %cst_9 = arith.constant 3.906250e-03 : f32
    %27 = vector.broadcast %cst_9 : f32 to vector<1x4xf32>
    %28 = arith.mulf %23, %27 : vector<1x4xf32>
    %cst_10 = arith.constant 3.906250e-03 : f32
    %29 = vector.broadcast %cst_10 : f32 to vector<1x4xf32>
    %30 = arith.mulf %26, %29 : vector<1x4xf32>
    %31 = arith.mulf %28, %28 : vector<1x4xf32>
    %32 = arith.subf %30, %31 : vector<1x4xf32>
    %cst_11 = arith.constant 0.000000e+00 : f32
    %33 = vector.broadcast %cst_11 : f32 to vector<1x4xf32>
    %34 = arith.maximumf %32, %33 : vector<1x4xf32>
    %35 = vector.broadcast %28 : vector<1x4xf32> to vector<256x4xf32>
    %36 = arith.subf %21, %35 : vector<256x4xf32>
    %cst_12 = arith.constant 9.99999974E-6 : f32
    %37 = vector.broadcast %cst_12 : f32 to vector<1x4xf32>
    %38 = arith.addf %34, %37 : vector<1x4xf32>
    %39 = math.rsqrt %38 : vector<1x4xf32>
    %40 = vector.broadcast %39 : vector<1x4xf32> to vector<256x4xf32>
    %41 = arith.mulf %36, %40 : vector<256x4xf32>
    %cst_13 = arith.constant 0.000000e+00 : f32
    %42 = vector.broadcast %cst_13 : f32 to vector<256x4xf32>
    %43 = arith.maximumf %41, %42 : vector<256x4xf32>
    %44 = vector.shape_cast %43 : vector<256x4xf32> to vector<16x16x4xf32>
    %45 = vector.extract_strided_slice %44 {offsets = [1, 0, 0], sizes = [1, 16, 4], strides = [1, 1, 1]} : vector<16x16x4xf32> to vector<1x16x4xf32>
    %46 = vector.extract_strided_slice %44 {offsets = [14, 0, 0], sizes = [1, 16, 4], strides = [1, 1, 1]} : vector<16x16x4xf32> to vector<1x16x4xf32>
    %47 = tpu.concatenate %45, %44, %46 in 0 : vector<1x16x4xf32>, vector<16x16x4xf32>, vector<1x16x4xf32> -> vector<18x16x4xf32>
    %48 = vector.extract_strided_slice %47 {offsets = [0, 1, 0], sizes = [18, 1, 4], strides = [1, 1, 1]} : vector<18x16x4xf32> to vector<18x1x4xf32>
    %49 = vector.extract_strided_slice %47 {offsets = [0, 14, 0], sizes = [18, 1, 4], strides = [1, 1, 1]} : vector<18x16x4xf32> to vector<18x1x4xf32>
    %50 = tpu.concatenate %48, %47, %49 in 1 : vector<18x1x4xf32>, vector<18x16x4xf32>, vector<18x1x4xf32> -> vector<18x18x4xf32>
    %c0_14 = arith.constant 0 : index
    %c0_15 = arith.constant 0 : index
    %51 = vector.load %arg4[%c0_14, %c0_15] : memref<36x4xf32, #tpu.memory_space<vmem>>, vector<36x4xf32>
    %c0_16 = arith.constant 0 : index
    %c0_17 = arith.constant 0 : index
    %52 = vector.load %arg5[%c0_16, %c0_17] : memref<1x4xf32, #tpu.memory_space<vmem>>, vector<1x4xf32>
    %53 = vector.extract_strided_slice %50 {offsets = [0, 0, 0], sizes = [16, 18, 4], strides = [1, 1, 1]} : vector<18x18x4xf32> to vector<16x18x4xf32>
    %54 = vector.extract_strided_slice %53 {offsets = [0, 0, 0], sizes = [16, 16, 4], strides = [1, 1, 1]} : vector<16x18x4xf32> to vector<16x16x4xf32>
    %55 = vector.extract_strided_slice %53 {offsets = [0, 1, 0], sizes = [16, 16, 4], strides = [1, 1, 1]} : vector<16x18x4xf32> to vector<16x16x4xf32>
    %56 = vector.extract_strided_slice %53 {offsets = [0, 2, 0], sizes = [16, 16, 4], strides = [1, 1, 1]} : vector<16x18x4xf32> to vector<16x16x4xf32>
    %57 = vector.extract_strided_slice %50 {offsets = [1, 0, 0], sizes = [16, 18, 4], strides = [1, 1, 1]} : vector<18x18x4xf32> to vector<16x18x4xf32>
    %58 = vector.extract_strided_slice %57 {offsets = [0, 0, 0], sizes = [16, 16, 4], strides = [1, 1, 1]} : vector<16x18x4xf32> to vector<16x16x4xf32>
    %59 = vector.extract_strided_slice %57 {offsets = [0, 1, 0], sizes = [16, 16, 4], strides = [1, 1, 1]} : vector<16x18x4xf32> to vector<16x16x4xf32>
    %60 = vector.extract_strided_slice %57 {offsets = [0, 2, 0], sizes = [16, 16, 4], strides = [1, 1, 1]} : vector<16x18x4xf32> to vector<16x16x4xf32>
    %61 = vector.extract_strided_slice %50 {offsets = [2, 0, 0], sizes = [16, 18, 4], strides = [1, 1, 1]} : vector<18x18x4xf32> to vector<16x18x4xf32>
    %62 = vector.extract_strided_slice %61 {offsets = [0, 0, 0], sizes = [16, 16, 4], strides = [1, 1, 1]} : vector<16x18x4xf32> to vector<16x16x4xf32>
    %63 = vector.extract_strided_slice %61 {offsets = [0, 1, 0], sizes = [16, 16, 4], strides = [1, 1, 1]} : vector<16x18x4xf32> to vector<16x16x4xf32>
    %64 = vector.extract_strided_slice %61 {offsets = [0, 2, 0], sizes = [16, 16, 4], strides = [1, 1, 1]} : vector<16x18x4xf32> to vector<16x16x4xf32>
    %65 = tpu.concatenate %54, %55, %56, %58, %59, %60, %62, %63, %64 in 2 : vector<16x16x4xf32>, vector<16x16x4xf32>, vector<16x16x4xf32>, vector<16x16x4xf32>, vector<16x16x4xf32>, vector<16x16x4xf32>, vector<16x16x4xf32>, vector<16x16x4xf32>, vector<16x16x4xf32> -> vector<16x16x36xf32>
    %66 = vector.shape_cast %65 : vector<16x16x36xf32> to vector<256x36xf32>
    %cst_18 = arith.constant dense<0.000000e+00> : vector<256x4xf32>
    %67 = tpu.matmul %66, %51, %cst_18 {dimension_numbers = #tpu.dot_dimension_numbers<[1], [0], [0], [1], [0, 0, 1, 1], [], []>} : vector<256x36xf32>, vector<36x4xf32>, vector<256x4xf32> -> vector<256x4xf32>
    %68 = vector.broadcast %52 : vector<1x4xf32> to vector<256x4xf32>
    %69 = arith.addf %67, %68 : vector<256x4xf32>
    %cst_19 = arith.constant dense<0.000000e+00> : vector<4xf32>
    %70 = vector.multi_reduction <add>, %69, %cst_19 [0] : vector<256x4xf32> to vector<4xf32>
    %71 = vector.shape_cast %70 : vector<4xf32> to vector<1x4xf32>
    %72 = arith.mulf %69, %69 : vector<256x4xf32>
    %cst_20 = arith.constant dense<0.000000e+00> : vector<4xf32>
    %73 = vector.multi_reduction <add>, %72, %cst_20 [0] : vector<256x4xf32> to vector<4xf32>
    %74 = vector.shape_cast %73 : vector<4xf32> to vector<1x4xf32>
    %cst_21 = arith.constant 3.906250e-03 : f32
    %75 = vector.broadcast %cst_21 : f32 to vector<1x4xf32>
    %76 = arith.mulf %71, %75 : vector<1x4xf32>
    %cst_22 = arith.constant 3.906250e-03 : f32
    %77 = vector.broadcast %cst_22 : f32 to vector<1x4xf32>
    %78 = arith.mulf %74, %77 : vector<1x4xf32>
    %79 = arith.mulf %76, %76 : vector<1x4xf32>
    %80 = arith.subf %78, %79 : vector<1x4xf32>
    %cst_23 = arith.constant 0.000000e+00 : f32
    %81 = vector.broadcast %cst_23 : f32 to vector<1x4xf32>
    %82 = arith.maximumf %80, %81 : vector<1x4xf32>
    %83 = vector.broadcast %76 : vector<1x4xf32> to vector<256x4xf32>
    %84 = arith.subf %69, %83 : vector<256x4xf32>
    %cst_24 = arith.constant 9.99999974E-6 : f32
    %85 = vector.broadcast %cst_24 : f32 to vector<1x4xf32>
    %86 = arith.addf %82, %85 : vector<1x4xf32>
    %87 = math.rsqrt %86 : vector<1x4xf32>
    %88 = vector.broadcast %87 : vector<1x4xf32> to vector<256x4xf32>
    %89 = arith.mulf %84, %88 : vector<256x4xf32>
    %90 = arith.addf %89, %16 : vector<256x4xf32>
    %91 = vector.shape_cast %90 : vector<256x4xf32> to vector<16x16x4xf32>
    %c0_25 = arith.constant 0 : index
    %c0_26 = arith.constant 0 : index
    %c0_27 = arith.constant 0 : index
    %c0_28 = arith.constant 0 : index
    %92 = vector.load %arg6[%c0_25, %c0_26, %c0_27, %c0_28] : memref<1x16x16x4xf32, #tpu.memory_space<vmem>>, vector<1x16x16x4xf32>
    %93 = vector.shape_cast %92 : vector<1x16x16x4xf32> to vector<16x16x4xf32>
    %94 = vector.shape_cast %91 : vector<16x16x4xf32> to vector<1x16x16x4xf32>
    tpu.vector_store %arg6[%c0_25, %c0_26, %c0_27, %c0_28], %94 {strides = array<i32>} : memref<1x16x16x4xf32, #tpu.memory_space<vmem>>, vector<1x16x16x4xf32>,
    return
  }
  func.func @transform_0(%arg0: i32) -> (i32, i32, i32, i32) {
    %c0_i32 = arith.constant 0 : i32
    %c0_i32_0 = arith.constant 0 : i32
    %c0_i32_1 = arith.constant 0 : i32
    %c0_i32_2 = arith.constant 0 : i32
    return %arg0, %c0_i32, %c0_i32_0, %c0_i32_1 : i32, i32, i32, i32
  }
  func.func @transform_1(%arg0: i32) -> (i32, i32) {
    %c0_i32 = arith.constant 0 : i32
    %c0_i32_0 = arith.constant 0 : i32
    %c0_i32_1 = arith.constant 0 : i32
    return %c0_i32, %c0_i32_0 : i32, i32
  }
  func.func @transform_2(%arg0: i32) -> (i32, i32) {
    %c0_i32 = arith.constant 0 : i32
    %c0_i32_0 = arith.constant 0 : i32
    %c0_i32_1 = arith.constant 0 : i32
    return %c0_i32, %c0_i32_0 : i32, i32
  }
  func.func @transform_3(%arg0: i32) -> (i32, i32) {
    %c0_i32 = arith.constant 0 : i32
    %c0_i32_0 = arith.constant 0 : i32
    %c0_i32_1 = arith.constant 0 : i32
    return %c0_i32, %c0_i32_0 : i32, i32
  }
  func.func @transform_4(%arg0: i32) -> (i32, i32) {
    %c0_i32 = arith.constant 0 : i32
    %c0_i32_0 = arith.constant 0 : i32
    %c0_i32_1 = arith.constant 0 : i32
    return %c0_i32, %c0_i32_0 : i32, i32
  }
  func.func @transform_5(%arg0: i32) -> (i32, i32, i32, i32) {
    %c0_i32 = arith.constant 0 : i32
    %c0_i32_0 = arith.constant 0 : i32
    %c0_i32_1 = arith.constant 0 : i32
    %c0_i32_2 = arith.constant 0 : i32
    return %arg0, %c0_i32, %c0_i32_0, %c0_i32_1 : i32, i32, i32, i32
  }
}

</mosaic_0001>

<llo_original>
// kernel: tpu_custom_call.1
$region0: #{tpu_custom_call.1}
  #allocation0 [shape = 'u32[]', space=smem, size = 0x4, offset = 0x4, fixed_abs, tag = 'smem constant byte address 0x4 - core index']
  #allocation1 [shape = 'u32[72,128]{1,0:T(1,128)}', space=vmem, size = 0x9000, scoped, tag = 'internal scratch']
  %s0 = inlined_call_operand.vmem [shape: f32[2,18,18,4], index: 0, kind: input, shape index: {}]
  %s1 = inlined_call_operand.vmem [shape: f32[36,4], index: 1, kind: input, shape index: {}]
  %s2 = inlined_call_operand.vmem [shape: f32[1,4], index: 2, kind: input, shape index: {}]
  %s3 = inlined_call_operand.vmem [shape: f32[36,4], index: 3, kind: input, shape index: {}]
  %s4 = inlined_call_operand.vmem [shape: f32[1,4], index: 4, kind: input, shape index: {}]
  %s5 = inlined_call_operand.vmem [shape: f32[2,16,16,4], index: 5, kind: output, shape index: {}]
  %s6 = sld [smem:[#allocation0]]
  $region53: #{tpu_custom_call.1} parent=0
    _
  %s8 = ssub.s32 1, %s6
  %s9 = scalar_select 0, %s8, %s6
  loop: start=0, step=1, limit=4
  $region2: #{tpu_custom_call.1} parent=0 // loop_pre_header
    _
  $region3: #{tpu_custom_call.1} parent=0 // loop_header
    %s11 = sphi 0, %s15
    %p12 = scmp.ge.s32.totalorder %s11, 4
    %s21 = sphi 0, %s23
    %s24 = sphi 0, %s21
    %s25 = sphi 0, %s24
    %s41 = sphi 0, %s25
    %s45 = sphi 0, %s45
    %s47 = sphi 0, %s45
    %s48 = sphi 0, %s47
    %s62 = sphi 0, %s48
    %s66 = sphi 0, %s66
    %s68 = sphi 0, %s66
    %s69 = sphi 0, %s68
    %s83 = sphi 0, %s69
    %s87 = sphi 0, %s87
    %s89 = sphi 0, %s87
    %s90 = sphi 0, %s89
    %s104 = sphi 0, %s90
    %s108 = sphi 0, %s108
    %s110 = sphi 0, %s108
    %s111 = sphi 0, %s110
    %s125 = sphi 0, %s111
    %s131 = sphi 0, %s133
    %s134 = sphi 0, %s131
    %s135 = sphi 0, %s134
    %s151 = sphi 0, %s135
  $region4: #{tpu_custom_call.1} parent=0 // loop_header_branch
    %14 = sbr.rel (%p12) target = $region8
  $region5: #{tpu_custom_call.1} parent=0 // loop_body
    %s16 = ssub.s32 %s11, 1
    %s17 = ssub.s32 %s11, 2
    %s18 = sadd.s32 %s11, 1
    %s19 = ssub.s32 %s11, %s18
    %p20 = scmp.eq.s32.totalorder %s19, 0
    %s22 = sadd.s32 %s21, 1
    %s23 = scalar_select %p20, %s21, %s22
    %p26 = pneg %p20
    %p27 = scmp.eq.s32.totalorder %s11, 1
    %p28 = por %p26, %p27
    %p29 = scmp.ne.s32.totalorder %s21, %s24
    %p30 = scmp.eq.s32.totalorder %s11, 0
    %p31 = por %p29, %p30
    %p32 = scmp.ne.s32.totalorder %s21, %s24
    %p33 = scmp.eq.s32.totalorder %s16, 1
    %p34 = por %p32, %p33
    %p35 = scmp.ne.s32.totalorder %s24, %s25
    %p36 = scmp.eq.s32.totalorder %s16, 0
    %p37 = por %p35, %p36
    %p38 = scmp.ne.s32.totalorder %s24, %s25
    %p39 = scmp.eq.s32.totalorder %s17, 1
    %p40 = por %p38, %p39
    %p42 = scmp.ne.s32.totalorder %s25, %s41
    %p43 = scmp.eq.s32.totalorder %s17, 0
    %p44 = por %p42, %p43
    %s46 = sadd.s32 %s45, 1
    %p49 = scmp.eq.s32.totalorder %s11, 1
    %p50 = scmp.ne.s32.totalorder %s45, %s47
    %p51 = scmp.eq.s32.totalorder %s11, 0
    %p52 = por %p50, %p51
    %p53 = scmp.ne.s32.totalorder %s45, %s47
    %p54 = scmp.eq.s32.totalorder %s16, 1
    %p55 = por %p53, %p54
    %p56 = scmp.ne.s32.totalorder %s47, %s48
    %p57 = scmp.eq.s32.totalorder %s16, 0
    %p58 = por %p56, %p57
    %p59 = scmp.ne.s32.totalorder %s47, %s48
    %p60 = scmp.eq.s32.totalorder %s17, 1
    %p61 = por %p59, %p60
    %p63 = scmp.ne.s32.totalorder %s48, %s62
    %p64 = scmp.eq.s32.totalorder %s17, 0
    %p65 = por %p63, %p64
    %s67 = sadd.s32 %s66, 1
    %p70 = scmp.eq.s32.totalorder %s11, 1
    %p71 = scmp.ne.s32.totalorder %s66, %s68
    %p72 = scmp.eq.s32.totalorder %s11, 0
    %p73 = por %p71, %p72
    %p74 = scmp.ne.s32.totalorder %s66, %s68
    %p75 = scmp.eq.s32.totalorder %s16, 1
    %p76 = por %p74, %p75
    %p77 = scmp.ne.s32.totalorder %s68, %s69
    %p78 = scmp.eq.s32.totalorder %s16, 0
    %p79 = por %p77, %p78
    %p80 = scmp.ne.s32.totalorder %s68, %s69
    %p81 = scmp.eq.s32.totalorder %s17, 1
    %p82 = por %p80, %p81
    %p84 = scmp.ne.s32.totalorder %s69, %s83
    %p85 = scmp.eq.s32.totalorder %s17, 0
    %p86 = por %p84, %p85
    %s88 = sadd.s32 %s87, 1
    %p91 = scmp.eq.s32.totalorder %s11, 1
    %p92 = scmp.ne.s32.totalorder %s87, %s89
    %p93 = scmp.eq.s32.totalorder %s11, 0
    %p94 = por %p92, %p93
    %p95 = scmp.ne.s32.totalorder %s87, %s89
    %p96 = scmp.eq.s32.totalorder %s16, 1
    %p97 = por %p95, %p96
    %p98 = scmp.ne.s32.totalorder %s89, %s90
    %p99 = scmp.eq.s32.totalorder %s16, 0
    %p100 = por %p98, %p99
    %p101 = scmp.ne.s32.totalorder %s89, %s90
    %p102 = scmp.eq.s32.totalorder %s17, 1
    %p103 = por %p101, %p102
    %p105 = scmp.ne.s32.totalorder %s90, %s104
    %p106 = scmp.eq.s32.totalorder %s17, 0
    %p107 = por %p105, %p106
    %s109 = sadd.s32 %s108, 1
    %p112 = scmp.eq.s32.totalorder %s11, 1
    %p113 = scmp.ne.s32.totalorder %s108, %s110
    %p114 = scmp.eq.s32.totalorder %s11, 0
    %p115 = por %p113, %p114
    %p116 = scmp.ne.s32.totalorder %s108, %s110
    %p117 = scmp.eq.s32.totalorder %s16, 1
    %p118 = por %p116, %p117
    %p119 = scmp.ne.s32.totalorder %s110, %s111
    %p120 = scmp.eq.s32.totalorder %s16, 0
    %p121 = por %p119, %p120
    %p122 = scmp.ne.s32.totalorder %s110, %s111
    %p123 = scmp.eq.s32.totalorder %s17, 1
    %p124 = por %p122, %p123
    %p126 = scmp.ne.s32.totalorder %s111, %s125
    %p127 = scmp.eq.s32.totalorder %s17, 0
    %p128 = por %p126, %p127
    %s129 = ssub.s32 %s11, %s18
    %p130 = scmp.eq.s32.totalorder %s129, 0
    %s132 = sadd.s32 %s131, 1
    %s133 = scalar_select %p130, %s131, %s132
    %p136 = pneg %p130
    %p137 = scmp.eq.s32.totalorder %s11, 1
    %p138 = por %p136, %p137
    %p139 = scmp.ne.s32.totalorder %s131, %s134
    %p140 = scmp.eq.s32.totalorder %s11, 0
    %p141 = por %p139, %p140
    %p142 = scmp.ne.s32.totalorder %s131, %s134
    %p143 = scmp.eq.s32.totalorder %s16, 1
    %p144 = por %p142, %p143
    %p145 = scmp.ne.s32.totalorder %s134, %s135
    %p146 = scmp.eq.s32.totalorder %s16, 0
    %p147 = por %p145, %p146
    %p148 = scmp.ne.s32.totalorder %s134, %s135
    %p149 = scmp.eq.s32.totalorder %s17, 1
    %p150 = por %p148, %p149
    %p152 = scmp.ne.s32.totalorder %s135, %s151
    %p153 = scmp.eq.s32.totalorder %s17, 0
    %p154 = por %p152, %p153
    %p155 = scmp.le.s32.totalorder 1, %s11
    %p156 = scmp.lt.s32.totalorder %s11, 3
    %p157 = pnand %p155, %p156
    %p158 = pneg %p157
    // Predicated region
    $region9: #{tpu_custom_call.1} parent=5 // pred_check
      _
    $region10: #{tpu_custom_call.1} parent=5 // pred_check_branch
      %160 = sbr.rel (%p157) target = $region12
    $region11: #{tpu_custom_call.1} parent=5 // pred_region
      %s161 = ssub.s32 %s11, 1
      // Predicated region
      $region13: #{tpu_custom_call.1} parent=11 // pred_check
        %p162 = pneg %p58
      $region14: #{tpu_custom_call.1} parent=11 // pred_check_branch
        %164 = sbr.rel (%p162) target = $region16
      $region15: #{tpu_custom_call.1} parent=11 // pred_region
        _
      $region16: #{tpu_custom_call.1} parent=11 // pred_fallthru
        _
      // Predicated region
      $region17: #{tpu_custom_call.1} parent=11 // pred_check
        %p165 = pneg %p79
      $region18: #{tpu_custom_call.1} parent=11 // pred_check_branch
        %167 = sbr.rel (%p165) target = $region20
      $region19: #{tpu_custom_call.1} parent=11 // pred_region
        _
      $region20: #{tpu_custom_call.1} parent=11 // pred_fallthru
        _
      // Predicated region
      $region21: #{tpu_custom_call.1} parent=11 // pred_check
        %p168 = pneg %p100
      $region22: #{tpu_custom_call.1} parent=11 // pred_check_branch
        %170 = sbr.rel (%p168) target = $region24
      $region23: #{tpu_custom_call.1} parent=11 // pred_region
        _
      $region24: #{tpu_custom_call.1} parent=11 // pred_fallthru
        _
      // Predicated region
      $region25: #{tpu_custom_call.1} parent=11 // pred_check
        %p171 = pneg %p121
      $region26: #{tpu_custom_call.1} parent=11 // pred_check_branch
        %173 = sbr.rel (%p171) target = $region28
      $region27: #{tpu_custom_call.1} parent=11 // pred_region
        _
      $region28: #{tpu_custom_call.1} parent=11 // pred_fallthru
        _
    $region12: #{tpu_custom_call.1} parent=5 // pred_fallthru
      _
    %p174 = scmp.lt.s32.totalorder %s11, 2
    // Predicated region
    $region29: #{tpu_custom_call.1} parent=5 // pred_check
      %p175 = pneg %p174
    $region30: #{tpu_custom_call.1} parent=5 // pred_check_branch
      %177 = sbr.rel (%p175) target = $region32
    $region31: #{tpu_custom_call.1} parent=5 // pred_region
      // Predicated region
      $region33: #{tpu_custom_call.1} parent=31 // pred_check
        %p178 = pneg %p31
      $region34: #{tpu_custom_call.1} parent=31 // pred_check_branch
        %180 = sbr.rel (%p178) target = $region36
      $region35: #{tpu_custom_call.1} parent=31 // pred_region
        %p181 = scmp.lt.s32.totalorder %s11, 1
        %s182 = scalar_select %p181, %s11, 1
        %s183 = smul.addr %s182, 54
        %s184 = smul.addr %s183, 8
        %s185 = scalar_lea.vmem %s0, %s184
      $region36: #{tpu_custom_call.1} parent=31 // pred_fallthru
        _
    $region32: #{tpu_custom_call.1} parent=5 // pred_fallthru
      _
    %p186 = scmp.le.s32.totalorder 1, %s11
    %p187 = scmp.lt.s32.totalorder %s11, 3
    %p188 = pnand %p186, %p187
    %p189 = pneg %p188
    // Predicated region
    $region37: #{tpu_custom_call.1} parent=5 // pred_check
      _
    $region38: #{tpu_custom_call.1} parent=5 // pred_check_branch
      %191 = sbr.rel (%p188) target = $region40
    $region39: #{tpu_custom_call.1} parent=5 // pred_region
      %s192 = ssub.s32 %s11, 1
      %p193 = scmp.lt.s32.totalorder %s16, 1
      %s194 = scalar_select %p193, %s16, 1
      %s195 = smul.addr %s194, 54
      %s196 = smul.addr %s195, 8
      %s197 = scalar_lea.vmem %s0, %s196
      %p198 = pneg %p37
      %p199 = pneg %p34
      %p200 = pneg %p58
      %p201 = pneg %p55
      %p202 = pneg %p79
      %p203 = pneg %p76
      %p204 = pneg %p100
      %p205 = pneg %p97
      %p206 = pneg %p121
      %p207 = pneg %p118
      %p208 = pneg %p147
      %p209 = pneg %p144
      %p210 = scmp.lt.s32.totalorder %s16, 1
      %s211 = scalar_select %p210, %s16, 1
      %s212 = smul.addr %s211, 32
      %s213 = smul.addr %s212, 8
      %s214 = scalar_lea.vmem %s5, %s213
      %p215 = scmp.lt.s32.totalorder %s16, 1
      %s216 = scalar_select %p215, %s16, 1
      %s217 = smul.addr %s216, 54
      %s218 = smul.addr %s217, 8
      %s219 = scalar_lea.vmem %s0, %s218
      %p220 = scmp.lt.s32.totalorder %s16, 1
      %s221 = scalar_select %p220, %s16, 1
      %s222 = smul.addr %s221, 32
      %s223 = smul.addr %s222, 8
      %s224 = scalar_lea.vmem %s5, %s223
      %v225 = vld [vmem:[%s219] sm:$0xff]
      %v226 = vld [vmem:[%s219 + $0x8] sm:$0xff]
      %v227 = vld [vmem:[%s219 + $0x10] sm:$0x3]
      %v228 = vld [vmem:[%s219 + $0x18] sm:$0xff]
      %v229 = vld [vmem:[%s219 + $0x20] sm:$0xff]
      %v230 = vld [vmem:[%s219 + $0x28] sm:$0x3]
      %v231 = vld [vmem:[%s219 + $0x30] sm:$0xff]
      %v232 = vld [vmem:[%s219 + $0x38] sm:$0xff]
      %v233 = vld [vmem:[%s219 + $0x40] sm:$0x3]
      %v234 = vld [vmem:[%s219 + $0x48] sm:$0xff]
      %v235 = vld [vmem:[%s219 + $0x50] sm:$0xff]
      %v236 = vld [vmem:[%s219 + $0x58] sm:$0x3]
      %v237 = vld [vmem:[%s219 + $0x60] sm:$0xff]
      %v238 = vld [vmem:[%s219 + $0x68] sm:$0xff]
      %v239 = vld [vmem:[%s219 + $0x70] sm:$0x3]
      %v240 = vld [vmem:[%s219 + $0x78] sm:$0xff]
      %v241 = vld [vmem:[%s219 + $0x80] sm:$0xff]
      %v242 = vld [vmem:[%s219 + $0x88] sm:$0x3]
      %v243 = vld [vmem:[%s219 + $0x90] sm:$0xff]
      %v244 = vld [vmem:[%s219 + $0x98] sm:$0xff]
      %v245 = vld [vmem:[%s219 + $0xa0] sm:$0x3]
      %v246 = vld [vmem:[%s219 + $0xa8] sm:$0xff]
      %v247 = vld [vmem:[%s219 + $0xb0] sm:$0xff]
      %v248 = vld [vmem:[%s219 + $0xb8] sm:$0x3]
      %v249 = vld [vmem:[%s219 + $0xc0] sm:$0xff]
      %v250 = vld [vmem:[%s219 + $0xc8] sm:$0xff]
      %v251 = vld [vmem:[%s219 + $0xd0] sm:$0x3]
      %v252 = vld [vmem:[%s219 + $0xd8] sm:$0xff]
      %v253 = vld [vmem:[%s219 + $0xe0] sm:$0xff]
      %v254 = vld [vmem:[%s219 + $0xe8] sm:$0x3]
      %v255 = vld [vmem:[%s219 + $0xf0] sm:$0xff]
      %v256 = vld [vmem:[%s219 + $0xf8] sm:$0xff]
      %v257 = vld [vmem:[%s219 + $0x100] sm:$0x3]
      %v258 = vld [vmem:[%s219 + $0x108] sm:$0xff]
      %v259 = vld [vmem:[%s219 + $0x110] sm:$0xff]
      %v260 = vld [vmem:[%s219 + $0x118] sm:$0x3]
      %v261 = vld [vmem:[%s219 + $0x120] sm:$0xff]
      %v262 = vld [vmem:[%s219 + $0x128] sm:$0xff]
      %v263 = vld [vmem:[%s219 + $0x130] sm:$0x3]
      %v264 = vld [vmem:[%s219 + $0x138] sm:$0xff]
      %v265 = vld [vmem:[%s219 + $0x140] sm:$0xff]
      %v266 = vld [vmem:[%s219 + $0x148] sm:$0x3]
      %v267 = vld [vmem:[%s219 + $0x150] sm:$0xff]
      %v268 = vld [vmem:[%s219 + $0x158] sm:$0xff]
      %v269 = vld [vmem:[%s219 + $0x160] sm:$0x3]
      %v270 = vld [vmem:[%s219 + $0x168] sm:$0xff]
      %v271 = vld [vmem:[%s219 + $0x170] sm:$0xff]
      %v272 = vld [vmem:[%s219 + $0x178] sm:$0x3]
      %v273 = vld [vmem:[%s219 + $0x180] sm:$0xff]
      %v274 = vld [vmem:[%s219 + $0x188] sm:$0xff]
      %v275 = vld [vmem:[%s219 + $0x190] sm:$0x3]
      %v276 = vld [vmem:[%s219 + $0x198] sm:$0xff]
      %v277 = vld [vmem:[%s219 + $0x1a0] sm:$0xff]
      %v278 = vld [vmem:[%s219 + $0x1a8] sm:$0x3]
      %v279 = vld [vmem:[%s1] sm:$0xff]
      %v280 = vld [vmem:[%s1 + $0x8] sm:$0xff]
      %v281 = vld [vmem:[%s1 + $0x10] sm:$0xff]
      %v282 = vld [vmem:[%s1 + $0x18] sm:$0xff]
      %v283 = vld [vmem:[%s1 + $0x20] sm:$0xf]
      %v284 = vld [vmem:[%s2] sm:$0x1]
      %vm333 = vcmask 1046528
      %v334 = vrot.slane %v228, 1
      %v335 = vrot.slane %v229, 1
      %v336 = vsel %vm333, %v334, %v335
      %v337 = vrot.slane %v230, 1
      %v338 = vsel %vm333, %v335, %v337
      %v339 = vrot.slane %v231, 1
      %v340 = vrot.slane %v232, 1
      %v341 = vsel %vm333, %v339, %v340
      %v342 = vrot.slane %v233, 1
      %v343 = vsel %vm333, %v340, %v342
      %v344 = vrot.slane %v234, 1
      %v345 = vrot.slane %v235, 1
      %v346 = vsel %vm333, %v344, %v345
      %v347 = vrot.slane %v236, 1
      %v348 = vsel %vm333, %v345, %v347
      %v349 = vrot.slane %v237, 1
      %v350 = vrot.slane %v238, 1
      %v351 = vsel %vm333, %v349, %v350
      %v352 = vrot.slane %v239, 1
      %v353 = vsel %vm333, %v350, %v352
      %v354 = vrot.slane %v240, 1
      %v355 = vrot.slane %v241, 1
      %v356 = vsel %vm333, %v354, %v355
      %v357 = vrot.slane %v242, 1
      %v358 = vsel %vm333, %v355, %v357
      %v359 = vrot.slane %v243, 1
      %v360 = vrot.slane %v244, 1
      %v361 = vsel %vm333, %v359, %v360
      %v362 = vrot.slane %v245, 1
      %v363 = vsel %vm333, %v360, %v362
      %v364 = vrot.slane %v246, 1
      %v365 = vrot.slane %v247, 1
      %v366 = vsel %vm333, %v364, %v365
      %v367 = vrot.slane %v248, 1
      %v368 = vsel %vm333, %v365, %v367
      %v369 = vrot.slane %v249, 1
      %v370 = vrot.slane %v250, 1
      %v371 = vsel %vm333, %v369, %v370
      %v372 = vrot.slane %v251, 1
      %v373 = vsel %vm333, %v370, %v372
      %v374 = vrot.slane %v252, 1
      %v375 = vrot.slane %v253, 1
      %v376 = vsel %vm333, %v374, %v375
      %v377 = vrot.slane %v254, 1
      %v378 = vsel %vm333, %v375, %v377
      %v379 = vrot.slane %v255, 1
      %v380 = vrot.slane %v256, 1
      %v381 = vsel %vm333, %v379, %v380
      %v382 = vrot.slane %v257, 1
      %v383 = vsel %vm333, %v380, %v382
      %v384 = vrot.slane %v258, 1
      %v385 = vrot.slane %v259, 1
      %v386 = vsel %vm333, %v384, %v385
      %v387 = vrot.slane %v260, 1
      %v388 = vsel %vm333, %v385, %v387
      %v389 = vrot.slane %v261, 1
      %v390 = vrot.slane %v262, 1
      %v391 = vsel %vm333, %v389, %v390
      %v392 = vrot.slane %v263, 1
      %v393 = vsel %vm333, %v390, %v392
      %v394 = vrot.slane %v264, 1
      %v395 = vrot.slane %v265, 1
      %v396 = vsel %vm333, %v394, %v395
      %v397 = vrot.slane %v266, 1
      %v398 = vsel %vm333, %v395, %v397
      %v399 = vrot.slane %v267, 1
      %v400 = vrot.slane %v268, 1
      %v401 = vsel %vm333, %v399, %v400
      %v402 = vrot.slane %v269, 1
      %v403 = vsel %vm333, %v400, %v402
      %v404 = vrot.slane %v270, 1
      %v405 = vrot.slane %v271, 1
      %v406 = vsel %vm333, %v404, %v405
      %v407 = vrot.slane %v272, 1
      %v408 = vsel %vm333, %v405, %v407
      %v409 = vrot.slane %v273, 1
      %v410 = vrot.slane %v274, 1
      %v411 = vsel %vm333, %v409, %v410
      %v412 = vrot.slane %v275, 1
      %v413 = vsel %vm333, %v410, %v412
      %v449 = vrot.slane %v225, 1
      %v450 = vrot.slane %v226, 1
      %v451 = vsel %vm333, %v449, %v450
      %v452 = vrot.slane %v227, 1
      %v453 = vsel %vm333, %v450, %v452
      %454 = vrot.lane.b32.xlu0 %v451, 4
      %v455 = vpop.permute.xlu0 %454
      %456 = vrot.lane.b32.xlu0 %v453, 4
      %v457 = vpop.permute.xlu0 %456
      %458 = vrot.lane.b32.xlu0 %v336, 4
      %v459 = vpop.permute.xlu0 %458
      %460 = vrot.lane.b32.xlu0 %v338, 4
      %v461 = vpop.permute.xlu0 %460
      %462 = vrot.lane.b32.xlu0 %v341, 4
      %v463 = vpop.permute.xlu0 %462
      %464 = vrot.lane.b32.xlu0 %v343, 4
      %v465 = vpop.permute.xlu0 %464
      %466 = vrot.lane.b32.xlu0 %v346, 4
      %v467 = vpop.permute.xlu0 %466
      %468 = vrot.lane.b32.xlu0 %v348, 4
      %v469 = vpop.permute.xlu0 %468
      %470 = vrot.lane.b32.xlu0 %v351, 4
      %v471 = vpop.permute.xlu0 %470
      %472 = vrot.lane.b32.xlu0 %v353, 4
      %v473 = vpop.permute.xlu0 %472
      %474 = vrot.lane.b32.xlu0 %v356, 4
      %v475 = vpop.permute.xlu0 %474
      %476 = vrot.lane.b32.xlu0 %v358, 4
      %v477 = vpop.permute.xlu0 %476
      %478 = vrot.lane.b32.xlu0 %v361, 4
      %v479 = vpop.permute.xlu0 %478
      %480 = vrot.lane.b32.xlu0 %v363, 4
      %v481 = vpop.permute.xlu0 %480
      %482 = vrot.lane.b32.xlu0 %v366, 4
      %v483 = vpop.permute.xlu0 %482
      %484 = vrot.lane.b32.xlu0 %v368, 4
      %v485 = vpop.permute.xlu0 %484
      %486 = vrot.lane.b32.xlu0 %v371, 4
      %v487 = vpop.permute.xlu0 %486
      %488 = vrot.lane.b32.xlu0 %v373, 4
      %v489 = vpop.permute.xlu0 %488
      %490 = vrot.lane.b32.xlu0 %v376, 4
      %v491 = vpop.permute.xlu0 %490
      %492 = vrot.lane.b32.xlu0 %v378, 4
      %v493 = vpop.permute.xlu0 %492
      %494 = vrot.lane.b32.xlu0 %v381, 4
      %v495 = vpop.permute.xlu0 %494
      %496 = vrot.lane.b32.xlu0 %v383, 4
      %v497 = vpop.permute.xlu0 %496
      %498 = vrot.lane.b32.xlu0 %v386, 4
      %v499 = vpop.permute.xlu0 %498
      %500 = vrot.lane.b32.xlu0 %v388, 4
      %v501 = vpop.permute.xlu0 %500
      %502 = vrot.lane.b32.xlu0 %v391, 4
      %v503 = vpop.permute.xlu0 %502
      %504 = vrot.lane.b32.xlu0 %v393, 4
      %v505 = vpop.permute.xlu0 %504
      %506 = vrot.lane.b32.xlu0 %v396, 4
      %v507 = vpop.permute.xlu0 %506
      %508 = vrot.lane.b32.xlu0 %v398, 4
      %v509 = vpop.permute.xlu0 %508
      %510 = vrot.lane.b32.xlu0 %v401, 4
      %v511 = vpop.permute.xlu0 %510
      %512 = vrot.lane.b32.xlu0 %v403, 4
      %v513 = vpop.permute.xlu0 %512
      %514 = vrot.lane.b32.xlu0 %v406, 4
      %v515 = vpop.permute.xlu0 %514
      %516 = vrot.lane.b32.xlu0 %v408, 4
      %v517 = vpop.permute.xlu0 %516
      %vm550 = vcmask 1045504
      %v551 = vrot.slane %v225, 2
      %v552 = vrot.slane %v226, 2
      %v553 = vsel %vm550, %v551, %v552
      %v554 = vrot.slane %v227, 2
      %v555 = vsel %vm550, %v552, %v554
      %v556 = vrot.slane %v228, 2
      %v557 = vrot.slane %v229, 2
      %v558 = vsel %vm550, %v556, %v557
      %v559 = vrot.slane %v230, 2
      %v560 = vsel %vm550, %v557, %v559
      %v561 = vrot.slane %v231, 2
      %v562 = vrot.slane %v232, 2
      %v563 = vsel %vm550, %v561, %v562
      %v564 = vrot.slane %v233, 2
      %v565 = vsel %vm550, %v562, %v564
      %v566 = vrot.slane %v234, 2
      %v567 = vrot.slane %v235, 2
      %v568 = vsel %vm550, %v566, %v567
      %v569 = vrot.slane %v236, 2
      %v570 = vsel %vm550, %v567, %v569
      %v571 = vrot.slane %v237, 2
      %v572 = vrot.slane %v238, 2
      %v573 = vsel %vm550, %v571, %v572
      %v574 = vrot.slane %v239, 2
      %v575 = vsel %vm550, %v572, %v574
      %v576 = vrot.slane %v240, 2
      %v577 = vrot.slane %v241, 2
      %v578 = vsel %vm550, %v576, %v577
      %v579 = vrot.slane %v242, 2
      %v580 = vsel %vm550, %v577, %v579
      %v581 = vrot.slane %v243, 2
      %v582 = vrot.slane %v244, 2
      %v583 = vsel %vm550, %v581, %v582
      %v584 = vrot.slane %v245, 2
      %v585 = vsel %vm550, %v582, %v584
      %v586 = vrot.slane %v246, 2
      %v587 = vrot.slane %v247, 2
      %v588 = vsel %vm550, %v586, %v587
      %v589 = vrot.slane %v248, 2
      %v590 = vsel %vm550, %v587, %v589
      %v591 = vrot.slane %v249, 2
      %v592 = vrot.slane %v250, 2
      %v593 = vsel %vm550, %v591, %v592
      %v594 = vrot.slane %v251, 2
      %v595 = vsel %vm550, %v592, %v594
      %v596 = vrot.slane %v252, 2
      %v597 = vrot.slane %v253, 2
      %v598 = vsel %vm550, %v596, %v597
      %v599 = vrot.slane %v254, 2
      %v600 = vsel %vm550, %v597, %v599
      %v601 = vrot.slane %v255, 2
      %v602 = vrot.slane %v256, 2
      %v603 = vsel %vm550, %v601, %v602
      %v604 = vrot.slane %v257, 2
      %v605 = vsel %vm550, %v602, %v604
      %v606 = vrot.slane %v258, 2
      %v607 = vrot.slane %v259, 2
      %v608 = vsel %vm550, %v606, %v607
      %v609 = vrot.slane %v260, 2
      %v610 = vsel %vm550, %v607, %v609
      %v611 = vrot.slane %v261, 2
      %v612 = vrot.slane %v262, 2
      %v613 = vsel %vm550, %v611, %v612
      %v614 = vrot.slane %v263, 2
      %v615 = vsel %vm550, %v612, %v614
      %v616 = vrot.slane %v264, 2
      %v617 = vrot.slane %v265, 2
      %v618 = vsel %vm550, %v616, %v617
      %v619 = vrot.slane %v266, 2
      %v620 = vsel %vm550, %v617, %v619
      %v621 = vrot.slane %v267, 2
      %v622 = vrot.slane %v268, 2
      %v623 = vsel %vm550, %v621, %v622
      %v624 = vrot.slane %v269, 2
      %v625 = vsel %vm550, %v622, %v624
      %v626 = vrot.slane %v270, 2
      %v627 = vrot.slane %v271, 2
      %v628 = vsel %vm550, %v626, %v627
      %v629 = vrot.slane %v272, 2
      %v630 = vsel %vm550, %v627, %v629
      %631 = vrot.lane.b32.xlu0 %v553, 8
      %v632 = vpop.permute.xlu0 %631
      %633 = vrot.lane.b32.xlu0 %v555, 8
      %v634 = vpop.permute.xlu0 %633
      %635 = vrot.lane.b32.xlu0 %v558, 8
      %v636 = vpop.permute.xlu0 %635
      %637 = vrot.lane.b32.xlu0 %v560, 8
      %v638 = vpop.permute.xlu0 %637
      %639 = vrot.lane.b32.xlu0 %v563, 8
      %v640 = vpop.permute.xlu0 %639
      %641 = vrot.lane.b32.xlu0 %v565, 8
      %v642 = vpop.permute.xlu0 %641
      %643 = vrot.lane.b32.xlu0 %v568, 8
      %v644 = vpop.permute.xlu0 %643
      %645 = vrot.lane.b32.xlu0 %v570, 8
      %v646 = vpop.permute.xlu0 %645
      %647 = vrot.lane.b32.xlu0 %v573, 8
      %v648 = vpop.permute.xlu0 %647
      %649 = vrot.lane.b32.xlu0 %v575, 8
      %v650 = vpop.permute.xlu0 %649
      %651 = vrot.lane.b32.xlu0 %v578, 8
      %v652 = vpop.permute.xlu0 %651
      %653 = vrot.lane.b32.xlu0 %v580, 8
      %v654 = vpop.permute.xlu0 %653
      %655 = vrot.lane.b32.xlu0 %v583, 8
      %v656 = vpop.permute.xlu0 %655
      %657 = vrot.lane.b32.xlu0 %v585, 8
      %v658 = vpop.permute.xlu0 %657
      %659 = vrot.lane.b32.xlu0 %v588, 8
      %v660 = vpop.permute.xlu0 %659
      %661 = vrot.lane.b32.xlu0 %v590, 8
      %v662 = vpop.permute.xlu0 %661
      %663 = vrot.lane.b32.xlu0 %v593, 8
      %v664 = vpop.permute.xlu0 %663
      %665 = vrot.lane.b32.xlu0 %v595, 8
      %v666 = vpop.permute.xlu0 %665
      %667 = vrot.lane.b32.xlu0 %v598, 8
      %v668 = vpop.permute.xlu0 %667
      %669 = vrot.lane.b32.xlu0 %v600, 8
      %v670 = vpop.permute.xlu0 %669
      %671 = vrot.lane.b32.xlu0 %v603, 8
      %v672 = vpop.permute.xlu0 %671
      %673 = vrot.lane.b32.xlu0 %v605, 8
      %v674 = vpop.permute.xlu0 %673
      %675 = vrot.lane.b32.xlu0 %v608, 8
      %v676 = vpop.permute.xlu0 %675
      %677 = vrot.lane.b32.xlu0 %v610, 8
      %v678 = vpop.permute.xlu0 %677
      %679 = vrot.lane.b32.xlu0 %v613, 8
      %v680 = vpop.permute.xlu0 %679
      %681 = vrot.lane.b32.xlu0 %v615, 8
      %v682 = vpop.permute.xlu0 %681
      %683 = vrot.lane.b32.xlu0 %v618, 8
      %v684 = vpop.permute.xlu0 %683
      %685 = vrot.lane.b32.xlu0 %v620, 8
      %v686 = vpop.permute.xlu0 %685
      %687 = vrot.lane.b32.xlu0 %v623, 8
      %v688 = vpop.permute.xlu0 %687
      %689 = vrot.lane.b32.xlu0 %v625, 8
      %v690 = vpop.permute.xlu0 %689
      %691 = vrot.lane.b32.xlu0 %v628, 8
      %v692 = vpop.permute.xlu0 %691
      %693 = vrot.lane.b32.xlu0 %v630, 8
      %v694 = vpop.permute.xlu0 %693
      %727 = vrot.lane.b32.xlu0 %v228, 12
      %v728 = vpop.permute.xlu0 %727
      %729 = vrot.lane.b32.xlu0 %v229, 12
      %v730 = vpop.permute.xlu0 %729
      %731 = vrot.lane.b32.xlu0 %v231, 12
      %v732 = vpop.permute.xlu0 %731
      %733 = vrot.lane.b32.xlu0 %v232, 12
      %v734 = vpop.permute.xlu0 %733
      %735 = vrot.lane.b32.xlu0 %v234, 12
      %v736 = vpop.permute.xlu0 %735
      %737 = vrot.lane.b32.xlu0 %v235, 12
      %v738 = vpop.permute.xlu0 %737
      %739 = vrot.lane.b32.xlu0 %v237, 12
      %v740 = vpop.permute.xlu0 %739
      %741 = vrot.lane.b32.xlu0 %v238, 12
      %v742 = vpop.permute.xlu0 %741
      %743 = vrot.lane.b32.xlu0 %v240, 12
      %v744 = vpop.permute.xlu0 %743
      %745 = vrot.lane.b32.xlu0 %v241, 12
      %v746 = vpop.permute.xlu0 %745
      %747 = vrot.lane.b32.xlu0 %v243, 12
      %v748 = vpop.permute.xlu0 %747
      %749 = vrot.lane.b32.xlu0 %v244, 12
      %v750 = vpop.permute.xlu0 %749
      %751 = vrot.lane.b32.xlu0 %v246, 12
      %v752 = vpop.permute.xlu0 %751
      %753 = vrot.lane.b32.xlu0 %v247, 12
      %v754 = vpop.permute.xlu0 %753
      %755 = vrot.lane.b32.xlu0 %v249, 12
      %v756 = vpop.permute.xlu0 %755
      %757 = vrot.lane.b32.xlu0 %v250, 12
      %v758 = vpop.permute.xlu0 %757
      %759 = vrot.lane.b32.xlu0 %v252, 12
      %v760 = vpop.permute.xlu0 %759
      %761 = vrot.lane.b32.xlu0 %v253, 12
      %v762 = vpop.permute.xlu0 %761
      %763 = vrot.lane.b32.xlu0 %v255, 12
      %v764 = vpop.permute.xlu0 %763
      %765 = vrot.lane.b32.xlu0 %v256, 12
      %v766 = vpop.permute.xlu0 %765
      %767 = vrot.lane.b32.xlu0 %v258, 12
      %v768 = vpop.permute.xlu0 %767
      %769 = vrot.lane.b32.xlu0 %v259, 12
      %v770 = vpop.permute.xlu0 %769
      %771 = vrot.lane.b32.xlu0 %v261, 12
      %v772 = vpop.permute.xlu0 %771
      %773 = vrot.lane.b32.xlu0 %v262, 12
      %v774 = vpop.permute.xlu0 %773
      %775 = vrot.lane.b32.xlu0 %v264, 12
      %v776 = vpop.permute.xlu0 %775
      %777 = vrot.lane.b32.xlu0 %v265, 12
      %v778 = vpop.permute.xlu0 %777
      %779 = vrot.lane.b32.xlu0 %v267, 12
      %v780 = vpop.permute.xlu0 %779
      %781 = vrot.lane.b32.xlu0 %v268, 12
      %v782 = vpop.permute.xlu0 %781
      %783 = vrot.lane.b32.xlu0 %v270, 12
      %v784 = vpop.permute.xlu0 %783
      %785 = vrot.lane.b32.xlu0 %v271, 12
      %v786 = vpop.permute.xlu0 %785
      %787 = vrot.lane.b32.xlu0 %v273, 12
      %v788 = vpop.permute.xlu0 %787
      %789 = vrot.lane.b32.xlu0 %v274, 12
      %v790 = vpop.permute.xlu0 %789
      %823 = vrot.lane.b32.xlu0 %v336, 16
      %v824 = vpop.permute.xlu0 %823
      %825 = vrot.lane.b32.xlu0 %v338, 16
      %v826 = vpop.permute.xlu0 %825
      %827 = vrot.lane.b32.xlu0 %v341, 16
      %v828 = vpop.permute.xlu0 %827
      %829 = vrot.lane.b32.xlu0 %v343, 16
      %v830 = vpop.permute.xlu0 %829
      %831 = vrot.lane.b32.xlu0 %v346, 16
      %v832 = vpop.permute.xlu0 %831
      %833 = vrot.lane.b32.xlu0 %v348, 16
      %v834 = vpop.permute.xlu0 %833
      %835 = vrot.lane.b32.xlu0 %v351, 16
      %v836 = vpop.permute.xlu0 %835
      %837 = vrot.lane.b32.xlu0 %v353, 16
      %v838 = vpop.permute.xlu0 %837
      %839 = vrot.lane.b32.xlu0 %v356, 16
      %v840 = vpop.permute.xlu0 %839
      %841 = vrot.lane.b32.xlu0 %v358, 16
      %v842 = vpop.permute.xlu0 %841
      %843 = vrot.lane.b32.xlu0 %v361, 16
      %v844 = vpop.permute.xlu0 %843
      %845 = vrot.lane.b32.xlu0 %v363, 16
      %v846 = vpop.permute.xlu0 %845
      %847 = vrot.lane.b32.xlu0 %v366, 16
      %v848 = vpop.permute.xlu0 %847
      %849 = vrot.lane.b32.xlu0 %v368, 16
      %v850 = vpop.permute.xlu0 %849
      %851 = vrot.lane.b32.xlu0 %v371, 16
      %v852 = vpop.permute.xlu0 %851
      %853 = vrot.lane.b32.xlu0 %v373, 16
      %v854 = vpop.permute.xlu0 %853
      %855 = vrot.lane.b32.xlu0 %v376, 16
      %v856 = vpop.permute.xlu0 %855
      %857 = vrot.lane.b32.xlu0 %v378, 16
      %v858 = vpop.permute.xlu0 %857
      %859 = vrot.lane.b32.xlu0 %v381, 16
      %v860 = vpop.permute.xlu0 %859
      %861 = vrot.lane.b32.xlu0 %v383, 16
      %v862 = vpop.permute.xlu0 %861
      %863 = vrot.lane.b32.xlu0 %v386, 16
      %v864 = vpop.permute.xlu0 %863
      %865 = vrot.lane.b32.xlu0 %v388, 16
      %v866 = vpop.permute.xlu0 %865
      %867 = vrot.lane.b32.xlu0 %v391, 16
      %v868 = vpop.permute.xlu0 %867
      %869 = vrot.lane.b32.xlu0 %v393, 16
      %v870 = vpop.permute.xlu0 %869
      %871 = vrot.lane.b32.xlu0 %v396, 16
      %v872 = vpop.permute.xlu0 %871
      %873 = vrot.lane.b32.xlu0 %v398, 16
      %v874 = vpop.permute.xlu0 %873
      %875 = vrot.lane.b32.xlu0 %v401, 16
      %v876 = vpop.permute.xlu0 %875
      %877 = vrot.lane.b32.xlu0 %v403, 16
      %v878 = vpop.permute.xlu0 %877
      %879 = vrot.lane.b32.xlu0 %v406, 16
      %v880 = vpop.permute.xlu0 %879
      %881 = vrot.lane.b32.xlu0 %v408, 16
      %v882 = vpop.permute.xlu0 %881
      %883 = vrot.lane.b32.xlu0 %v411, 16
      %v884 = vpop.permute.xlu0 %883
      %885 = vrot.lane.b32.xlu0 %v413, 16
      %v886 = vpop.permute.xlu0 %885
      %v919 = vrot.slane %v273, 2
      %v920 = vrot.slane %v274, 2
      %v921 = vsel %vm550, %v919, %v920
      %v922 = vrot.slane %v275, 2
      %v923 = vsel %vm550, %v920, %v922
      %924 = vrot.lane.b32.xlu0 %v558, 20
      %v925 = vpop.permute.xlu0 %924
      %926 = vrot.lane.b32.xlu0 %v560, 20
      %v927 = vpop.permute.xlu0 %926
      %928 = vrot.lane.b32.xlu0 %v563, 20
      %v929 = vpop.permute.xlu0 %928
      %930 = vrot.lane.b32.xlu0 %v565, 20
      %v931 = vpop.permute.xlu0 %930
      %932 = vrot.lane.b32.xlu0 %v568, 20
      %v933 = vpop.permute.xlu0 %932
      %934 = vrot.lane.b32.xlu0 %v570, 20
      %v935 = vpop.permute.xlu0 %934
      %936 = vrot.lane.b32.xlu0 %v573, 20
      %v937 = vpop.permute.xlu0 %936
      %938 = vrot.lane.b32.xlu0 %v575, 20
      %v939 = vpop.permute.xlu0 %938
      %940 = vrot.lane.b32.xlu0 %v578, 20
      %v941 = vpop.permute.xlu0 %940
      %942 = vrot.lane.b32.xlu0 %v580, 20
      %v943 = vpop.permute.xlu0 %942
      %944 = vrot.lane.b32.xlu0 %v583, 20
      %v945 = vpop.permute.xlu0 %944
      %946 = vrot.lane.b32.xlu0 %v585, 20
      %v947 = vpop.permute.xlu0 %946
      %948 = vrot.lane.b32.xlu0 %v588, 20
      %v949 = vpop.permute.xlu0 %948
      %950 = vrot.lane.b32.xlu0 %v590, 20
      %v951 = vpop.permute.xlu0 %950
      %952 = vrot.lane.b32.xlu0 %v593, 20
      %v953 = vpop.permute.xlu0 %952
      %954 = vrot.lane.b32.xlu0 %v595, 20
      %v955 = vpop.permute.xlu0 %954
      %956 = vrot.lane.b32.xlu0 %v598, 20
      %v957 = vpop.permute.xlu0 %956
      %958 = vrot.lane.b32.xlu0 %v600, 20
      %v959 = vpop.permute.xlu0 %958
      %960 = vrot.lane.b32.xlu0 %v603, 20
      %v961 = vpop.permute.xlu0 %960
      %962 = vrot.lane.b32.xlu0 %v605, 20
      %v963 = vpop.permute.xlu0 %962
      %964 = vrot.lane.b32.xlu0 %v608, 20
      %v965 = vpop.permute.xlu0 %964
      %966 = vrot.lane.b32.xlu0 %v610, 20
      %v967 = vpop.permute.xlu0 %966
      %968 = vrot.lane.b32.xlu0 %v613, 20
      %v969 = vpop.permute.xlu0 %968
      %970 = vrot.lane.b32.xlu0 %v615, 20
      %v971 = vpop.permute.xlu0 %970
      %972 = vrot.lane.b32.xlu0 %v618, 20
      %v973 = vpop.permute.xlu0 %972
      %974 = vrot.lane.b32.xlu0 %v620, 20
      %v975 = vpop.permute.xlu0 %974
      %976 = vrot.lane.b32.xlu0 %v623, 20
      %v977 = vpop.permute.xlu0 %976
      %978 = vrot.lane.b32.xlu0 %v625, 20
      %v979 = vpop.permute.xlu0 %978
      %980 = vrot.lane.b32.xlu0 %v628, 20
      %v981 = vpop.permute.xlu0 %980
      %982 = vrot.lane.b32.xlu0 %v630, 20
      %v983 = vpop.permute.xlu0 %982
      %984 = vrot.lane.b32.xlu0 %v921, 20
      %v985 = vpop.permute.xlu0 %984
      %986 = vrot.lane.b32.xlu0 %v923, 20
      %v987 = vpop.permute.xlu0 %986
      %1022 = vrot.lane.b32.xlu0 %v231, 24
      %v1023 = vpop.permute.xlu0 %1022
      %1024 = vrot.lane.b32.xlu0 %v232, 24
      %v1025 = vpop.permute.xlu0 %1024
      %1026 = vrot.lane.b32.xlu0 %v234, 24
      %v1027 = vpop.permute.xlu0 %1026
      %1028 = vrot.lane.b32.xlu0 %v235, 24
      %v1029 = vpop.permute.xlu0 %1028
      %1030 = vrot.lane.b32.xlu0 %v237, 24
      %v1031 = vpop.permute.xlu0 %1030
      %1032 = vrot.lane.b32.xlu0 %v238, 24
      %v1033 = vpop.permute.xlu0 %1032
      %1034 = vrot.lane.b32.xlu0 %v240, 24
      %v1035 = vpop.permute.xlu0 %1034
      %1036 = vrot.lane.b32.xlu0 %v241, 24
      %v1037 = vpop.permute.xlu0 %1036
      %1038 = vrot.lane.b32.xlu0 %v243, 24
      %v1039 = vpop.permute.xlu0 %1038
      %1040 = vrot.lane.b32.xlu0 %v244, 24
      %v1041 = vpop.permute.xlu0 %1040
      %1042 = vrot.lane.b32.xlu0 %v246, 24
      %v1043 = vpop.permute.xlu0 %1042
      %1044 = vrot.lane.b32.xlu0 %v247, 24
      %v1045 = vpop.permute.xlu0 %1044
      %1046 = vrot.lane.b32.xlu0 %v249, 24
      %v1047 = vpop.permute.xlu0 %1046
      %1048 = vrot.lane.b32.xlu0 %v250, 24
      %v1049 = vpop.permute.xlu0 %1048
      %1050 = vrot.lane.b32.xlu0 %v252, 24
      %v1051 = vpop.permute.xlu0 %1050
      %1052 = vrot.lane.b32.xlu0 %v253, 24
      %v1053 = vpop.permute.xlu0 %1052
      %1054 = vrot.lane.b32.xlu0 %v255, 24
      %v1055 = vpop.permute.xlu0 %1054
      %1056 = vrot.lane.b32.xlu0 %v256, 24
      %v1057 = vpop.permute.xlu0 %1056
      %1058 = vrot.lane.b32.xlu0 %v258, 24
      %v1059 = vpop.permute.xlu0 %1058
      %1060 = vrot.lane.b32.xlu0 %v259, 24
      %v1061 = vpop.permute.xlu0 %1060
      %1062 = vrot.lane.b32.xlu0 %v261, 24
      %v1063 = vpop.permute.xlu0 %1062
      %1064 = vrot.lane.b32.xlu0 %v262, 24
      %v1065 = vpop.permute.xlu0 %1064
      %1066 = vrot.lane.b32.xlu0 %v264, 24
      %v1067 = vpop.permute.xlu0 %1066
      %1068 = vrot.lane.b32.xlu0 %v265, 24
      %v1069 = vpop.permute.xlu0 %1068
      %1070 = vrot.lane.b32.xlu0 %v267, 24
      %v1071 = vpop.permute.xlu0 %1070
      %1072 = vrot.lane.b32.xlu0 %v268, 24
      %v1073 = vpop.permute.xlu0 %1072
      %1074 = vrot.lane.b32.xlu0 %v270, 24
      %v1075 = vpop.permute.xlu0 %1074
      %1076 = vrot.lane.b32.xlu0 %v271, 24
      %v1077 = vpop.permute.xlu0 %1076
      %1078 = vrot.lane.b32.xlu0 %v273, 24
      %v1079 = vpop.permute.xlu0 %1078
      %1080 = vrot.lane.b32.xlu0 %v274, 24
      %v1081 = vpop.permute.xlu0 %1080
      %1082 = vrot.lane.b32.xlu0 %v276, 24
      %v1083 = vpop.permute.xlu0 %1082
      %1084 = vrot.lane.b32.xlu0 %v277, 24
      %v1085 = vpop.permute.xlu0 %1084
      %v1119 = vrot.slane %v276, 1
      %v1120 = vrot.slane %v277, 1
      %v1121 = vsel %vm333, %v1119, %v1120
      %v1122 = vrot.slane %v278, 1
      %v1123 = vsel %vm333, %v1120, %v1122
      %1124 = vrot.lane.b32.xlu0 %v341, 28
      %v1125 = vpop.permute.xlu0 %1124
      %1126 = vrot.lane.b32.xlu0 %v343, 28
      %v1127 = vpop.permute.xlu0 %1126
      %1128 = vrot.lane.b32.xlu0 %v346, 28
      %v1129 = vpop.permute.xlu0 %1128
      %1130 = vrot.lane.b32.xlu0 %v348, 28
      %v1131 = vpop.permute.xlu0 %1130
      %1132 = vrot.lane.b32.xlu0 %v351, 28
      %v1133 = vpop.permute.xlu0 %1132
      %1134 = vrot.lane.b32.xlu0 %v353, 28
      %v1135 = vpop.permute.xlu0 %1134
      %1136 = vrot.lane.b32.xlu0 %v356, 28
      %v1137 = vpop.permute.xlu0 %1136
      %1138 = vrot.lane.b32.xlu0 %v358, 28
      %v1139 = vpop.permute.xlu0 %1138
      %1140 = vrot.lane.b32.xlu0 %v361, 28
      %v1141 = vpop.permute.xlu0 %1140
      %1142 = vrot.lane.b32.xlu0 %v363, 28
      %v1143 = vpop.permute.xlu0 %1142
      %1144 = vrot.lane.b32.xlu0 %v366, 28
      %v1145 = vpop.permute.xlu0 %1144
      %1146 = vrot.lane.b32.xlu0 %v368, 28
      %v1147 = vpop.permute.xlu0 %1146
      %1148 = vrot.lane.b32.xlu0 %v371, 28
      %v1149 = vpop.permute.xlu0 %1148
      %1150 = vrot.lane.b32.xlu0 %v373, 28
      %v1151 = vpop.permute.xlu0 %1150
      %1152 = vrot.lane.b32.xlu0 %v376, 28
      %v1153 = vpop.permute.xlu0 %1152
      %1154 = vrot.lane.b32.xlu0 %v378, 28
      %v1155 = vpop.permute.xlu0 %1154
      %1156 = vrot.lane.b32.xlu0 %v381, 28
      %v1157 = vpop.permute.xlu0 %1156
      %1158 = vrot.lane.b32.xlu0 %v383, 28
      %v1159 = vpop.permute.xlu0 %1158
      %1160 = vrot.lane.b32.xlu0 %v386, 28
      %v1161 = vpop.permute.xlu0 %1160
      %1162 = vrot.lane.b32.xlu0 %v388, 28
      %v1163 = vpop.permute.xlu0 %1162
      %1164 = vrot.lane.b32.xlu0 %v391, 28
      %v1165 = vpop.permute.xlu0 %1164
      %1166 = vrot.lane.b32.xlu0 %v393, 28
      %v1167 = vpop.permute.xlu0 %1166
      %1168 = vrot.lane.b32.xlu0 %v396, 28
      %v1169 = vpop.permute.xlu0 %1168
      %1170 = vrot.lane.b32.xlu0 %v398, 28
      %v1171 = vpop.permute.xlu0 %1170
      %1172 = vrot.lane.b32.xlu0 %v401, 28
      %v1173 = vpop.permute.xlu0 %1172
      %1174 = vrot.lane.b32.xlu0 %v403, 28
      %v1175 = vpop.permute.xlu0 %1174
      %1176 = vrot.lane.b32.xlu0 %v406, 28
      %v1177 = vpop.permute.xlu0 %1176
      %1178 = vrot.lane.b32.xlu0 %v408, 28
      %v1179 = vpop.permute.xlu0 %1178
      %1180 = vrot.lane.b32.xlu0 %v411, 28
      %v1181 = vpop.permute.xlu0 %1180
      %1182 = vrot.lane.b32.xlu0 %v413, 28
      %v1183 = vpop.permute.xlu0 %1182
      %1184 = vrot.lane.b32.xlu0 %v1121, 28
      %v1185 = vpop.permute.xlu0 %1184
      %1186 = vrot.lane.b32.xlu0 %v1123, 28
      %v1187 = vpop.permute.xlu0 %1186
      %v1220 = vrot.slane %v276, 2
      %v1221 = vrot.slane %v277, 2
      %v1222 = vsel %vm550, %v1220, %v1221
      %v1223 = vrot.slane %v278, 2
      %v1224 = vsel %vm550, %v1221, %v1223
      %1225 = vrot.lane.b32.xlu0 %v563, 32
      %v1226 = vpop.permute.xlu0 %1225
      %1227 = vrot.lane.b32.xlu0 %v565, 32
      %v1228 = vpop.permute.xlu0 %1227
      %1229 = vrot.lane.b32.xlu0 %v568, 32
      %v1230 = vpop.permute.xlu0 %1229
      %1231 = vrot.lane.b32.xlu0 %v570, 32
      %v1232 = vpop.permute.xlu0 %1231
      %1233 = vrot.lane.b32.xlu0 %v573, 32
      %v1234 = vpop.permute.xlu0 %1233
      %1235 = vrot.lane.b32.xlu0 %v575, 32
      %v1236 = vpop.permute.xlu0 %1235
      %1237 = vrot.lane.b32.xlu0 %v578, 32
      %v1238 = vpop.permute.xlu0 %1237
      %1239 = vrot.lane.b32.xlu0 %v580, 32
      %v1240 = vpop.permute.xlu0 %1239
      %1241 = vrot.lane.b32.xlu0 %v583, 32
      %v1242 = vpop.permute.xlu0 %1241
      %1243 = vrot.lane.b32.xlu0 %v585, 32
      %v1244 = vpop.permute.xlu0 %1243
      %1245 = vrot.lane.b32.xlu0 %v588, 32
      %v1246 = vpop.permute.xlu0 %1245
      %1247 = vrot.lane.b32.xlu0 %v590, 32
      %v1248 = vpop.permute.xlu0 %1247
      %1249 = vrot.lane.b32.xlu0 %v593, 32
      %v1250 = vpop.permute.xlu0 %1249
      %1251 = vrot.lane.b32.xlu0 %v595, 32
      %v1252 = vpop.permute.xlu0 %1251
      %1253 = vrot.lane.b32.xlu0 %v598, 32
      %v1254 = vpop.permute.xlu0 %1253
      %1255 = vrot.lane.b32.xlu0 %v600, 32
      %v1256 = vpop.permute.xlu0 %1255
      %1257 = vrot.lane.b32.xlu0 %v603, 32
      %v1258 = vpop.permute.xlu0 %1257
      %1259 = vrot.lane.b32.xlu0 %v605, 32
      %v1260 = vpop.permute.xlu0 %1259
      %1261 = vrot.lane.b32.xlu0 %v608, 32
      %v1262 = vpop.permute.xlu0 %1261
      %1263 = vrot.lane.b32.xlu0 %v610, 32
      %v1264 = vpop.permute.xlu0 %1263
      %1265 = vrot.lane.b32.xlu0 %v613, 32
      %v1266 = vpop.permute.xlu0 %1265
      %1267 = vrot.lane.b32.xlu0 %v615, 32
      %v1268 = vpop.permute.xlu0 %1267
      %1269 = vrot.lane.b32.xlu0 %v618, 32
      %v1270 = vpop.permute.xlu0 %1269
      %1271 = vrot.lane.b32.xlu0 %v620, 32
      %v1272 = vpop.permute.xlu0 %1271
      %1273 = vrot.lane.b32.xlu0 %v623, 32
      %v1274 = vpop.permute.xlu0 %1273
      %1275 = vrot.lane.b32.xlu0 %v625, 32
      %v1276 = vpop.permute.xlu0 %1275
      %1277 = vrot.lane.b32.xlu0 %v628, 32
      %v1278 = vpop.permute.xlu0 %1277
      %1279 = vrot.lane.b32.xlu0 %v630, 32
      %v1280 = vpop.permute.xlu0 %1279
      %1281 = vrot.lane.b32.xlu0 %v921, 32
      %v1282 = vpop.permute.xlu0 %1281
      %1283 = vrot.lane.b32.xlu0 %v923, 32
      %v1284 = vpop.permute.xlu0 %1283
      %1285 = vrot.lane.b32.xlu0 %v1222, 32
      %v1286 = vpop.permute.xlu0 %1285
      %1287 = vrot.lane.b32.xlu0 %v1224, 32
      %v1288 = vpop.permute.xlu0 %1287
      %vm1321 = vcmask 31744
      %v1322 = vsel %vm1321, %v225, %v455
      %v1323 = vsel %vm1321, %v226, %v457
      %v1324 = vsel %vm1321, %v228, %v459
      %v1325 = vsel %vm1321, %v229, %v461
      %v1326 = vsel %vm1321, %v231, %v463
      %v1327 = vsel %vm1321, %v232, %v465
      %v1328 = vsel %vm1321, %v234, %v467
      %v1329 = vsel %vm1321, %v235, %v469
      %v1330 = vsel %vm1321, %v237, %v471
      %v1331 = vsel %vm1321, %v238, %v473
      %v1332 = vsel %vm1321, %v240, %v475
      %v1333 = vsel %vm1321, %v241, %v477
      %v1334 = vsel %vm1321, %v243, %v479
      %v1335 = vsel %vm1321, %v244, %v481
      %v1336 = vsel %vm1321, %v246, %v483
      %v1337 = vsel %vm1321, %v247, %v485
      %v1338 = vsel %vm1321, %v249, %v487
      %v1339 = vsel %vm1321, %v250, %v489
      %v1340 = vsel %vm1321, %v252, %v491
      %v1341 = vsel %vm1321, %v253, %v493
      %v1342 = vsel %vm1321, %v255, %v495
      %v1343 = vsel %vm1321, %v256, %v497
      %v1344 = vsel %vm1321, %v258, %v499
      %v1345 = vsel %vm1321, %v259, %v501
      %v1346 = vsel %vm1321, %v261, %v503
      %v1347 = vsel %vm1321, %v262, %v505
      %v1348 = vsel %vm1321, %v264, %v507
      %v1349 = vsel %vm1321, %v265, %v509
      %v1350 = vsel %vm1321, %v267, %v511
      %v1351 = vsel %vm1321, %v268, %v513
      %v1352 = vsel %vm1321, %v270, %v515
      %v1353 = vsel %vm1321, %v271, %v517
      %vm1354 = vcmask 64512
      %v1355 = vsel %vm1354, %v1322, %v632
      %v1356 = vsel %vm1354, %v1323, %v634
      %v1357 = vsel %vm1354, %v1324, %v636
      %v1358 = vsel %vm1354, %v1325, %v638
      %v1359 = vsel %vm1354, %v1326, %v640
      %v1360 = vsel %vm1354, %v1327, %v642
      %v1361 = vsel %vm1354, %v1328, %v644
      %v1362 = vsel %vm1354, %v1329, %v646
      %v1363 = vsel %vm1354, %v1330, %v648
      %v1364 = vsel %vm1354, %v1331, %v650
      %v1365 = vsel %vm1354, %v1332, %v652
      %v1366 = vsel %vm1354, %v1333, %v654
      %v1367 = vsel %vm1354, %v1334, %v656
      %v1368 = vsel %vm1354, %v1335, %v658
      %v1369 = vsel %vm1354, %v1336, %v660
      %v1370 = vsel %vm1354, %v1337, %v662
      %v1371 = vsel %vm1354, %v1338, %v664
      %v1372 = vsel %vm1354, %v1339, %v666
      %v1373 = vsel %vm1354, %v1340, %v668
      %v1374 = vsel %vm1354, %v1341, %v670
      %v1375 = vsel %vm1354, %v1342, %v672
      %v1376 = vsel %vm1354, %v1343, %v674
      %v1377 = vsel %vm1354, %v1344, %v676
      %v1378 = vsel %vm1354, %v1345, %v678
      %v1379 = vsel %vm1354, %v1346, %v680
      %v1380 = vsel %vm1354, %v1347, %v682
      %v1381 = vsel %vm1354, %v1348, %v684
      %v1382 = vsel %vm1354, %v1349, %v686
      %v1383 = vsel %vm1354, %v1350, %v688
      %v1384 = vsel %vm1354, %v1351, %v690
      %v1385 = vsel %vm1354, %v1352, %v692
      %v1386 = vsel %vm1354, %v1353, %v694
      %vm1387 = vcmask 97280
      %v1388 = vsel %vm1387, %v1355, %v728
      %v1389 = vsel %vm1387, %v1356, %v730
      %v1390 = vsel %vm1387, %v1357, %v732
      %v1391 = vsel %vm1387, %v1358, %v734
      %v1392 = vsel %vm1387, %v1359, %v736
      %v1393 = vsel %vm1387, %v1360, %v738
      %v1394 = vsel %vm1387, %v1361, %v740
      %v1395 = vsel %vm1387, %v1362, %v742
      %v1396 = vsel %vm1387, %v1363, %v744
      %v1397 = vsel %vm1387, %v1364, %v746
      %v1398 = vsel %vm1387, %v1365, %v748
      %v1399 = vsel %vm1387, %v1366, %v750
      %v1400 = vsel %vm1387, %v1367, %v752
      %v1401 = vsel %vm1387, %v1368, %v754
      %v1402 = vsel %vm1387, %v1369, %v756
      %v1403 = vsel %vm1387, %v1370, %v758
      %v1404 = vsel %vm1387, %v1371, %v760
      %v1405 = vsel %vm1387, %v1372, %v762
      %v1406 = vsel %vm1387, %v1373, %v764
      %v1407 = vsel %vm1387, %v1374, %v766
      %v1408 = vsel %vm1387, %v1375, %v768
      %v1409 = vsel %vm1387, %v1376, %v770
      %v1410 = vsel %vm1387, %v1377, %v772
      %v1411 = vsel %vm1387, %v1378, %v774
      %v1412 = vsel %vm1387, %v1379, %v776
      %v1413 = vsel %vm1387, %v1380, %v778
      %v1414 = vsel %vm1387, %v1381, %v780
      %v1415 = vsel %vm1387, %v1382, %v782
      %v1416 = vsel %vm1387, %v1383, %v784
      %v1417 = vsel %vm1387, %v1384, %v786
      %v1418 = vsel %vm1387, %v1385, %v788
      %v1419 = vsel %vm1387, %v1386, %v790
      %vm1420 = vcmask 130048
      %v1421 = vsel %vm1420, %v1388, %v824
      %v1422 = vsel %vm1420, %v1389, %v826
      %v1423 = vsel %vm1420, %v1390, %v828
      %v1424 = vsel %vm1420, %v1391, %v830
      %v1425 = vsel %vm1420, %v1392, %v832
      %v1426 = vsel %vm1420, %v1393, %v834
      %v1427 = vsel %vm1420, %v1394, %v836
      %v1428 = vsel %vm1420, %v1395, %v838
      %v1429 = vsel %vm1420, %v1396, %v840
      %v1430 = vsel %vm1420, %v1397, %v842
      %v1431 = vsel %vm1420, %v1398, %v844
      %v1432 = vsel %vm1420, %v1399, %v846
      %v1433 = vsel %vm1420, %v1400, %v848
      %v1434 = vsel %vm1420, %v1401, %v850
      %v1435 = vsel %vm1420, %v1402, %v852
      %v1436 = vsel %vm1420, %v1403, %v854
      %v1437 = vsel %vm1420, %v1404, %v856
      %v1438 = vsel %vm1420, %v1405, %v858
      %v1439 = vsel %vm1420, %v1406, %v860
      %v1440 = vsel %vm1420, %v1407, %v862
      %v1441 = vsel %vm1420, %v1408, %v864
      %v1442 = vsel %vm1420, %v1409, %v866
      %v1443 = vsel %vm1420, %v1410, %v868
      %v1444 = vsel %vm1420, %v1411, %v870
      %v1445 = vsel %vm1420, %v1412, %v872
      %v1446 = vsel %vm1420, %v1413, %v874
      %v1447 = vsel %vm1420, %v1414, %v876
      %v1448 = vsel %vm1420, %v1415, %v878
      %v1449 = vsel %vm1420, %v1416, %v880
      %v1450 = vsel %vm1420, %v1417, %v882
      %v1451 = vsel %vm1420, %v1418, %v884
      %v1452 = vsel %vm1420, %v1419, %v886
      %vm1453 = vcmask 162816
      %v1454 = vsel %vm1453, %v1421, %v925
      %v1455 = vsel %vm1453, %v1422, %v927
      %v1456 = vsel %vm1453, %v1423, %v929
      %v1457 = vsel %vm1453, %v1424, %v931
      %v1458 = vsel %vm1453, %v1425, %v933
      %v1459 = vsel %vm1453, %v1426, %v935
      %v1460 = vsel %vm1453, %v1427, %v937
      %v1461 = vsel %vm1453, %v1428, %v939
      %v1462 = vsel %vm1453, %v1429, %v941
      %v1463 = vsel %vm1453, %v1430, %v943
      %v1464 = vsel %vm1453, %v1431, %v945
      %v1465 = vsel %vm1453, %v1432, %v947
      %v1466 = vsel %vm1453, %v1433, %v949
      %v1467 = vsel %vm1453, %v1434, %v951
      %v1468 = vsel %vm1453, %v1435, %v953
      %v1469 = vsel %vm1453, %v1436, %v955
      %v1470 = vsel %vm1453, %v1437, %v957
      %v1471 = vsel %vm1453, %v1438, %v959
      %v1472 = vsel %vm1453, %v1439, %v961
      %v1473 = vsel %vm1453, %v1440, %v963
      %v1474 = vsel %vm1453, %v1441, %v965
      %v1475 = vsel %vm1453, %v1442, %v967
      %v1476 = vsel %vm1453, %v1443, %v969
      %v1477 = vsel %vm1453, %v1444, %v971
      %v1478 = vsel %vm1453, %v1445, %v973
      %v1479 = vsel %vm1453, %v1446, %v975
      %v1480 = vsel %vm1453, %v1447, %v977
      %v1481 = vsel %vm1453, %v1448, %v979
      %v1482 = vsel %vm1453, %v1449, %v981
      %v1483 = vsel %vm1453, %v1450, %v983
      %v1484 = vsel %vm1453, %v1451, %v985
      %v1485 = vsel %vm1453, %v1452, %v987
      %vm1486 = vcmask 195584
      %v1487 = vsel %vm1486, %v1454, %v1023
      %v1488 = vsel %vm1486, %v1455, %v1025
      %v1489 = vsel %vm1486, %v1456, %v1027
      %v1490 = vsel %vm1486, %v1457, %v1029
      %v1491 = vsel %vm1486, %v1458, %v1031
      %v1492 = vsel %vm1486, %v1459, %v1033
      %v1493 = vsel %vm1486, %v1460, %v1035
      %v1494 = vsel %vm1486, %v1461, %v1037
      %v1495 = vsel %vm1486, %v1462, %v1039
      %v1496 = vsel %vm1486, %v1463, %v1041
      %v1497 = vsel %vm1486, %v1464, %v1043
      %v1498 = vsel %vm1486, %v1465, %v1045
      %v1499 = vsel %vm1486, %v1466, %v1047
      %v1500 = vsel %vm1486, %v1467, %v1049
      %v1501 = vsel %vm1486, %v1468, %v1051
      %v1502 = vsel %vm1486, %v1469, %v1053
      %v1503 = vsel %vm1486, %v1470, %v1055
      %v1504 = vsel %vm1486, %v1471, %v1057
      %v1505 = vsel %vm1486, %v1472, %v1059
      %v1506 = vsel %vm1486, %v1473, %v1061
      %v1507 = vsel %vm1486, %v1474, %v1063
      %v1508 = vsel %vm1486, %v1475, %v1065
      %v1509 = vsel %vm1486, %v1476, %v1067
      %v1510 = vsel %vm1486, %v1477, %v1069
      %v1511 = vsel %vm1486, %v1478, %v1071
      %v1512 = vsel %vm1486, %v1479, %v1073
      %v1513 = vsel %vm1486, %v1480, %v1075
      %v1514 = vsel %vm1486, %v1481, %v1077
      %v1515 = vsel %vm1486, %v1482, %v1079
      %v1516 = vsel %vm1486, %v1483, %v1081
      %v1517 = vsel %vm1486, %v1484, %v1083
      %v1518 = vsel %vm1486, %v1485, %v1085
      %vm1519 = vcmask 228352
      %v1520 = vsel %vm1519, %v1487, %v1125
      %v1521 = vsel %vm1519, %v1488, %v1127
      %v1522 = vsel %vm1519, %v1489, %v1129
      %v1523 = vsel %vm1519, %v1490, %v1131
      %v1524 = vsel %vm1519, %v1491, %v1133
      %v1525 = vsel %vm1519, %v1492, %v1135
      %v1526 = vsel %vm1519, %v1493, %v1137
      %v1527 = vsel %vm1519, %v1494, %v1139
      %v1528 = vsel %vm1519, %v1495, %v1141
      %v1529 = vsel %vm1519, %v1496, %v1143
      %v1530 = vsel %vm1519, %v1497, %v1145
      %v1531 = vsel %vm1519, %v1498, %v1147
      %v1532 = vsel %vm1519, %v1499, %v1149
      %v1533 = vsel %vm1519, %v1500, %v1151
      %v1534 = vsel %vm1519, %v1501, %v1153
      %v1535 = vsel %vm1519, %v1502, %v1155
      %v1536 = vsel %vm1519, %v1503, %v1157
      %v1537 = vsel %vm1519, %v1504, %v1159
      %v1538 = vsel %vm1519, %v1505, %v1161
      %v1539 = vsel %vm1519, %v1506, %v1163
      %v1540 = vsel %vm1519, %v1507, %v1165
      %v1541 = vsel %vm1519, %v1508, %v1167
      %v1542 = vsel %vm1519, %v1509, %v1169
      %v1543 = vsel %vm1519, %v1510, %v1171
      %v1544 = vsel %vm1519, %v1511, %v1173
      %v1545 = vsel %vm1519, %v1512, %v1175
      %v1546 = vsel %vm1519, %v1513, %v1177
      %v1547 = vsel %vm1519, %v1514, %v1179
      %v1548 = vsel %vm1519, %v1515, %v1181
      %v1549 = vsel %vm1519, %v1516, %v1183
      %v1550 = vsel %vm1519, %v1517, %v1185
      %v1551 = vsel %vm1519, %v1518, %v1187
      %vm1552 = vcmask 261120
      %v1553 = vsel %vm1552, %v1520, %v1226
      %v1554 = vsel %vm1552, %v1521, %v1228
      %v1555 = vsel %vm1552, %v1522, %v1230
      %v1556 = vsel %vm1552, %v1523, %v1232
      %v1557 = vsel %vm1552, %v1524, %v1234
      %v1558 = vsel %vm1552, %v1525, %v1236
      %v1559 = vsel %vm1552, %v1526, %v1238
      %v1560 = vsel %vm1552, %v1527, %v1240
      %v1561 = vsel %vm1552, %v1528, %v1242
      %v1562 = vsel %vm1552, %v1529, %v1244
      %v1563 = vsel %vm1552, %v1530, %v1246
      %v1564 = vsel %vm1552, %v1531, %v1248
      %v1565 = vsel %vm1552, %v1532, %v1250
      %v1566 = vsel %vm1552, %v1533, %v1252
      %v1567 = vsel %vm1552, %v1534, %v1254
      %v1568 = vsel %vm1552, %v1535, %v1256
      %v1569 = vsel %vm1552, %v1536, %v1258
      %v1570 = vsel %vm1552, %v1537, %v1260
      %v1571 = vsel %vm1552, %v1538, %v1262
      %v1572 = vsel %vm1552, %v1539, %v1264
      %v1573 = vsel %vm1552, %v1540, %v1266
      %v1574 = vsel %vm1552, %v1541, %v1268
      %v1575 = vsel %vm1552, %v1542, %v1270
      %v1576 = vsel %vm1552, %v1543, %v1272
      %v1577 = vsel %vm1552, %v1544, %v1274
      %v1578 = vsel %vm1552, %v1545, %v1276
      %v1579 = vsel %vm1552, %v1546, %v1278
      %v1580 = vsel %vm1552, %v1547, %v1280
      %v1581 = vsel %vm1552, %v1548, %v1282
      %v1582 = vsel %vm1552, %v1549, %v1284
      %v1583 = vsel %vm1552, %v1550, %v1286
      %v1584 = vsel %vm1552, %v1551, %v1288
      %v1586 = vperm.slane %v284, 0
      %vm1588 = vcmask 293888
      %v1590 = vsel %vm1588, %v1553, 0
      %v1593 = vsel %vm1588, %v1554, 0
      %v1596 = vsel %vm1588, %v1555, 0
      %v1599 = vsel %vm1588, %v1556, 0
      %v1602 = vsel %vm1588, %v1557, 0
      %v1605 = vsel %vm1588, %v1558, 0
      %v1608 = vsel %vm1588, %v1559, 0
      %v1611 = vsel %vm1588, %v1560, 0
      %v1614 = vsel %vm1588, %v1561, 0
      %v1617 = vsel %vm1588, %v1562, 0
      %v1620 = vsel %vm1588, %v1563, 0
      %v1623 = vsel %vm1588, %v1564, 0
      %v1626 = vsel %vm1588, %v1565, 0
      %v1629 = vsel %vm1588, %v1566, 0
      %v1632 = vsel %vm1588, %v1567, 0
      %v1635 = vsel %vm1588, %v1568, 0
      %v1638 = vsel %vm1588, %v1569, 0
      %v1641 = vsel %vm1588, %v1570, 0
      %v1644 = vsel %vm1588, %v1571, 0
      %v1647 = vsel %vm1588, %v1572, 0
      %v1650 = vsel %vm1588, %v1573, 0
      %v1653 = vsel %vm1588, %v1574, 0
      %v1656 = vsel %vm1588, %v1575, 0
      %v1659 = vsel %vm1588, %v1576, 0
      %v1662 = vsel %vm1588, %v1577, 0
      %v1665 = vsel %vm1588, %v1578, 0
      %v1668 = vsel %vm1588, %v1579, 0
      %v1671 = vsel %vm1588, %v1580, 0
      %v1674 = vsel %vm1588, %v1581, 0
      %v1677 = vsel %vm1588, %v1582, 0
      %v1680 = vsel %vm1588, %v1583, 0
      %v1683 = vsel %vm1588, %v1584, 0
      %vm1685 = vcmask 1043456
      %v1687 = vsel %vm1685, %v283, 0
      %1689 = vmatpush.msra.mxu0 0.0
      %1690 = vmatpush.msra.mxu0 0.0
      %1691 = vmatpush.msra.mxu0 0.0
      %1692 = vmatpush.msra.mxu0 0.0
      %1693 = vmatpush.msra.mxu0 0.0
      %1694 = vmatpush.msra.mxu0 0.0
      %1695 = vmatpush.msra.mxu0 0.0
      %1696 = vmatpush.msra.mxu0 0.0
      %1697 = vmatpush.msra.mxu0 0.0
      %1698 = vmatpush.msra.mxu0 0.0
      %1699 = vmatpush.msra.mxu0 0.0
      %1700 = vmatpush.msra.mxu0 %v1687
      %1701 = vmatpush.msra.mxu0 %v282
      %1702 = vmatpush.msra.mxu0 %v281
      %1703 = vmatpush.msra.mxu0 %v280
      %1704 = vmatpush.msra.mxu0 %v279
      %1705 = vmatmul.f32.gmra.mxu0 %v1590
      %v1706 = vpop.f32.mrf.mxu0
      %v1707 = vadd.f32 %v1586, %v1706
      %1708 = vmatmul.f32.gmra.mxu0 %v1593
      %v1709 = vpop.f32.mrf.mxu0
      %v1710 = vadd.f32 %v1586, %v1709
      %1711 = vmatmul.f32.gmra.mxu0 %v1596
      %v1712 = vpop.f32.mrf.mxu0
      %v1713 = vadd.f32 %v1586, %v1712
      %1714 = vmatmul.f32.gmra.mxu0 %v1599
      %v1715 = vpop.f32.mrf.mxu0
      %v1716 = vadd.f32 %v1586, %v1715
      %1717 = vmatmul.f32.gmra.mxu0 %v1602
      %v1718 = vpop.f32.mrf.mxu0
      %v1719 = vadd.f32 %v1586, %v1718
      %1720 = vmatmul.f32.gmra.mxu0 %v1605
      %v1721 = vpop.f32.mrf.mxu0
      %v1722 = vadd.f32 %v1586, %v1721
      %1723 = vmatmul.f32.gmra.mxu0 %v1608
      %v1724 = vpop.f32.mrf.mxu0
      %v1725 = vadd.f32 %v1586, %v1724
      %1726 = vmatmul.f32.gmra.mxu0 %v1611
      %v1727 = vpop.f32.mrf.mxu0
      %v1728 = vadd.f32 %v1586, %v1727
      %1729 = vmatmul.f32.gmra.mxu0 %v1614
      %v1730 = vpop.f32.mrf.mxu0
      %v1731 = vadd.f32 %v1586, %v1730
      %1732 = vmatmul.f32.gmra.mxu0 %v1617
      %v1733 = vpop.f32.mrf.mxu0
      %v1734 = vadd.f32 %v1586, %v1733
      %1735 = vmatmul.f32.gmra.mxu0 %v1620
      %v1736 = vpop.f32.mrf.mxu0
      %v1737 = vadd.f32 %v1586, %v1736
      %1738 = vmatmul.f32.gmra.mxu0 %v1623
      %v1739 = vpop.f32.mrf.mxu0
      %v1740 = vadd.f32 %v1586, %v1739
      %1741 = vmatmul.f32.gmra.mxu0 %v1626
      %v1742 = vpop.f32.mrf.mxu0
      %v1743 = vadd.f32 %v1586, %v1742
      %1744 = vmatmul.f32.gmra.mxu0 %v1629
      %v1745 = vpop.f32.mrf.mxu0
      %v1746 = vadd.f32 %v1586, %v1745
      %1747 = vmatmul.f32.gmra.mxu0 %v1632
      %v1748 = vpop.f32.mrf.mxu0
      %v1749 = vadd.f32 %v1586, %v1748
      %1750 = vmatmul.f32.gmra.mxu0 %v1635
      %v1751 = vpop.f32.mrf.mxu0
      %v1752 = vadd.f32 %v1586, %v1751
      %1753 = vmatmul.f32.gmra.mxu0 %v1638
      %v1754 = vpop.f32.mrf.mxu0
      %v1755 = vadd.f32 %v1586, %v1754
      %1756 = vmatmul.f32.gmra.mxu0 %v1641
      %v1757 = vpop.f32.mrf.mxu0
      %v1758 = vadd.f32 %v1586, %v1757
      %1759 = vmatmul.f32.gmra.mxu0 %v1644
      %v1760 = vpop.f32.mrf.mxu0
      %v1761 = vadd.f32 %v1586, %v1760
      %1762 = vmatmul.f32.gmra.mxu0 %v1647
      %v1763 = vpop.f32.mrf.mxu0
      %v1764 = vadd.f32 %v1586, %v1763
      %1765 = vmatmul.f32.gmra.mxu0 %v1650
      %v1766 = vpop.f32.mrf.mxu0
      %v1767 = vadd.f32 %v1586, %v1766
      %1768 = vmatmul.f32.gmra.mxu0 %v1653
      %v1769 = vpop.f32.mrf.mxu0
      %v1770 = vadd.f32 %v1586, %v1769
      %1771 = vmatmul.f32.gmra.mxu0 %v1656
      %v1772 = vpop.f32.mrf.mxu0
      %v1773 = vadd.f32 %v1586, %v1772
      %1774 = vmatmul.f32.gmra.mxu0 %v1659
      %v1775 = vpop.f32.mrf.mxu0
      %v1776 = vadd.f32 %v1586, %v1775
      %1777 = vmatmul.f32.gmra.mxu0 %v1662
      %v1778 = vpop.f32.mrf.mxu0
      %v1779 = vadd.f32 %v1586, %v1778
      %1780 = vmatmul.f32.gmra.mxu0 %v1665
      %v1781 = vpop.f32.mrf.mxu0
      %v1782 = vadd.f32 %v1586, %v1781
      %1783 = vmatmul.f32.gmra.mxu0 %v1668
      %v1784 = vpop.f32.mrf.mxu0
      %v1785 = vadd.f32 %v1586, %v1784
      %1786 = vmatmul.f32.gmra.mxu0 %v1671
      %v1787 = vpop.f32.mrf.mxu0
      %v1788 = vadd.f32 %v1586, %v1787
      %1789 = vmatmul.f32.gmra.mxu0 %v1674
      %v1790 = vpop.f32.mrf.mxu0
      %v1791 = vadd.f32 %v1586, %v1790
      %1792 = vmatmul.f32.gmra.mxu0 %v1677
      %v1793 = vpop.f32.mrf.mxu0
      %v1794 = vadd.f32 %v1586, %v1793
      %1795 = vmatmul.f32.gmra.mxu0 %v1680
      %v1796 = vpop.f32.mrf.mxu0
      %v1797 = vadd.f32 %v1586, %v1796
      %1798 = vmatmul.f32.gmra.mxu0 %v1683
      %v1799 = vpop.f32.mrf.mxu0
      %v1800 = vadd.f32 %v1586, %v1799
      %1801 = vdwg.mxu0
      %v1802 = vsel %vm1321, %v1707, 0.0
      %v1803 = vsel %vm1321, %v1710, 0.0
      %v1804 = vadd.f32 %v1802, %v1803
      %v1805 = vsel %vm1321, %v1713, 0.0
      %v1806 = vadd.f32 %v1804, %v1805
      %v1807 = vsel %vm1321, %v1716, 0.0
      %v1808 = vadd.f32 %v1806, %v1807
      %v1809 = vsel %vm1321, %v1719, 0.0
      %v1810 = vadd.f32 %v1808, %v1809
      %v1811 = vsel %vm1321, %v1722, 0.0
      %v1812 = vadd.f32 %v1810, %v1811
      %v1813 = vsel %vm1321, %v1725, 0.0
      %v1814 = vadd.f32 %v1812, %v1813
      %v1815 = vsel %vm1321, %v1728, 0.0
      %v1816 = vadd.f32 %v1814, %v1815
      %v1817 = vsel %vm1321, %v1731, 0.0
      %v1818 = vadd.f32 %v1816, %v1817
      %v1819 = vsel %vm1321, %v1734, 0.0
      %v1820 = vadd.f32 %v1818, %v1819
      %v1821 = vsel %vm1321, %v1737, 0.0
      %v1822 = vadd.f32 %v1820, %v1821
      %v1823 = vsel %vm1321, %v1740, 0.0
      %v1824 = vadd.f32 %v1822, %v1823
      %v1825 = vsel %vm1321, %v1743, 0.0
      %v1826 = vadd.f32 %v1824, %v1825
      %v1827 = vsel %vm1321, %v1746, 0.0
      %v1828 = vadd.f32 %v1826, %v1827
      %v1829 = vsel %vm1321, %v1749, 0.0
      %v1830 = vadd.f32 %v1828, %v1829
      %v1831 = vsel %vm1321, %v1752, 0.0
      %v1832 = vadd.f32 %v1830, %v1831
      %v1833 = vsel %vm1321, %v1755, 0.0
      %v1834 = vadd.f32 %v1832, %v1833
      %v1835 = vsel %vm1321, %v1758, 0.0
      %v1836 = vadd.f32 %v1834, %v1835
      %v1837 = vsel %vm1321, %v1761, 0.0
      %v1838 = vadd.f32 %v1836, %v1837
      %v1839 = vsel %vm1321, %v1764, 0.0
      %v1840 = vadd.f32 %v1838, %v1839
      %v1841 = vsel %vm1321, %v1767, 0.0
      %v1842 = vadd.f32 %v1840, %v1841
      %v1843 = vsel %vm1321, %v1770, 0.0
      %v1844 = vadd.f32 %v1842, %v1843
      %v1845 = vsel %vm1321, %v1773, 0.0
      %v1846 = vadd.f32 %v1844, %v1845
      %v1847 = vsel %vm1321, %v1776, 0.0
      %v1848 = vadd.f32 %v1846, %v1847
      %v1849 = vsel %vm1321, %v1779, 0.0
      %v1850 = vadd.f32 %v1848, %v1849
      %v1851 = vsel %vm1321, %v1782, 0.0
      %v1852 = vadd.f32 %v1850, %v1851
      %v1853 = vsel %vm1321, %v1785, 0.0
      %v1854 = vadd.f32 %v1852, %v1853
      %v1855 = vsel %vm1321, %v1788, 0.0
      %v1856 = vadd.f32 %v1854, %v1855
      %v1857 = vsel %vm1321, %v1791, 0.0
      %v1858 = vadd.f32 %v1856, %v1857
      %v1859 = vsel %vm1321, %v1794, 0.0
      %v1860 = vadd.f32 %v1858, %v1859
      %v1861 = vsel %vm1321, %v1797, 0.0
      %v1862 = vadd.f32 %v1860, %v1861
      %v1863 = vsel %vm1321, %v1800, 0.0
      %v1864 = vadd.f32 %v1862, %v1863
      %v1865 = vrot.slane %v1864, 4
      %v1866 = vadd.f32 %v1864, %v1865
      %v1867 = vrot.slane %v1866, 2
      %v1868 = vadd.f32 %v1866, %v1867
      %v1869 = vrot.slane %v1868, 1
      %v1870 = vadd.f32 %v1868, %v1869
      %v1871 = vmul.f32 %v1707, %v1707
      %v1872 = vmul.f32 %v1710, %v1710
      %v1873 = vmul.f32 %v1713, %v1713
      %v1874 = vmul.f32 %v1716, %v1716
      %v1875 = vmul.f32 %v1719, %v1719
      %v1876 = vmul.f32 %v1722, %v1722
      %v1877 = vmul.f32 %v1725, %v1725
      %v1878 = vmul.f32 %v1728, %v1728
      %v1879 = vmul.f32 %v1731, %v1731
      %v1880 = vmul.f32 %v1734, %v1734
      %v1881 = vmul.f32 %v1737, %v1737
      %v1882 = vmul.f32 %v1740, %v1740
      %v1883 = vmul.f32 %v1743, %v1743
      %v1884 = vmul.f32 %v1746, %v1746
      %v1885 = vmul.f32 %v1749, %v1749
      %v1886 = vmul.f32 %v1752, %v1752
      %v1887 = vmul.f32 %v1755, %v1755
      %v1888 = vmul.f32 %v1758, %v1758
      %v1889 = vmul.f32 %v1761, %v1761
      %v1890 = vmul.f32 %v1764, %v1764
      %v1891 = vmul.f32 %v1767, %v1767
      %v1892 = vmul.f32 %v1770, %v1770
      %v1893 = vmul.f32 %v1773, %v1773
      %v1894 = vmul.f32 %v1776, %v1776
      %v1895 = vmul.f32 %v1779, %v1779
      %v1896 = vmul.f32 %v1782, %v1782
      %v1897 = vmul.f32 %v1785, %v1785
      %v1898 = vmul.f32 %v1788, %v1788
      %v1899 = vmul.f32 %v1791, %v1791
      %v1900 = vmul.f32 %v1794, %v1794
      %v1901 = vmul.f32 %v1797, %v1797
      %v1902 = vmul.f32 %v1800, %v1800
      %v1903 = vsel %vm1321, %v1871, 0.0
      %v1904 = vsel %vm1321, %v1872, 0.0
      %v1905 = vadd.f32 %v1903, %v1904
      %v1906 = vsel %vm1321, %v1873, 0.0
      %v1907 = vadd.f32 %v1905, %v1906
      %v1908 = vsel %vm1321, %v1874, 0.0
      %v1909 = vadd.f32 %v1907, %v1908
      %v1910 = vsel %vm1321, %v1875, 0.0
      %v1911 = vadd.f32 %v1909, %v1910
      %v1912 = vsel %vm1321, %v1876, 0.0
      %v1913 = vadd.f32 %v1911, %v1912
      %v1914 = vsel %vm1321, %v1877, 0.0
      %v1915 = vadd.f32 %v1913, %v1914
      %v1916 = vsel %vm1321, %v1878, 0.0
      %v1917 = vadd.f32 %v1915, %v1916
      %v1918 = vsel %vm1321, %v1879, 0.0
      %v1919 = vadd.f32 %v1917, %v1918
      %v1920 = vsel %vm1321, %v1880, 0.0
      %v1921 = vadd.f32 %v1919, %v1920
      %v1922 = vsel %vm1321, %v1881, 0.0
      %v1923 = vadd.f32 %v1921, %v1922
      %v1924 = vsel %vm1321, %v1882, 0.0
      %v1925 = vadd.f32 %v1923, %v1924
      %v1926 = vsel %vm1321, %v1883, 0.0
      %v1927 = vadd.f32 %v1925, %v1926
      %v1928 = vsel %vm1321, %v1884, 0.0
      %v1929 = vadd.f32 %v1927, %v1928
      %v1930 = vsel %vm1321, %v1885, 0.0
      %v1931 = vadd.f32 %v1929, %v1930
      %v1932 = vsel %vm1321, %v1886, 0.0
      %v1933 = vadd.f32 %v1931, %v1932
      %v1934 = vsel %vm1321, %v1887, 0.0
      %v1935 = vadd.f32 %v1933, %v1934
      %v1936 = vsel %vm1321, %v1888, 0.0
      %v1937 = vadd.f32 %v1935, %v1936
      %v1938 = vsel %vm1321, %v1889, 0.0
      %v1939 = vadd.f32 %v1937, %v1938
      %v1940 = vsel %vm1321, %v1890, 0.0
      %v1941 = vadd.f32 %v1939, %v1940
      %v1942 = vsel %vm1321, %v1891, 0.0
      %v1943 = vadd.f32 %v1941, %v1942
      %v1944 = vsel %vm1321, %v1892, 0.0
      %v1945 = vadd.f32 %v1943, %v1944
      %v1946 = vsel %vm1321, %v1893, 0.0
      %v1947 = vadd.f32 %v1945, %v1946
      %v1948 = vsel %vm1321, %v1894, 0.0
      %v1949 = vadd.f32 %v1947, %v1948
      %v1950 = vsel %vm1321, %v1895, 0.0
      %v1951 = vadd.f32 %v1949, %v1950
      %v1952 = vsel %vm1321, %v1896, 0.0
      %v1953 = vadd.f32 %v1951, %v1952
      %v1954 = vsel %vm1321, %v1897, 0.0
      %v1955 = vadd.f32 %v1953, %v1954
      %v1956 = vsel %vm1321, %v1898, 0.0
      %v1957 = vadd.f32 %v1955, %v1956
      %v1958 = vsel %vm1321, %v1899, 0.0
      %v1959 = vadd.f32 %v1957, %v1958
      %v1960 = vsel %vm1321, %v1900, 0.0
      %v1961 = vadd.f32 %v1959, %v1960
      %v1962 = vsel %vm1321, %v1901, 0.0
      %v1963 = vadd.f32 %v1961, %v1962
      %v1964 = vsel %vm1321, %v1902, 0.0
      %v1965 = vadd.f32 %v1963, %v1964
      %v1966 = vrot.slane %v1965, 4
      %v1967 = vadd.f32 %v1965, %v1966
      %v1968 = vrot.slane %v1967, 2
      %v1969 = vadd.f32 %v1967, %v1968
      %v1970 = vrot.slane %v1969, 1
      %v1971 = vadd.f32 %v1969, %v1970
      %v1972 = vmul.f32 %v1870, 0.00390625
      %v1973 = vmul.f32 %v1971, 0.00390625
      %v1974 = vmul.f32 %v1972, %v1972
      %v1975 = vsub.f32 %v1973, %v1974
      %v1976 = vmax.f32 %v1975, 0.0
      %v1977 = vsub.f32 %v1707, %v1972
      %v1978 = vsub.f32 %v1710, %v1972
      %v1979 = vsub.f32 %v1713, %v1972
      %v1980 = vsub.f32 %v1716, %v1972
      %v1981 = vsub.f32 %v1719, %v1972
      %v1982 = vsub.f32 %v1722, %v1972
      %v1983 = vsub.f32 %v1725, %v1972
      %v1984 = vsub.f32 %v1728, %v1972
      %v1985 = vsub.f32 %v1731, %v1972
      %v1986 = vsub.f32 %v1734, %v1972
      %v1987 = vsub.f32 %v1737, %v1972
      %v1988 = vsub.f32 %v1740, %v1972
      %v1989 = vsub.f32 %v1743, %v1972
      %v1990 = vsub.f32 %v1746, %v1972
      %v1991 = vsub.f32 %v1749, %v1972
      %v1992 = vsub.f32 %v1752, %v1972
      %v1993 = vsub.f32 %v1755, %v1972
      %v1994 = vsub.f32 %v1758, %v1972
      %v1995 = vsub.f32 %v1761, %v1972
      %v1996 = vsub.f32 %v1764, %v1972
      %v1997 = vsub.f32 %v1767, %v1972
      %v1998 = vsub.f32 %v1770, %v1972
      %v1999 = vsub.f32 %v1773, %v1972
      %v2000 = vsub.f32 %v1776, %v1972
      %v2001 = vsub.f32 %v1779, %v1972
      %v2002 = vsub.f32 %v1782, %v1972
      %v2003 = vsub.f32 %v1785, %v1972
      %v2004 = vsub.f32 %v1788, %v1972
      %v2005 = vsub.f32 %v1791, %v1972
      %v2006 = vsub.f32 %v1794, %v1972
      %v2007 = vsub.f32 %v1797, %v1972
      %v2008 = vsub.f32 %v1800, %v1972
      %v2009 = vadd.f32 %v1976, 1e-05
      %v2010 = vrsqrt.pop %v2009
      %v2011 = vmul.f32 %v2010, %v2009
      %v2012 = vmul.f32 %v2011, %v2010
      %v2013 = vmul.f32 0.5, %v2012
      %v2014 = vsub.f32 1.5, %v2013
      %v2015 = vmul.f32 %v2010, %v2014
      %vm2016 = vweird.f32 %v2009
      %vm2017 = vweird.f32 %v2010
      %vm2018 = vmor %vm2016, %vm2017
      %v2019 = vsel %vm2018, %v2010, %v2015
      %v2020 = vmul.f32 %v1977, %v2019
      %v2021 = vmul.f32 %v1978, %v2019
      %v2022 = vmul.f32 %v1979, %v2019
      %v2023 = vmul.f32 %v1980, %v2019
      %v2024 = vmul.f32 %v1981, %v2019
      %v2025 = vmul.f32 %v1982, %v2019
      %v2026 = vmul.f32 %v1983, %v2019
      %v2027 = vmul.f32 %v1984, %v2019
      %v2028 = vmul.f32 %v1985, %v2019
      %v2029 = vmul.f32 %v1986, %v2019
      %v2030 = vmul.f32 %v1987, %v2019
      %v2031 = vmul.f32 %v1988, %v2019
      %v2032 = vmul.f32 %v1989, %v2019
      %v2033 = vmul.f32 %v1990, %v2019
      %v2034 = vmul.f32 %v1991, %v2019
      %v2035 = vmul.f32 %v1992, %v2019
      %v2036 = vmul.f32 %v1993, %v2019
      %v2037 = vmul.f32 %v1994, %v2019
      %v2038 = vmul.f32 %v1995, %v2019
      %v2039 = vmul.f32 %v1996, %v2019
      %v2040 = vmul.f32 %v1997, %v2019
      %v2041 = vmul.f32 %v1998, %v2019
      %v2042 = vmul.f32 %v1999, %v2019
      %v2043 = vmul.f32 %v2000, %v2019
      %v2044 = vmul.f32 %v2001, %v2019
      %v2045 = vmul.f32 %v2002, %v2019
      %v2046 = vmul.f32 %v2003, %v2019
      %v2047 = vmul.f32 %v2004, %v2019
      %v2048 = vmul.f32 %v2005, %v2019
      %v2049 = vmul.f32 %v2006, %v2019
      %v2050 = vmul.f32 %v2007, %v2019
      %v2051 = vmul.f32 %v2008, %v2019
      %v2052 = vmax.f32 %v2020, 0.0
      %v2053 = vmax.f32 %v2021, 0.0
      %v2054 = vmax.f32 %v2022, 0.0
      %v2055 = vmax.f32 %v2023, 0.0
      %v2056 = vmax.f32 %v2024, 0.0
      %v2057 = vmax.f32 %v2025, 0.0
      %v2058 = vmax.f32 %v2026, 0.0
      %v2059 = vmax.f32 %v2027, 0.0
      %v2060 = vmax.f32 %v2028, 0.0
      %v2061 = vmax.f32 %v2029, 0.0
      %v2062 = vmax.f32 %v2030, 0.0
      %v2063 = vmax.f32 %v2031, 0.0
      %v2064 = vmax.f32 %v2032, 0.0
      %v2065 = vmax.f32 %v2033, 0.0
      %v2066 = vmax.f32 %v2034, 0.0
      %v2067 = vmax.f32 %v2035, 0.0
      %v2068 = vmax.f32 %v2036, 0.0
      %v2069 = vmax.f32 %v2037, 0.0
      %v2070 = vmax.f32 %v2038, 0.0
      %v2071 = vmax.f32 %v2039, 0.0
      %v2072 = vmax.f32 %v2040, 0.0
      %v2073 = vmax.f32 %v2041, 0.0
      %v2074 = vmax.f32 %v2042, 0.0
      %v2075 = vmax.f32 %v2043, 0.0
      %v2076 = vmax.f32 %v2044, 0.0
      %v2077 = vmax.f32 %v2045, 0.0
      %v2078 = vmax.f32 %v2046, 0.0
      %v2079 = vmax.f32 %v2047, 0.0
      %v2080 = vmax.f32 %v2048, 0.0
      %v2081 = vmax.f32 %v2049, 0.0
      %v2082 = vmax.f32 %v2050, 0.0
      %v2083 = vmax.f32 %v2051, 0.0
      %v2100 = vrot.slane %v2054, 1
      %v2101 = vrot.slane %v2052, 1
      %v2102 = vrot.slane %v2056, 1
      %v2103 = vrot.slane %v2058, 1
      %v2104 = vrot.slane %v2060, 1
      %v2105 = vrot.slane %v2062, 1
      %v2106 = vrot.slane %v2064, 1
      %v2107 = vrot.slane %v2066, 1
      %v2108 = vrot.slane %v2068, 1
      %v2109 = vrot.slane %v2070, 1
      %v2110 = vrot.slane %v2072, 1
      %v2111 = vrot.slane %v2074, 1
      %v2112 = vrot.slane %v2076, 1
      %v2113 = vrot.slane %v2078, 1
      %v2114 = vrot.slane %v2080, 1
      %v2115 = vrot.slane %v2082, 1
      %vm2148 = vcmask 1040384
      %v2149 = vrot.slane %v2054, 7
      %v2150 = vrot.slane %v2055, 7
      %v2151 = vsel %vm2148, %v2149, %v2150
      %v2152 = vrot.slane %v2052, 7
      %v2153 = vrot.slane %v2053, 7
      %v2154 = vsel %vm2148, %v2152, %v2153
      %v2155 = vrot.slane %v2056, 7
      %v2156 = vrot.slane %v2057, 7
      %v2157 = vsel %vm2148, %v2155, %v2156
      %v2158 = vrot.slane %v2058, 7
      %v2159 = vrot.slane %v2059, 7
      %v2160 = vsel %vm2148, %v2158, %v2159
      %v2161 = vrot.slane %v2060, 7
      %v2162 = vrot.slane %v2061, 7
      %v2163 = vsel %vm2148, %v2161, %v2162
      %v2164 = vrot.slane %v2062, 7
      %v2165 = vrot.slane %v2063, 7
      %v2166 = vsel %vm2148, %v2164, %v2165
      %v2167 = vrot.slane %v2064, 7
      %v2168 = vrot.slane %v2065, 7
      %v2169 = vsel %vm2148, %v2167, %v2168
      %v2170 = vrot.slane %v2066, 7
      %v2171 = vrot.slane %v2067, 7
      %v2172 = vsel %vm2148, %v2170, %v2171
      %v2173 = vrot.slane %v2068, 7
      %v2174 = vrot.slane %v2069, 7
      %v2175 = vsel %vm2148, %v2173, %v2174
      %v2176 = vrot.slane %v2070, 7
      %v2177 = vrot.slane %v2071, 7
      %v2178 = vsel %vm2148, %v2176, %v2177
      %v2179 = vrot.slane %v2072, 7
      %v2180 = vrot.slane %v2073, 7
      %v2181 = vsel %vm2148, %v2179, %v2180
      %v2182 = vrot.slane %v2074, 7
      %v2183 = vrot.slane %v2075, 7
      %v2184 = vsel %vm2148, %v2182, %v2183
      %v2185 = vrot.slane %v2076, 7
      %v2186 = vrot.slane %v2077, 7
      %v2187 = vsel %vm2148, %v2185, %v2186
      %v2188 = vrot.slane %v2078, 7
      %v2189 = vrot.slane %v2079, 7
      %v2190 = vsel %vm2148, %v2188, %v2189
      %v2191 = vrot.slane %v2080, 7
      %v2192 = vrot.slane %v2081, 7
      %v2193 = vsel %vm2148, %v2191, %v2192
      %v2194 = vrot.slane %v2082, 7
      %v2195 = vrot.slane %v2083, 7
      %v2196 = vsel %vm2148, %v2194, %v2195
      %v2244 = vrot.slane %v2055, 5
      %v2245 = vrot.slane %v2053, 5
      %v2246 = vrot.slane %v2057, 5
      %v2247 = vrot.slane %v2059, 5
      %v2248 = vrot.slane %v2061, 5
      %v2249 = vrot.slane %v2063, 5
      %v2250 = vrot.slane %v2065, 5
      %v2251 = vrot.slane %v2067, 5
      %v2252 = vrot.slane %v2069, 5
      %v2253 = vrot.slane %v2071, 5
      %v2254 = vrot.slane %v2073, 5
      %v2255 = vrot.slane %v2075, 5
      %v2256 = vrot.slane %v2077, 5
      %v2257 = vrot.slane %v2079, 5
      %v2258 = vrot.slane %v2081, 5
      %v2259 = vrot.slane %v2083, 5
      %v2276 = vsel %vm2148, %v2100, %v2149
      %v2277 = vsel %vm2148, %v2101, %v2152
      %v2278 = vsel %vm2148, %v2102, %v2155
      %v2279 = vsel %vm2148, %v2103, %v2158
      %v2280 = vsel %vm2148, %v2104, %v2161
      %v2281 = vsel %vm2148, %v2105, %v2164
      %v2282 = vsel %vm2148, %v2106, %v2167
      %v2283 = vsel %vm2148, %v2107, %v2170
      %v2284 = vsel %vm2148, %v2108, %v2173
      %v2285 = vsel %vm2148, %v2109, %v2176
      %v2286 = vsel %vm2148, %v2110, %v2179
      %v2287 = vsel %vm2148, %v2111, %v2182
      %v2288 = vsel %vm2148, %v2112, %v2185
      %v2289 = vsel %vm2148, %v2113, %v2188
      %v2290 = vsel %vm2148, %v2114, %v2191
      %v2291 = vsel %vm2148, %v2115, %v2194
      %v2292 = vsel %vm2148, %v2150, %v2244
      %v2293 = vsel %vm2148, %v2153, %v2245
      %v2294 = vsel %vm2148, %v2156, %v2246
      %v2295 = vsel %vm2148, %v2159, %v2247
      %v2296 = vsel %vm2148, %v2162, %v2248
      %v2297 = vsel %vm2148, %v2165, %v2249
      %v2298 = vsel %vm2148, %v2168, %v2250
      %v2299 = vsel %vm2148, %v2171, %v2251
      %v2300 = vsel %vm2148, %v2174, %v2252
      %v2301 = vsel %vm2148, %v2177, %v2253
      %v2302 = vsel %vm2148, %v2180, %v2254
      %v2303 = vsel %vm2148, %v2183, %v2255
      %v2304 = vsel %vm2148, %v2186, %v2256
      %v2305 = vsel %vm2148, %v2189, %v2257
      %v2306 = vsel %vm2148, %v2192, %v2258
      %v2307 = vsel %vm2148, %v2195, %v2259
      %v2308 = vld [vmem:[%s3] sm:$0xff]
      %v2309 = vld [vmem:[%s3 + $0x8] sm:$0xff]
      %v2310 = vld [vmem:[%s3 + $0x10] sm:$0xff]
      %v2311 = vld [vmem:[%s3 + $0x18] sm:$0xff]
      %v2312 = vld [vmem:[%s3 + $0x20] sm:$0xf]
      %v2313 = vld [vmem:[%s4] sm:$0x1]
      %v2344 = vrot.slane %v2276, 1
      %v2345 = vrot.slane %v2151, 1
      %v2346 = vsel %vm333, %v2344, %v2345
      %v2347 = vrot.slane %v2292, 1
      %v2348 = vsel %vm333, %v2345, %v2347
      %v2349 = vrot.slane %v2277, 1
      %v2350 = vrot.slane %v2154, 1
      %v2351 = vsel %vm333, %v2349, %v2350
      %v2352 = vrot.slane %v2293, 1
      %v2353 = vsel %vm333, %v2350, %v2352
      %v2354 = vrot.slane %v2278, 1
      %v2355 = vrot.slane %v2157, 1
      %v2356 = vsel %vm333, %v2354, %v2355
      %v2357 = vrot.slane %v2294, 1
      %v2358 = vsel %vm333, %v2355, %v2357
      %v2359 = vrot.slane %v2279, 1
      %v2360 = vrot.slane %v2160, 1
      %v2361 = vsel %vm333, %v2359, %v2360
      %v2362 = vrot.slane %v2295, 1
      %v2363 = vsel %vm333, %v2360, %v2362
      %v2364 = vrot.slane %v2280, 1
      %v2365 = vrot.slane %v2163, 1
      %v2366 = vsel %vm333, %v2364, %v2365
      %v2367 = vrot.slane %v2296, 1
      %v2368 = vsel %vm333, %v2365, %v2367
      %v2369 = vrot.slane %v2281, 1
      %v2370 = vrot.slane %v2166, 1
      %v2371 = vsel %vm333, %v2369, %v2370
      %v2372 = vrot.slane %v2297, 1
      %v2373 = vsel %vm333, %v2370, %v2372
      %v2374 = vrot.slane %v2282, 1
      %v2375 = vrot.slane %v2169, 1
      %v2376 = vsel %vm333, %v2374, %v2375
      %v2377 = vrot.slane %v2298, 1
      %v2378 = vsel %vm333, %v2375, %v2377
      %v2379 = vrot.slane %v2283, 1
      %v2380 = vrot.slane %v2172, 1
      %v2381 = vsel %vm333, %v2379, %v2380
      %v2382 = vrot.slane %v2299, 1
      %v2383 = vsel %vm333, %v2380, %v2382
      %v2384 = vrot.slane %v2284, 1
      %v2385 = vrot.slane %v2175, 1
      %v2386 = vsel %vm333, %v2384, %v2385
      %v2387 = vrot.slane %v2300, 1
      %v2388 = vsel %vm333, %v2385, %v2387
      %v2389 = vrot.slane %v2285, 1
      %v2390 = vrot.slane %v2178, 1
      %v2391 = vsel %vm333, %v2389, %v2390
      %v2392 = vrot.slane %v2301, 1
      %v2393 = vsel %vm333, %v2390, %v2392
      %v2394 = vrot.slane %v2286, 1
      %v2395 = vrot.slane %v2181, 1
      %v2396 = vsel %vm333, %v2394, %v2395
      %v2397 = vrot.slane %v2302, 1
      %v2398 = vsel %vm333, %v2395, %v2397
      %v2399 = vrot.slane %v2287, 1
      %v2400 = vrot.slane %v2184, 1
      %v2401 = vsel %vm333, %v2399, %v2400
      %v2402 = vrot.slane %v2303, 1
      %v2403 = vsel %vm333, %v2400, %v2402
      %v2404 = vrot.slane %v2288, 1
      %v2405 = vrot.slane %v2187, 1
      %v2406 = vsel %vm333, %v2404, %v2405
      %v2407 = vrot.slane %v2304, 1
      %v2408 = vsel %vm333, %v2405, %v2407
      %v2409 = vrot.slane %v2289, 1
      %v2410 = vrot.slane %v2190, 1
      %v2411 = vsel %vm333, %v2409, %v2410
      %v2412 = vrot.slane %v2305, 1
      %v2413 = vsel %vm333, %v2410, %v2412
      %v2414 = vrot.slane %v2290, 1
      %v2415 = vrot.slane %v2193, 1
      %v2416 = vsel %vm333, %v2414, %v2415
      %v2417 = vrot.slane %v2306, 1
      %v2418 = vsel %vm333, %v2415, %v2417
      %2419 = vrot.lane.b32.xlu0 %v2346, 4
      %v2420 = vpop.permute.xlu0 %2419
      %2421 = vrot.lane.b32.xlu0 %v2348, 4
      %v2422 = vpop.permute.xlu0 %2421
      %2423 = vrot.lane.b32.xlu0 %v2351, 4
      %v2424 = vpop.permute.xlu0 %2423
      %2425 = vrot.lane.b32.xlu0 %v2353, 4
      %v2426 = vpop.permute.xlu0 %2425
      %2427 = vrot.lane.b32.xlu0 %v2356, 4
      %v2428 = vpop.permute.xlu0 %2427
      %2429 = vrot.lane.b32.xlu0 %v2358, 4
      %v2430 = vpop.permute.xlu0 %2429
      %2431 = vrot.lane.b32.xlu0 %v2361, 4
      %v2432 = vpop.permute.xlu0 %2431
      %2433 = vrot.lane.b32.xlu0 %v2363, 4
      %v2434 = vpop.permute.xlu0 %2433
      %2435 = vrot.lane.b32.xlu0 %v2366, 4
      %v2436 = vpop.permute.xlu0 %2435
      %2437 = vrot.lane.b32.xlu0 %v2368, 4
      %v2438 = vpop.permute.xlu0 %2437
      %2439 = vrot.lane.b32.xlu0 %v2371, 4
      %v2440 = vpop.permute.xlu0 %2439
      %2441 = vrot.lane.b32.xlu0 %v2373, 4
      %v2442 = vpop.permute.xlu0 %2441
      %2443 = vrot.lane.b32.xlu0 %v2376, 4
      %v2444 = vpop.permute.xlu0 %2443
      %2445 = vrot.lane.b32.xlu0 %v2378, 4
      %v2446 = vpop.permute.xlu0 %2445
      %2447 = vrot.lane.b32.xlu0 %v2381, 4
      %v2448 = vpop.permute.xlu0 %2447
      %2449 = vrot.lane.b32.xlu0 %v2383, 4
      %v2450 = vpop.permute.xlu0 %2449
      %2451 = vrot.lane.b32.xlu0 %v2386, 4
      %v2452 = vpop.permute.xlu0 %2451
      %2453 = vrot.lane.b32.xlu0 %v2388, 4
      %v2454 = vpop.permute.xlu0 %2453
      %2455 = vrot.lane.b32.xlu0 %v2391, 4
      %v2456 = vpop.permute.xlu0 %2455
      %2457 = vrot.lane.b32.xlu0 %v2393, 4
      %v2458 = vpop.permute.xlu0 %2457
      %2459 = vrot.lane.b32.xlu0 %v2396, 4
      %v2460 = vpop.permute.xlu0 %2459
      %2461 = vrot.lane.b32.xlu0 %v2398, 4
      %v2462 = vpop.permute.xlu0 %2461
      %2463 = vrot.lane.b32.xlu0 %v2401, 4
      %v2464 = vpop.permute.xlu0 %2463
      %2465 = vrot.lane.b32.xlu0 %v2403, 4
      %v2466 = vpop.permute.xlu0 %2465
      %2467 = vrot.lane.b32.xlu0 %v2406, 4
      %v2468 = vpop.permute.xlu0 %2467
      %2469 = vrot.lane.b32.xlu0 %v2408, 4
      %v2470 = vpop.permute.xlu0 %2469
      %2471 = vrot.lane.b32.xlu0 %v2411, 4
      %v2472 = vpop.permute.xlu0 %2471
      %2473 = vrot.lane.b32.xlu0 %v2413, 4
      %v2474 = vpop.permute.xlu0 %2473
      %2475 = vrot.lane.b32.xlu0 %v2416, 4
      %v2476 = vpop.permute.xlu0 %2475
      %2477 = vrot.lane.b32.xlu0 %v2418, 4
      %v2478 = vpop.permute.xlu0 %2477
      %v2509 = vrot.slane %v2276, 2
      %v2510 = vrot.slane %v2151, 2
      %v2511 = vsel %vm550, %v2509, %v2510
      %v2512 = vrot.slane %v2292, 2
      %v2513 = vsel %vm550, %v2510, %v2512
      %v2514 = vrot.slane %v2277, 2
      %v2515 = vrot.slane %v2154, 2
      %v2516 = vsel %vm550, %v2514, %v2515
      %v2517 = vrot.slane %v2293, 2
      %v2518 = vsel %vm550, %v2515, %v2517
      %v2519 = vrot.slane %v2278, 2
      %v2520 = vrot.slane %v2157, 2
      %v2521 = vsel %vm550, %v2519, %v2520
      %v2522 = vrot.slane %v2294, 2
      %v2523 = vsel %vm550, %v2520, %v2522
      %v2524 = vrot.slane %v2279, 2
      %v2525 = vrot.slane %v2160, 2
      %v2526 = vsel %vm550, %v2524, %v2525
      %v2527 = vrot.slane %v2295, 2
      %v2528 = vsel %vm550, %v2525, %v2527
      %v2529 = vrot.slane %v2280, 2
      %v2530 = vrot.slane %v2163, 2
      %v2531 = vsel %vm550, %v2529, %v2530
      %v2532 = vrot.slane %v2296, 2
      %v2533 = vsel %vm550, %v2530, %v2532
      %v2534 = vrot.slane %v2281, 2
      %v2535 = vrot.slane %v2166, 2
      %v2536 = vsel %vm550, %v2534, %v2535
      %v2537 = vrot.slane %v2297, 2
      %v2538 = vsel %vm550, %v2535, %v2537
      %v2539 = vrot.slane %v2282, 2
      %v2540 = vrot.slane %v2169, 2
      %v2541 = vsel %vm550, %v2539, %v2540
      %v2542 = vrot.slane %v2298, 2
      %v2543 = vsel %vm550, %v2540, %v2542
      %v2544 = vrot.slane %v2283, 2
      %v2545 = vrot.slane %v2172, 2
      %v2546 = vsel %vm550, %v2544, %v2545
      %v2547 = vrot.slane %v2299, 2
      %v2548 = vsel %vm550, %v2545, %v2547
      %v2549 = vrot.slane %v2284, 2
      %v2550 = vrot.slane %v2175, 2
      %v2551 = vsel %vm550, %v2549, %v2550
      %v2552 = vrot.slane %v2300, 2
      %v2553 = vsel %vm550, %v2550, %v2552
      %v2554 = vrot.slane %v2285, 2
      %v2555 = vrot.slane %v2178, 2
      %v2556 = vsel %vm550, %v2554, %v2555
      %v2557 = vrot.slane %v2301, 2
      %v2558 = vsel %vm550, %v2555, %v2557
      %v2559 = vrot.slane %v2286, 2
      %v2560 = vrot.slane %v2181, 2
      %v2561 = vsel %vm550, %v2559, %v2560
      %v2562 = vrot.slane %v2302, 2
      %v2563 = vsel %vm550, %v2560, %v2562
      %v2564 = vrot.slane %v2287, 2
      %v2565 = vrot.slane %v2184, 2
      %v2566 = vsel %vm550, %v2564, %v2565
      %v2567 = vrot.slane %v2303, 2
      %v2568 = vsel %vm550, %v2565, %v2567
      %v2569 = vrot.slane %v2288, 2
      %v2570 = vrot.slane %v2187, 2
      %v2571 = vsel %vm550, %v2569, %v2570
      %v2572 = vrot.slane %v2304, 2
      %v2573 = vsel %vm550, %v2570, %v2572
      %v2574 = vrot.slane %v2289, 2
      %v2575 = vrot.slane %v2190, 2
      %v2576 = vsel %vm550, %v2574, %v2575
      %v2577 = vrot.slane %v2305, 2
      %v2578 = vsel %vm550, %v2575, %v2577
      %v2579 = vrot.slane %v2290, 2
      %v2580 = vrot.slane %v2193, 2
      %v2581 = vsel %vm550, %v2579, %v2580
      %v2582 = vrot.slane %v2306, 2
      %v2583 = vsel %vm550, %v2580, %v2582
      %2584 = vrot.lane.b32.xlu0 %v2511, 8
      %v2585 = vpop.permute.xlu0 %2584
      %2586 = vrot.lane.b32.xlu0 %v2513, 8
      %v2587 = vpop.permute.xlu0 %2586
      %2588 = vrot.lane.b32.xlu0 %v2516, 8
      %v2589 = vpop.permute.xlu0 %2588
      %2590 = vrot.lane.b32.xlu0 %v2518, 8
      %v2591 = vpop.permute.xlu0 %2590
      %2592 = vrot.lane.b32.xlu0 %v2521, 8
      %v2593 = vpop.permute.xlu0 %2592
      %2594 = vrot.lane.b32.xlu0 %v2523, 8
      %v2595 = vpop.permute.xlu0 %2594
      %2596 = vrot.lane.b32.xlu0 %v2526, 8
      %v2597 = vpop.permute.xlu0 %2596
      %2598 = vrot.lane.b32.xlu0 %v2528, 8
      %v2599 = vpop.permute.xlu0 %2598
      %2600 = vrot.lane.b32.xlu0 %v2531, 8
      %v2601 = vpop.permute.xlu0 %2600
      %2602 = vrot.lane.b32.xlu0 %v2533, 8
      %v2603 = vpop.permute.xlu0 %2602
      %2604 = vrot.lane.b32.xlu0 %v2536, 8
      %v2605 = vpop.permute.xlu0 %2604
      %2606 = vrot.lane.b32.xlu0 %v2538, 8
      %v2607 = vpop.permute.xlu0 %2606
      %2608 = vrot.lane.b32.xlu0 %v2541, 8
      %v2609 = vpop.permute.xlu0 %2608
      %2610 = vrot.lane.b32.xlu0 %v2543, 8
      %v2611 = vpop.permute.xlu0 %2610
      %2612 = vrot.lane.b32.xlu0 %v2546, 8
      %v2613 = vpop.permute.xlu0 %2612
      %2614 = vrot.lane.b32.xlu0 %v2548, 8
      %v2615 = vpop.permute.xlu0 %2614
      %2616 = vrot.lane.b32.xlu0 %v2551, 8
      %v2617 = vpop.permute.xlu0 %2616
      %2618 = vrot.lane.b32.xlu0 %v2553, 8
      %v2619 = vpop.permute.xlu0 %2618
      %2620 = vrot.lane.b32.xlu0 %v2556, 8
      %v2621 = vpop.permute.xlu0 %2620
      %2622 = vrot.lane.b32.xlu0 %v2558, 8
      %v2623 = vpop.permute.xlu0 %2622
      %2624 = vrot.lane.b32.xlu0 %v2561, 8
      %v2625 = vpop.permute.xlu0 %2624
      %2626 = vrot.lane.b32.xlu0 %v2563, 8
      %v2627 = vpop.permute.xlu0 %2626
      %2628 = vrot.lane.b32.xlu0 %v2566, 8
      %v2629 = vpop.permute.xlu0 %2628
      %2630 = vrot.lane.b32.xlu0 %v2568, 8
      %v2631 = vpop.permute.xlu0 %2630
      %2632 = vrot.lane.b32.xlu0 %v2571, 8
      %v2633 = vpop.permute.xlu0 %2632
      %2634 = vrot.lane.b32.xlu0 %v2573, 8
      %v2635 = vpop.permute.xlu0 %2634
      %2636 = vrot.lane.b32.xlu0 %v2576, 8
      %v2637 = vpop.permute.xlu0 %2636
      %2638 = vrot.lane.b32.xlu0 %v2578, 8
      %v2639 = vpop.permute.xlu0 %2638
      %2640 = vrot.lane.b32.xlu0 %v2581, 8
      %v2641 = vpop.permute.xlu0 %2640
      %2642 = vrot.lane.b32.xlu0 %v2583, 8
      %v2643 = vpop.permute.xlu0 %2642
      %2675 = vrot.lane.b32.xlu0 %v2277, 12
      %v2676 = vpop.permute.xlu0 %2675
      %2677 = vrot.lane.b32.xlu0 %v2154, 12
      %v2678 = vpop.permute.xlu0 %2677
      %2679 = vrot.lane.b32.xlu0 %v2276, 12
      %v2680 = vpop.permute.xlu0 %2679
      %2681 = vrot.lane.b32.xlu0 %v2151, 12
      %v2682 = vpop.permute.xlu0 %2681
      %2683 = vrot.lane.b32.xlu0 %v2278, 12
      %v2684 = vpop.permute.xlu0 %2683
      %2685 = vrot.lane.b32.xlu0 %v2157, 12
      %v2686 = vpop.permute.xlu0 %2685
      %2687 = vrot.lane.b32.xlu0 %v2279, 12
      %v2688 = vpop.permute.xlu0 %2687
      %2689 = vrot.lane.b32.xlu0 %v2160, 12
      %v2690 = vpop.permute.xlu0 %2689
      %2691 = vrot.lane.b32.xlu0 %v2280, 12
      %v2692 = vpop.permute.xlu0 %2691
      %2693 = vrot.lane.b32.xlu0 %v2163, 12
      %v2694 = vpop.permute.xlu0 %2693
      %2695 = vrot.lane.b32.xlu0 %v2281, 12
      %v2696 = vpop.permute.xlu0 %2695
      %2697 = vrot.lane.b32.xlu0 %v2166, 12
      %v2698 = vpop.permute.xlu0 %2697
      %2699 = vrot.lane.b32.xlu0 %v2282, 12
      %v2700 = vpop.permute.xlu0 %2699
      %2701 = vrot.lane.b32.xlu0 %v2169, 12
      %v2702 = vpop.permute.xlu0 %2701
      %2703 = vrot.lane.b32.xlu0 %v2283, 12
      %v2704 = vpop.permute.xlu0 %2703
      %2705 = vrot.lane.b32.xlu0 %v2172, 12
      %v2706 = vpop.permute.xlu0 %2705
      %2707 = vrot.lane.b32.xlu0 %v2284, 12
      %v2708 = vpop.permute.xlu0 %2707
      %2709 = vrot.lane.b32.xlu0 %v2175, 12
      %v2710 = vpop.permute.xlu0 %2709
      %2711 = vrot.lane.b32.xlu0 %v2285, 12
      %v2712 = vpop.permute.xlu0 %2711
      %2713 = vrot.lane.b32.xlu0 %v2178, 12
      %v2714 = vpop.permute.xlu0 %2713
      %2715 = vrot.lane.b32.xlu0 %v2286, 12
      %v2716 = vpop.permute.xlu0 %2715
      %2717 = vrot.lane.b32.xlu0 %v2181, 12
      %v2718 = vpop.permute.xlu0 %2717
      %2719 = vrot.lane.b32.xlu0 %v2287, 12
      %v2720 = vpop.permute.xlu0 %2719
      %2721 = vrot.lane.b32.xlu0 %v2184, 12
      %v2722 = vpop.permute.xlu0 %2721
      %2723 = vrot.lane.b32.xlu0 %v2288, 12
      %v2724 = vpop.permute.xlu0 %2723
      %2725 = vrot.lane.b32.xlu0 %v2187, 12
      %v2726 = vpop.permute.xlu0 %2725
      %2727 = vrot.lane.b32.xlu0 %v2289, 12
      %v2728 = vpop.permute.xlu0 %2727
      %2729 = vrot.lane.b32.xlu0 %v2190, 12
      %v2730 = vpop.permute.xlu0 %2729
      %2731 = vrot.lane.b32.xlu0 %v2290, 12
      %v2732 = vpop.permute.xlu0 %2731
      %2733 = vrot.lane.b32.xlu0 %v2193, 12
      %v2734 = vpop.permute.xlu0 %2733
      %2735 = vrot.lane.b32.xlu0 %v2291, 12
      %v2736 = vpop.permute.xlu0 %2735
      %2737 = vrot.lane.b32.xlu0 %v2196, 12
      %v2738 = vpop.permute.xlu0 %2737
      %v2772 = vrot.slane %v2291, 1
      %v2773 = vrot.slane %v2196, 1
      %v2774 = vsel %vm333, %v2772, %v2773
      %v2775 = vrot.slane %v2307, 1
      %v2776 = vsel %vm333, %v2773, %v2775
      %2777 = vrot.lane.b32.xlu0 %v2351, 16
      %v2778 = vpop.permute.xlu0 %2777
      %2779 = vrot.lane.b32.xlu0 %v2353, 16
      %v2780 = vpop.permute.xlu0 %2779
      %2781 = vrot.lane.b32.xlu0 %v2346, 16
      %v2782 = vpop.permute.xlu0 %2781
      %2783 = vrot.lane.b32.xlu0 %v2348, 16
      %v2784 = vpop.permute.xlu0 %2783
      %2785 = vrot.lane.b32.xlu0 %v2356, 16
      %v2786 = vpop.permute.xlu0 %2785
      %2787 = vrot.lane.b32.xlu0 %v2358, 16
      %v2788 = vpop.permute.xlu0 %2787
      %2789 = vrot.lane.b32.xlu0 %v2361, 16
      %v2790 = vpop.permute.xlu0 %2789
      %2791 = vrot.lane.b32.xlu0 %v2363, 16
      %v2792 = vpop.permute.xlu0 %2791
      %2793 = vrot.lane.b32.xlu0 %v2366, 16
      %v2794 = vpop.permute.xlu0 %2793
      %2795 = vrot.lane.b32.xlu0 %v2368, 16
      %v2796 = vpop.permute.xlu0 %2795
      %2797 = vrot.lane.b32.xlu0 %v2371, 16
      %v2798 = vpop.permute.xlu0 %2797
      %2799 = vrot.lane.b32.xlu0 %v2373, 16
      %v2800 = vpop.permute.xlu0 %2799
      %2801 = vrot.lane.b32.xlu0 %v2376, 16
      %v2802 = vpop.permute.xlu0 %2801
      %2803 = vrot.lane.b32.xlu0 %v2378, 16
      %v2804 = vpop.permute.xlu0 %2803
      %2805 = vrot.lane.b32.xlu0 %v2381, 16
      %v2806 = vpop.permute.xlu0 %2805
      %2807 = vrot.lane.b32.xlu0 %v2383, 16
      %v2808 = vpop.permute.xlu0 %2807
      %2809 = vrot.lane.b32.xlu0 %v2386, 16
      %v2810 = vpop.permute.xlu0 %2809
      %2811 = vrot.lane.b32.xlu0 %v2388, 16
      %v2812 = vpop.permute.xlu0 %2811
      %2813 = vrot.lane.b32.xlu0 %v2391, 16
      %v2814 = vpop.permute.xlu0 %2813
      %2815 = vrot.lane.b32.xlu0 %v2393, 16
      %v2816 = vpop.permute.xlu0 %2815
      %2817 = vrot.lane.b32.xlu0 %v2396, 16
      %v2818 = vpop.permute.xlu0 %2817
      %2819 = vrot.lane.b32.xlu0 %v2398, 16
      %v2820 = vpop.permute.xlu0 %2819
      %2821 = vrot.lane.b32.xlu0 %v2401, 16
      %v2822 = vpop.permute.xlu0 %2821
      %2823 = vrot.lane.b32.xlu0 %v2403, 16
      %v2824 = vpop.permute.xlu0 %2823
      %2825 = vrot.lane.b32.xlu0 %v2406, 16
      %v2826 = vpop.permute.xlu0 %2825
      %2827 = vrot.lane.b32.xlu0 %v2408, 16
      %v2828 = vpop.permute.xlu0 %2827
      %2829 = vrot.lane.b32.xlu0 %v2411, 16
      %v2830 = vpop.permute.xlu0 %2829
      %2831 = vrot.lane.b32.xlu0 %v2413, 16
      %v2832 = vpop.permute.xlu0 %2831
      %2833 = vrot.lane.b32.xlu0 %v2416, 16
      %v2834 = vpop.permute.xlu0 %2833
      %2835 = vrot.lane.b32.xlu0 %v2418, 16
      %v2836 = vpop.permute.xlu0 %2835
      %2837 = vrot.lane.b32.xlu0 %v2774, 16
      %v2838 = vpop.permute.xlu0 %2837
      %2839 = vrot.lane.b32.xlu0 %v2776, 16
      %v2840 = vpop.permute.xlu0 %2839
      %v2873 = vrot.slane %v2291, 2
      %v2874 = vrot.slane %v2196, 2
      %v2875 = vsel %vm550, %v2873, %v2874
      %v2876 = vrot.slane %v2307, 2
      %v2877 = vsel %vm550, %v2874, %v2876
      %2878 = vrot.lane.b32.xlu0 %v2516, 20
      %v2879 = vpop.permute.xlu0 %2878
      %2880 = vrot.lane.b32.xlu0 %v2518, 20
      %v2881 = vpop.permute.xlu0 %2880
      %2882 = vrot.lane.b32.xlu0 %v2511, 20
      %v2883 = vpop.permute.xlu0 %2882
      %2884 = vrot.lane.b32.xlu0 %v2513, 20
      %v2885 = vpop.permute.xlu0 %2884
      %2886 = vrot.lane.b32.xlu0 %v2521, 20
      %v2887 = vpop.permute.xlu0 %2886
      %2888 = vrot.lane.b32.xlu0 %v2523, 20
      %v2889 = vpop.permute.xlu0 %2888
      %2890 = vrot.lane.b32.xlu0 %v2526, 20
      %v2891 = vpop.permute.xlu0 %2890
      %2892 = vrot.lane.b32.xlu0 %v2528, 20
      %v2893 = vpop.permute.xlu0 %2892
      %2894 = vrot.lane.b32.xlu0 %v2531, 20
      %v2895 = vpop.permute.xlu0 %2894
      %2896 = vrot.lane.b32.xlu0 %v2533, 20
      %v2897 = vpop.permute.xlu0 %2896
      %2898 = vrot.lane.b32.xlu0 %v2536, 20
      %v2899 = vpop.permute.xlu0 %2898
      %2900 = vrot.lane.b32.xlu0 %v2538, 20
      %v2901 = vpop.permute.xlu0 %2900
      %2902 = vrot.lane.b32.xlu0 %v2541, 20
      %v2903 = vpop.permute.xlu0 %2902
      %2904 = vrot.lane.b32.xlu0 %v2543, 20
      %v2905 = vpop.permute.xlu0 %2904
      %2906 = vrot.lane.b32.xlu0 %v2546, 20
      %v2907 = vpop.permute.xlu0 %2906
      %2908 = vrot.lane.b32.xlu0 %v2548, 20
      %v2909 = vpop.permute.xlu0 %2908
      %2910 = vrot.lane.b32.xlu0 %v2551, 20
      %v2911 = vpop.permute.xlu0 %2910
      %2912 = vrot.lane.b32.xlu0 %v2553, 20
      %v2913 = vpop.permute.xlu0 %2912
      %2914 = vrot.lane.b32.xlu0 %v2556, 20
      %v2915 = vpop.permute.xlu0 %2914
      %2916 = vrot.lane.b32.xlu0 %v2558, 20
      %v2917 = vpop.permute.xlu0 %2916
      %2918 = vrot.lane.b32.xlu0 %v2561, 20
      %v2919 = vpop.permute.xlu0 %2918
      %2920 = vrot.lane.b32.xlu0 %v2563, 20
      %v2921 = vpop.permute.xlu0 %2920
      %2922 = vrot.lane.b32.xlu0 %v2566, 20
      %v2923 = vpop.permute.xlu0 %2922
      %2924 = vrot.lane.b32.xlu0 %v2568, 20
      %v2925 = vpop.permute.xlu0 %2924
      %2926 = vrot.lane.b32.xlu0 %v2571, 20
      %v2927 = vpop.permute.xlu0 %2926
      %2928 = vrot.lane.b32.xlu0 %v2573, 20
      %v2929 = vpop.permute.xlu0 %2928
      %2930 = vrot.lane.b32.xlu0 %v2576, 20
      %v2931 = vpop.permute.xlu0 %2930
      %2932 = vrot.lane.b32.xlu0 %v2578, 20
      %v2933 = vpop.permute.xlu0 %2932
      %2934 = vrot.lane.b32.xlu0 %v2581, 20
      %v2935 = vpop.permute.xlu0 %2934
      %2936 = vrot.lane.b32.xlu0 %v2583, 20
      %v2937 = vpop.permute.xlu0 %2936
      %2938 = vrot.lane.b32.xlu0 %v2875, 20
      %v2939 = vpop.permute.xlu0 %2938
      %2940 = vrot.lane.b32.xlu0 %v2877, 20
      %v2941 = vpop.permute.xlu0 %2940
      %2974 = vrot.lane.b32.xlu0 %v2276, 24
      %v2975 = vpop.permute.xlu0 %2974
      %2976 = vrot.lane.b32.xlu0 %v2151, 24
      %v2977 = vpop.permute.xlu0 %2976
      %2978 = vrot.lane.b32.xlu0 %v2278, 24
      %v2979 = vpop.permute.xlu0 %2978
      %2980 = vrot.lane.b32.xlu0 %v2157, 24
      %v2981 = vpop.permute.xlu0 %2980
      %2982 = vrot.lane.b32.xlu0 %v2279, 24
      %v2983 = vpop.permute.xlu0 %2982
      %2984 = vrot.lane.b32.xlu0 %v2160, 24
      %v2985 = vpop.permute.xlu0 %2984
      %2986 = vrot.lane.b32.xlu0 %v2280, 24
      %v2987 = vpop.permute.xlu0 %2986
      %2988 = vrot.lane.b32.xlu0 %v2163, 24
      %v2989 = vpop.permute.xlu0 %2988
      %2990 = vrot.lane.b32.xlu0 %v2281, 24
      %v2991 = vpop.permute.xlu0 %2990
      %2992 = vrot.lane.b32.xlu0 %v2166, 24
      %v2993 = vpop.permute.xlu0 %2992
      %2994 = vrot.lane.b32.xlu0 %v2282, 24
      %v2995 = vpop.permute.xlu0 %2994
      %2996 = vrot.lane.b32.xlu0 %v2169, 24
      %v2997 = vpop.permute.xlu0 %2996
      %2998 = vrot.lane.b32.xlu0 %v2283, 24
      %v2999 = vpop.permute.xlu0 %2998
      %3000 = vrot.lane.b32.xlu0 %v2172, 24
      %v3001 = vpop.permute.xlu0 %3000
      %3002 = vrot.lane.b32.xlu0 %v2284, 24
      %v3003 = vpop.permute.xlu0 %3002
      %3004 = vrot.lane.b32.xlu0 %v2175, 24
      %v3005 = vpop.permute.xlu0 %3004
      %3006 = vrot.lane.b32.xlu0 %v2285, 24
      %v3007 = vpop.permute.xlu0 %3006
      %3008 = vrot.lane.b32.xlu0 %v2178, 24
      %v3009 = vpop.permute.xlu0 %3008
      %3010 = vrot.lane.b32.xlu0 %v2286, 24
      %v3011 = vpop.permute.xlu0 %3010
      %3012 = vrot.lane.b32.xlu0 %v2181, 24
      %v3013 = vpop.permute.xlu0 %3012
      %3014 = vrot.lane.b32.xlu0 %v2287, 24
      %v3015 = vpop.permute.xlu0 %3014
      %3016 = vrot.lane.b32.xlu0 %v2184, 24
      %v3017 = vpop.permute.xlu0 %3016
      %3018 = vrot.lane.b32.xlu0 %v2288, 24
      %v3019 = vpop.permute.xlu0 %3018
      %3020 = vrot.lane.b32.xlu0 %v2187, 24
      %v3021 = vpop.permute.xlu0 %3020
      %3022 = vrot.lane.b32.xlu0 %v2289, 24
      %v3023 = vpop.permute.xlu0 %3022
      %3024 = vrot.lane.b32.xlu0 %v2190, 24
      %v3025 = vpop.permute.xlu0 %3024
      %3026 = vrot.lane.b32.xlu0 %v2290, 24
      %v3027 = vpop.permute.xlu0 %3026
      %3028 = vrot.lane.b32.xlu0 %v2193, 24
      %v3029 = vpop.permute.xlu0 %3028
      %3030 = vrot.lane.b32.xlu0 %v2291, 24
      %v3031 = vpop.permute.xlu0 %3030
      %3032 = vrot.lane.b32.xlu0 %v2196, 24
      %v3033 = vpop.permute.xlu0 %3032
      %3064 = vrot.lane.b32.xlu0 %v2346, 28
      %v3065 = vpop.permute.xlu0 %3064
      %3066 = vrot.lane.b32.xlu0 %v2348, 28
      %v3067 = vpop.permute.xlu0 %3066
      %3068 = vrot.lane.b32.xlu0 %v2356, 28
      %v3069 = vpop.permute.xlu0 %3068
      %3070 = vrot.lane.b32.xlu0 %v2358, 28
      %v3071 = vpop.permute.xlu0 %3070
      %3072 = vrot.lane.b32.xlu0 %v2361, 28
      %v3073 = vpop.permute.xlu0 %3072
      %3074 = vrot.lane.b32.xlu0 %v2363, 28
      %v3075 = vpop.permute.xlu0 %3074
      %3076 = vrot.lane.b32.xlu0 %v2366, 28
      %v3077 = vpop.permute.xlu0 %3076
      %3078 = vrot.lane.b32.xlu0 %v2368, 28
      %v3079 = vpop.permute.xlu0 %3078
      %3080 = vrot.lane.b32.xlu0 %v2371, 28
      %v3081 = vpop.permute.xlu0 %3080
      %3082 = vrot.lane.b32.xlu0 %v2373, 28
      %v3083 = vpop.permute.xlu0 %3082
      %3084 = vrot.lane.b32.xlu0 %v2376, 28
      %v3085 = vpop.permute.xlu0 %3084
      %3086 = vrot.lane.b32.xlu0 %v2378, 28
      %v3087 = vpop.permute.xlu0 %3086
      %3088 = vrot.lane.b32.xlu0 %v2381, 28
      %v3089 = vpop.permute.xlu0 %3088
      %3090 = vrot.lane.b32.xlu0 %v2383, 28
      %v3091 = vpop.permute.xlu0 %3090
      %3092 = vrot.lane.b32.xlu0 %v2386, 28
      %v3093 = vpop.permute.xlu0 %3092
      %3094 = vrot.lane.b32.xlu0 %v2388, 28
      %v3095 = vpop.permute.xlu0 %3094
      %3096 = vrot.lane.b32.xlu0 %v2391, 28
      %v3097 = vpop.permute.xlu0 %3096
      %3098 = vrot.lane.b32.xlu0 %v2393, 28
      %v3099 = vpop.permute.xlu0 %3098
      %3100 = vrot.lane.b32.xlu0 %v2396, 28
      %v3101 = vpop.permute.xlu0 %3100
      %3102 = vrot.lane.b32.xlu0 %v2398, 28
      %v3103 = vpop.permute.xlu0 %3102
      %3104 = vrot.lane.b32.xlu0 %v2401, 28
      %v3105 = vpop.permute.xlu0 %3104
      %3106 = vrot.lane.b32.xlu0 %v2403, 28
      %v3107 = vpop.permute.xlu0 %3106
      %3108 = vrot.lane.b32.xlu0 %v2406, 28
      %v3109 = vpop.permute.xlu0 %3108
      %3110 = vrot.lane.b32.xlu0 %v2408, 28
      %v3111 = vpop.permute.xlu0 %3110
      %3112 = vrot.lane.b32.xlu0 %v2411, 28
      %v3113 = vpop.permute.xlu0 %3112
      %3114 = vrot.lane.b32.xlu0 %v2413, 28
      %v3115 = vpop.permute.xlu0 %3114
      %3116 = vrot.lane.b32.xlu0 %v2416, 28
      %v3117 = vpop.permute.xlu0 %3116
      %3118 = vrot.lane.b32.xlu0 %v2418, 28
      %v3119 = vpop.permute.xlu0 %3118
      %3120 = vrot.lane.b32.xlu0 %v2774, 28
      %v3121 = vpop.permute.xlu0 %3120
      %3122 = vrot.lane.b32.xlu0 %v2776, 28
      %v3123 = vpop.permute.xlu0 %3122
      %3154 = vrot.lane.b32.xlu0 %v2511, 32
      %v3155 = vpop.permute.xlu0 %3154
      %3156 = vrot.lane.b32.xlu0 %v2513, 32
      %v3157 = vpop.permute.xlu0 %3156
      %3158 = vrot.lane.b32.xlu0 %v2521, 32
      %v3159 = vpop.permute.xlu0 %3158
      %3160 = vrot.lane.b32.xlu0 %v2523, 32
      %v3161 = vpop.permute.xlu0 %3160
      %3162 = vrot.lane.b32.xlu0 %v2526, 32
      %v3163 = vpop.permute.xlu0 %3162
      %3164 = vrot.lane.b32.xlu0 %v2528, 32
      %v3165 = vpop.permute.xlu0 %3164
      %3166 = vrot.lane.b32.xlu0 %v2531, 32
      %v3167 = vpop.permute.xlu0 %3166
      %3168 = vrot.lane.b32.xlu0 %v2533, 32
      %v3169 = vpop.permute.xlu0 %3168
      %3170 = vrot.lane.b32.xlu0 %v2536, 32
      %v3171 = vpop.permute.xlu0 %3170
      %3172 = vrot.lane.b32.xlu0 %v2538, 32
      %v3173 = vpop.permute.xlu0 %3172
      %3174 = vrot.lane.b32.xlu0 %v2541, 32
      %v3175 = vpop.permute.xlu0 %3174
      %3176 = vrot.lane.b32.xlu0 %v2543, 32
      %v3177 = vpop.permute.xlu0 %3176
      %3178 = vrot.lane.b32.xlu0 %v2546, 32
      %v3179 = vpop.permute.xlu0 %3178
      %3180 = vrot.lane.b32.xlu0 %v2548, 32
      %v3181 = vpop.permute.xlu0 %3180
      %3182 = vrot.lane.b32.xlu0 %v2551, 32
      %v3183 = vpop.permute.xlu0 %3182
      %3184 = vrot.lane.b32.xlu0 %v2553, 32
      %v3185 = vpop.permute.xlu0 %3184
      %3186 = vrot.lane.b32.xlu0 %v2556, 32
      %v3187 = vpop.permute.xlu0 %3186
      %3188 = vrot.lane.b32.xlu0 %v2558, 32
      %v3189 = vpop.permute.xlu0 %3188
      %3190 = vrot.lane.b32.xlu0 %v2561, 32
      %v3191 = vpop.permute.xlu0 %3190
      %3192 = vrot.lane.b32.xlu0 %v2563, 32
      %v3193 = vpop.permute.xlu0 %3192
      %3194 = vrot.lane.b32.xlu0 %v2566, 32
      %v3195 = vpop.permute.xlu0 %3194
      %3196 = vrot.lane.b32.xlu0 %v2568, 32
      %v3197 = vpop.permute.xlu0 %3196
      %3198 = vrot.lane.b32.xlu0 %v2571, 32
      %v3199 = vpop.permute.xlu0 %3198
      %3200 = vrot.lane.b32.xlu0 %v2573, 32
      %v3201 = vpop.permute.xlu0 %3200
      %3202 = vrot.lane.b32.xlu0 %v2576, 32
      %v3203 = vpop.permute.xlu0 %3202
      %3204 = vrot.lane.b32.xlu0 %v2578, 32
      %v3205 = vpop.permute.xlu0 %3204
      %3206 = vrot.lane.b32.xlu0 %v2581, 32
      %v3207 = vpop.permute.xlu0 %3206
      %3208 = vrot.lane.b32.xlu0 %v2583, 32
      %v3209 = vpop.permute.xlu0 %3208
      %3210 = vrot.lane.b32.xlu0 %v2875, 32
      %v3211 = vpop.permute.xlu0 %3210
      %3212 = vrot.lane.b32.xlu0 %v2877, 32
      %v3213 = vpop.permute.xlu0 %3212
      %v3244 = vsel %vm1321, %v2276, %v2420
      %v3245 = vsel %vm1321, %v2151, %v2422
      %v3246 = vsel %vm1321, %v2277, %v2424
      %v3247 = vsel %vm1321, %v2154, %v2426
      %v3248 = vsel %vm1321, %v2278, %v2428
      %v3249 = vsel %vm1321, %v2157, %v2430
      %v3250 = vsel %vm1321, %v2279, %v2432
      %v3251 = vsel %vm1321, %v2160, %v2434
      %v3252 = vsel %vm1321, %v2280, %v2436
      %v3253 = vsel %vm1321, %v2163, %v2438
      %v3254 = vsel %vm1321, %v2281, %v2440
      %v3255 = vsel %vm1321, %v2166, %v2442
      %v3256 = vsel %vm1321, %v2282, %v2444
      %v3257 = vsel %vm1321, %v2169, %v2446
      %v3258 = vsel %vm1321, %v2283, %v2448
      %v3259 = vsel %vm1321, %v2172, %v2450
      %v3260 = vsel %vm1321, %v2284, %v2452
      %v3261 = vsel %vm1321, %v2175, %v2454
      %v3262 = vsel %vm1321, %v2285, %v2456
      %v3263 = vsel %vm1321, %v2178, %v2458
      %v3264 = vsel %vm1321, %v2286, %v2460
      %v3265 = vsel %vm1321, %v2181, %v2462
      %v3266 = vsel %vm1321, %v2287, %v2464
      %v3267 = vsel %vm1321, %v2184, %v2466
      %v3268 = vsel %vm1321, %v2288, %v2468
      %v3269 = vsel %vm1321, %v2187, %v2470
      %v3270 = vsel %vm1321, %v2289, %v2472
      %v3271 = vsel %vm1321, %v2190, %v2474
      %v3272 = vsel %vm1321, %v2290, %v2476
      %v3273 = vsel %vm1321, %v2193, %v2478
      %v3274 = vsel %vm1354, %v3244, %v2585
      %v3275 = vsel %vm1354, %v3245, %v2587
      %v3276 = vsel %vm1354, %v3246, %v2589
      %v3277 = vsel %vm1354, %v3247, %v2591
      %v3278 = vsel %vm1354, %v3248, %v2593
      %v3279 = vsel %vm1354, %v3249, %v2595
      %v3280 = vsel %vm1354, %v3250, %v2597
      %v3281 = vsel %vm1354, %v3251, %v2599
      %v3282 = vsel %vm1354, %v3252, %v2601
      %v3283 = vsel %vm1354, %v3253, %v2603
      %v3284 = vsel %vm1354, %v3254, %v2605
      %v3285 = vsel %vm1354, %v3255, %v2607
      %v3286 = vsel %vm1354, %v3256, %v2609
      %v3287 = vsel %vm1354, %v3257, %v2611
      %v3288 = vsel %vm1354, %v3258, %v2613
      %v3289 = vsel %vm1354, %v3259, %v2615
      %v3290 = vsel %vm1354, %v3260, %v2617
      %v3291 = vsel %vm1354, %v3261, %v2619
      %v3292 = vsel %vm1354, %v3262, %v2621
      %v3293 = vsel %vm1354, %v3263, %v2623
      %v3294 = vsel %vm1354, %v3264, %v2625
      %v3295 = vsel %vm1354, %v3265, %v2627
      %v3296 = vsel %vm1354, %v3266, %v2629
      %v3297 = vsel %vm1354, %v3267, %v2631
      %v3298 = vsel %vm1354, %v3268, %v2633
      %v3299 = vsel %vm1354, %v3269, %v2635
      %v3300 = vsel %vm1354, %v3270, %v2637
      %v3301 = vsel %vm1354, %v3271, %v2639
      %v3302 = vsel %vm1354, %v3272, %v2641
      %v3303 = vsel %vm1354, %v3273, %v2643
      %v3304 = vsel %vm1387, %v3274, %v2676
      %v3305 = vsel %vm1387, %v3275, %v2678
      %v3306 = vsel %vm1387, %v3276, %v2680
      %v3307 = vsel %vm1387, %v3277, %v2682
      %v3308 = vsel %vm1387, %v3274, %v2684
      %v3309 = vsel %vm1387, %v3275, %v2686
      %v3310 = vsel %vm1387, %v3278, %v2688
      %v3311 = vsel %vm1387, %v3279, %v2690
      %v3312 = vsel %vm1387, %v3280, %v2692
      %v3313 = vsel %vm1387, %v3281, %v2694
      %v3314 = vsel %vm1387, %v3282, %v2696
      %v3315 = vsel %vm1387, %v3283, %v2698
      %v3316 = vsel %vm1387, %v3284, %v2700
      %v3317 = vsel %vm1387, %v3285, %v2702
      %v3318 = vsel %vm1387, %v3286, %v2704
      %v3319 = vsel %vm1387, %v3287, %v2706
      %v3320 = vsel %vm1387, %v3288, %v2708
      %v3321 = vsel %vm1387, %v3289, %v2710
      %v3322 = vsel %vm1387, %v3290, %v2712
      %v3323 = vsel %vm1387, %v3291, %v2714
      %v3324 = vsel %vm1387, %v3292, %v2716
      %v3325 = vsel %vm1387, %v3293, %v2718
      %v3326 = vsel %vm1387, %v3294, %v2720
      %v3327 = vsel %vm1387, %v3295, %v2722
      %v3328 = vsel %vm1387, %v3296, %v2724
      %v3329 = vsel %vm1387, %v3297, %v2726
      %v3330 = vsel %vm1387, %v3298, %v2728
      %v3331 = vsel %vm1387, %v3299, %v2730
      %v3332 = vsel %vm1387, %v3300, %v2732
      %v3333 = vsel %vm1387, %v3301, %v2734
      %v3334 = vsel %vm1387, %v3302, %v2736
      %v3335 = vsel %vm1387, %v3303, %v2738
      %v3336 = vsel %vm1420, %v3304, %v2778
      %v3337 = vsel %vm1420, %v3305, %v2780
      %v3338 = vsel %vm1420, %v3306, %v2782
      %v3339 = vsel %vm1420, %v3307, %v2784
      %v3340 = vsel %vm1420, %v3308, %v2786
      %v3341 = vsel %vm1420, %v3309, %v2788
      %v3342 = vsel %vm1420, %v3310, %v2790
      %v3343 = vsel %vm1420, %v3311, %v2792
      %v3344 = vsel %vm1420, %v3312, %v2794
      %v3345 = vsel %vm1420, %v3313, %v2796
      %v3346 = vsel %vm1420, %v3314, %v2798
      %v3347 = vsel %vm1420, %v3315, %v2800
      %v3348 = vsel %vm1420, %v3316, %v2802
      %v3349 = vsel %vm1420, %v3317, %v2804
      %v3350 = vsel %vm1420, %v3318, %v2806
      %v3351 = vsel %vm1420, %v3319, %v2808
      %v3352 = vsel %vm1420, %v3320, %v2810
      %v3353 = vsel %vm1420, %v3321, %v2812
      %v3354 = vsel %vm1420, %v3322, %v2814
      %v3355 = vsel %vm1420, %v3323, %v2816
      %v3356 = vsel %vm1420, %v3324, %v2818
      %v3357 = vsel %vm1420, %v3325, %v2820
      %v3358 = vsel %vm1420, %v3326, %v2822
      %v3359 = vsel %vm1420, %v3327, %v2824
      %v3360 = vsel %vm1420, %v3328, %v2826
      %v3361 = vsel %vm1420, %v3329, %v2828
      %v3362 = vsel %vm1420, %v3330, %v2830
      %v3363 = vsel %vm1420, %v3331, %v2832
      %v3364 = vsel %vm1420, %v3332, %v2834
      %v3365 = vsel %vm1420, %v3333, %v2836
      %v3366 = vsel %vm1420, %v3334, %v2838
      %v3367 = vsel %vm1420, %v3335, %v2840
      %v3368 = vsel %vm1453, %v3336, %v2879
      %v3369 = vsel %vm1453, %v3337, %v2881
      %v3370 = vsel %vm1453, %v3338, %v2883
      %v3371 = vsel %vm1453, %v3339, %v2885
      %v3372 = vsel %vm1453, %v3340, %v2887
      %v3373 = vsel %vm1453, %v3341, %v2889
      %v3374 = vsel %vm1453, %v3342, %v2891
      %v3375 = vsel %vm1453, %v3343, %v2893
      %v3376 = vsel %vm1453, %v3344, %v2895
      %v3377 = vsel %vm1453, %v3345, %v2897
      %v3378 = vsel %vm1453, %v3346, %v2899
      %v3379 = vsel %vm1453, %v3347, %v2901
      %v3380 = vsel %vm1453, %v3348, %v2903
      %v3381 = vsel %vm1453, %v3349, %v2905
      %v3382 = vsel %vm1453, %v3350, %v2907
      %v3383 = vsel %vm1453, %v3351, %v2909
      %v3384 = vsel %vm1453, %v3352, %v2911
      %v3385 = vsel %vm1453, %v3353, %v2913
      %v3386 = vsel %vm1453, %v3354, %v2915
      %v3387 = vsel %vm1453, %v3355, %v2917
      %v3388 = vsel %vm1453, %v3356, %v2919
      %v3389 = vsel %vm1453, %v3357, %v2921
      %v3390 = vsel %vm1453, %v3358, %v2923
      %v3391 = vsel %vm1453, %v3359, %v2925
      %v3392 = vsel %vm1453, %v3360, %v2927
      %v3393 = vsel %vm1453, %v3361, %v2929
      %v3394 = vsel %vm1453, %v3362, %v2931
      %v3395 = vsel %vm1453, %v3363, %v2933
      %v3396 = vsel %vm1453, %v3364, %v2935
      %v3397 = vsel %vm1453, %v3365, %v2937
      %v3398 = vsel %vm1453, %v3366, %v2939
      %v3399 = vsel %vm1453, %v3367, %v2941
      %v3400 = vsel %vm1486, %v3368, %v2975
      %v3401 = vsel %vm1486, %v3369, %v2977
      %v3402 = vsel %vm1486, %v3370, %v2979
      %v3403 = vsel %vm1486, %v3371, %v2981
      %v3404 = vsel %vm1486, %v3372, %v2983
      %v3405 = vsel %vm1486, %v3373, %v2985
      %v3406 = vsel %vm1486, %v3374, %v2987
      %v3407 = vsel %vm1486, %v3375, %v2989
      %v3408 = vsel %vm1486, %v3376, %v2991
      %v3409 = vsel %vm1486, %v3377, %v2993
      %v3410 = vsel %vm1486, %v3378, %v2995
      %v3411 = vsel %vm1486, %v3379, %v2997
      %v3412 = vsel %vm1486, %v3380, %v2999
      %v3413 = vsel %vm1486, %v3381, %v3001
      %v3414 = vsel %vm1486, %v3382, %v3003
      %v3415 = vsel %vm1486, %v3383, %v3005
      %v3416 = vsel %vm1486, %v3384, %v3007
      %v3417 = vsel %vm1486, %v3385, %v3009
      %v3418 = vsel %vm1486, %v3386, %v3011
      %v3419 = vsel %vm1486, %v3387, %v3013
      %v3420 = vsel %vm1486, %v3388, %v3015
      %v3421 = vsel %vm1486, %v3389, %v3017
      %v3422 = vsel %vm1486, %v3390, %v3019
      %v3423 = vsel %vm1486, %v3391, %v3021
      %v3424 = vsel %vm1486, %v3392, %v3023
      %v3425 = vsel %vm1486, %v3393, %v3025
      %v3426 = vsel %vm1486, %v3394, %v3027
      %v3427 = vsel %vm1486, %v3395, %v3029
      %v3428 = vsel %vm1486, %v3396, %v3031
      %v3429 = vsel %vm1486, %v3397, %v3033
      %v3430 = vsel %vm1486, %v3398, %v3027
      %v3431 = vsel %vm1486, %v3399, %v3029
      %v3432 = vsel %vm1519, %v3400, %v3065
      %v3433 = vsel %vm1519, %v3401, %v3067
      %v3434 = vsel %vm1519, %v3402, %v3069
      %v3435 = vsel %vm1519, %v3403, %v3071
      %v3436 = vsel %vm1519, %v3404, %v3073
      %v3437 = vsel %vm1519, %v3405, %v3075
      %v3438 = vsel %vm1519, %v3406, %v3077
      %v3439 = vsel %vm1519, %v3407, %v3079
      %v3440 = vsel %vm1519, %v3408, %v3081
      %v3441 = vsel %vm1519, %v3409, %v3083
      %v3442 = vsel %vm1519, %v3410, %v3085
      %v3443 = vsel %vm1519, %v3411, %v3087
      %v3444 = vsel %vm1519, %v3412, %v3089
      %v3445 = vsel %vm1519, %v3413, %v3091
      %v3446 = vsel %vm1519, %v3414, %v3093
      %v3447 = vsel %vm1519, %v3415, %v3095
      %v3448 = vsel %vm1519, %v3416, %v3097
      %v3449 = vsel %vm1519, %v3417, %v3099
      %v3450 = vsel %vm1519, %v3418, %v3101
      %v3451 = vsel %vm1519, %v3419, %v3103
      %v3452 = vsel %vm1519, %v3420, %v3105
      %v3453 = vsel %vm1519, %v3421, %v3107
      %v3454 = vsel %vm1519, %v3422, %v3109
      %v3455 = vsel %vm1519, %v3423, %v3111
      %v3456 = vsel %vm1519, %v3424, %v3113
      %v3457 = vsel %vm1519, %v3425, %v3115
      %v3458 = vsel %vm1519, %v3426, %v3117
      %v3459 = vsel %vm1519, %v3427, %v3119
      %v3460 = vsel %vm1519, %v3428, %v3121
      %v3461 = vsel %vm1519, %v3429, %v3123
      %v3462 = vsel %vm1519, %v3430, %v3117
      %v3463 = vsel %vm1519, %v3431, %v3119
      %v3464 = vsel %vm1552, %v3432, %v3155
      %v3465 = vsel %vm1552, %v3433, %v3157
      %v3466 = vsel %vm1552, %v3434, %v3159
      %v3467 = vsel %vm1552, %v3435, %v3161
      %v3468 = vsel %vm1552, %v3436, %v3163
      %v3469 = vsel %vm1552, %v3437, %v3165
      %v3470 = vsel %vm1552, %v3438, %v3167
      %v3471 = vsel %vm1552, %v3439, %v3169
      %v3472 = vsel %vm1552, %v3440, %v3171
      %v3473 = vsel %vm1552, %v3441, %v3173
      %v3474 = vsel %vm1552, %v3442, %v3175
      %v3475 = vsel %vm1552, %v3443, %v3177
      %v3476 = vsel %vm1552, %v3444, %v3179
      %v3477 = vsel %vm1552, %v3445, %v3181
      %v3478 = vsel %vm1552, %v3446, %v3183
      %v3479 = vsel %vm1552, %v3447, %v3185
      %v3480 = vsel %vm1552, %v3448, %v3187
      %v3481 = vsel %vm1552, %v3449, %v3189
      %v3482 = vsel %vm1552, %v3450, %v3191
      %v3483 = vsel %vm1552, %v3451, %v3193
      %v3484 = vsel %vm1552, %v3452, %v3195
      %v3485 = vsel %vm1552, %v3453, %v3197
      %v3486 = vsel %vm1552, %v3454, %v3199
      %v3487 = vsel %vm1552, %v3455, %v3201
      %v3488 = vsel %vm1552, %v3456, %v3203
      %v3489 = vsel %vm1552, %v3457, %v3205
      %v3490 = vsel %vm1552, %v3458, %v3207
      %v3491 = vsel %vm1552, %v3459, %v3209
      %v3492 = vsel %vm1552, %v3460, %v3211
      %v3493 = vsel %vm1552, %v3461, %v3213
      %v3494 = vsel %vm1552, %v3462, %v3207
      %v3495 = vsel %vm1552, %v3463, %v3209
      %v3497 = vperm.slane %v2313, 0
      %v3500 = vsel %vm1588, %v3464, 0
      %v3503 = vsel %vm1588, %v3465, 0
      %v3506 = vsel %vm1588, %v3466, 0
      %v3509 = vsel %vm1588, %v3467, 0
      %v3512 = vsel %vm1588, %v3468, 0
      %v3515 = vsel %vm1588, %v3469, 0
      %v3518 = vsel %vm1588, %v3470, 0
      %v3521 = vsel %vm1588, %v3471, 0
      %v3524 = vsel %vm1588, %v3472, 0
      %v3527 = vsel %vm1588, %v3473, 0
      %v3530 = vsel %vm1588, %v3474, 0
      %v3533 = vsel %vm1588, %v3475, 0
      %v3536 = vsel %vm1588, %v3476, 0
      %v3539 = vsel %vm1588, %v3477, 0
      %v3542 = vsel %vm1588, %v3478, 0
      %v3545 = vsel %vm1588, %v3479, 0
      %v3548 = vsel %vm1588, %v3480, 0
      %v3551 = vsel %vm1588, %v3481, 0
      %v3554 = vsel %vm1588, %v3482, 0
      %v3557 = vsel %vm1588, %v3483, 0
      %v3560 = vsel %vm1588, %v3484, 0
      %v3563 = vsel %vm1588, %v3485, 0
      %v3566 = vsel %vm1588, %v3486, 0
      %v3569 = vsel %vm1588, %v3487, 0
      %v3572 = vsel %vm1588, %v3488, 0
      %v3575 = vsel %vm1588, %v3489, 0
      %v3578 = vsel %vm1588, %v3490, 0
      %v3581 = vsel %vm1588, %v3491, 0
      %v3584 = vsel %vm1588, %v3492, 0
      %v3587 = vsel %vm1588, %v3493, 0
      %v3590 = vsel %vm1588, %v3494, 0
      %v3593 = vsel %vm1588, %v3495, 0
      %v3596 = vsel %vm1685, %v2312, 0
      %3598 = vmatpush.msra.mxu0 0.0
      %3599 = vmatpush.msra.mxu0 0.0
      %3600 = vmatpush.msra.mxu0 0.0
      %3601 = vmatpush.msra.mxu0 0.0
      %3602 = vmatpush.msra.mxu0 0.0
      %3603 = vmatpush.msra.mxu0 0.0
      %3604 = vmatpush.msra.mxu0 0.0
      %3605 = vmatpush.msra.mxu0 0.0
      %3606 = vmatpush.msra.mxu0 0.0
      %3607 = vmatpush.msra.mxu0 0.0
      %3608 = vmatpush.msra.mxu0 0.0
      %3609 = vmatpush.msra.mxu0 %v3596
      %3610 = vmatpush.msra.mxu0 %v2311
      %3611 = vmatpush.msra.mxu0 %v2310
      %3612 = vmatpush.msra.mxu0 %v2309
      %3613 = vmatpush.msra.mxu0 %v2308
      %3614 = vmatmul.f32.gmra.mxu0 %v3500
      %v3615 = vpop.f32.mrf.mxu0
      %v3616 = vadd.f32 %v3497, %v3615
      %3617 = vmatmul.f32.gmra.mxu0 %v3503
      %v3618 = vpop.f32.mrf.mxu0
      %v3619 = vadd.f32 %v3497, %v3618
      %3620 = vmatmul.f32.gmra.mxu0 %v3506
      %v3621 = vpop.f32.mrf.mxu0
      %v3622 = vadd.f32 %v3497, %v3621
      %3623 = vmatmul.f32.gmra.mxu0 %v3509
      %v3624 = vpop.f32.mrf.mxu0
      %v3625 = vadd.f32 %v3497, %v3624
      %3626 = vmatmul.f32.gmra.mxu0 %v3512
      %v3627 = vpop.f32.mrf.mxu0
      %v3628 = vadd.f32 %v3497, %v3627
      %3629 = vmatmul.f32.gmra.mxu0 %v3515
      %v3630 = vpop.f32.mrf.mxu0
      %v3631 = vadd.f32 %v3497, %v3630
      %3632 = vmatmul.f32.gmra.mxu0 %v3518
      %v3633 = vpop.f32.mrf.mxu0
      %v3634 = vadd.f32 %v3497, %v3633
      %3635 = vmatmul.f32.gmra.mxu0 %v3521
      %v3636 = vpop.f32.mrf.mxu0
      %v3637 = vadd.f32 %v3497, %v3636
      %3638 = vmatmul.f32.gmra.mxu0 %v3524
      %v3639 = vpop.f32.mrf.mxu0
      %v3640 = vadd.f32 %v3497, %v3639
      %3641 = vmatmul.f32.gmra.mxu0 %v3527
      %v3642 = vpop.f32.mrf.mxu0
      %v3643 = vadd.f32 %v3497, %v3642
      %3644 = vmatmul.f32.gmra.mxu0 %v3530
      %v3645 = vpop.f32.mrf.mxu0
      %v3646 = vadd.f32 %v3497, %v3645
      %3647 = vmatmul.f32.gmra.mxu0 %v3533
      %v3648 = vpop.f32.mrf.mxu0
      %v3649 = vadd.f32 %v3497, %v3648
      %3650 = vmatmul.f32.gmra.mxu0 %v3536
      %v3651 = vpop.f32.mrf.mxu0
      %v3652 = vadd.f32 %v3497, %v3651
      %3653 = vmatmul.f32.gmra.mxu0 %v3539
      %v3654 = vpop.f32.mrf.mxu0
      %v3655 = vadd.f32 %v3497, %v3654
      %3656 = vmatmul.f32.gmra.mxu0 %v3542
      %v3657 = vpop.f32.mrf.mxu0
      %v3658 = vadd.f32 %v3497, %v3657
      %3659 = vmatmul.f32.gmra.mxu0 %v3545
      %v3660 = vpop.f32.mrf.mxu0
      %v3661 = vadd.f32 %v3497, %v3660
      %3662 = vmatmul.f32.gmra.mxu0 %v3548
      %v3663 = vpop.f32.mrf.mxu0
      %v3664 = vadd.f32 %v3497, %v3663
      %3665 = vmatmul.f32.gmra.mxu0 %v3551
      %v3666 = vpop.f32.mrf.mxu0
      %v3667 = vadd.f32 %v3497, %v3666
      %3668 = vmatmul.f32.gmra.mxu0 %v3554
      %v3669 = vpop.f32.mrf.mxu0
      %v3670 = vadd.f32 %v3497, %v3669
      %3671 = vmatmul.f32.gmra.mxu0 %v3557
      %v3672 = vpop.f32.mrf.mxu0
      %v3673 = vadd.f32 %v3497, %v3672
      %3674 = vmatmul.f32.gmra.mxu0 %v3560
      %v3675 = vpop.f32.mrf.mxu0
      %v3676 = vadd.f32 %v3497, %v3675
      %3677 = vmatmul.f32.gmra.mxu0 %v3563
      %v3678 = vpop.f32.mrf.mxu0
      %v3679 = vadd.f32 %v3497, %v3678
      %3680 = vmatmul.f32.gmra.mxu0 %v3566
      %v3681 = vpop.f32.mrf.mxu0
      %v3682 = vadd.f32 %v3497, %v3681
      %3683 = vmatmul.f32.gmra.mxu0 %v3569
      %v3684 = vpop.f32.mrf.mxu0
      %v3685 = vadd.f32 %v3497, %v3684
      %3686 = vmatmul.f32.gmra.mxu0 %v3572
      %v3687 = vpop.f32.mrf.mxu0
      %v3688 = vadd.f32 %v3497, %v3687
      %3689 = vmatmul.f32.gmra.mxu0 %v3575
      %v3690 = vpop.f32.mrf.mxu0
      %v3691 = vadd.f32 %v3497, %v3690
      %3692 = vmatmul.f32.gmra.mxu0 %v3578
      %v3693 = vpop.f32.mrf.mxu0
      %v3694 = vadd.f32 %v3497, %v3693
      %3695 = vmatmul.f32.gmra.mxu0 %v3581
      %v3696 = vpop.f32.mrf.mxu0
      %v3697 = vadd.f32 %v3497, %v3696
      %3698 = vmatmul.f32.gmra.mxu0 %v3584
      %v3699 = vpop.f32.mrf.mxu0
      %v3700 = vadd.f32 %v3497, %v3699
      %3701 = vmatmul.f32.gmra.mxu0 %v3587
      %v3702 = vpop.f32.mrf.mxu0
      %v3703 = vadd.f32 %v3497, %v3702
      %3704 = vmatmul.f32.gmra.mxu0 %v3590
      %v3705 = vpop.f32.mrf.mxu0
      %v3706 = vadd.f32 %v3497, %v3705
      %3707 = vmatmul.f32.gmra.mxu0 %v3593
      %v3708 = vpop.f32.mrf.mxu0
      %v3709 = vadd.f32 %v3497, %v3708
      %3710 = vdwg.mxu0
      %v3711 = vsel %vm1321, %v3616, 0.0
      %v3712 = vsel %vm1321, %v3619, 0.0
      %v3713 = vadd.f32 %v3711, %v3712
      %v3714 = vsel %vm1321, %v3622, 0.0
      %v3715 = vadd.f32 %v3713, %v3714
      %v3716 = vsel %vm1321, %v3625, 0.0
      %v3717 = vadd.f32 %v3715, %v3716
      %v3718 = vsel %vm1321, %v3628, 0.0
      %v3719 = vadd.f32 %v3717, %v3718
      %v3720 = vsel %vm1321, %v3631, 0.0
      %v3721 = vadd.f32 %v3719, %v3720
      %v3722 = vsel %vm1321, %v3634, 0.0
      %v3723 = vadd.f32 %v3721, %v3722
      %v3724 = vsel %vm1321, %v3637, 0.0
      %v3725 = vadd.f32 %v3723, %v3724
      %v3726 = vsel %vm1321, %v3640, 0.0
      %v3727 = vadd.f32 %v3725, %v3726
      %v3728 = vsel %vm1321, %v3643, 0.0
      %v3729 = vadd.f32 %v3727, %v3728
      %v3730 = vsel %vm1321, %v3646, 0.0
      %v3731 = vadd.f32 %v3729, %v3730
      %v3732 = vsel %vm1321, %v3649, 0.0
      %v3733 = vadd.f32 %v3731, %v3732
      %v3734 = vsel %vm1321, %v3652, 0.0
      %v3735 = vadd.f32 %v3733, %v3734
      %v3736 = vsel %vm1321, %v3655, 0.0
      %v3737 = vadd.f32 %v3735, %v3736
      %v3738 = vsel %vm1321, %v3658, 0.0
      %v3739 = vadd.f32 %v3737, %v3738
      %v3740 = vsel %vm1321, %v3661, 0.0
      %v3741 = vadd.f32 %v3739, %v3740
      %v3742 = vsel %vm1321, %v3664, 0.0
      %v3743 = vadd.f32 %v3741, %v3742
      %v3744 = vsel %vm1321, %v3667, 0.0
      %v3745 = vadd.f32 %v3743, %v3744
      %v3746 = vsel %vm1321, %v3670, 0.0
      %v3747 = vadd.f32 %v3745, %v3746
      %v3748 = vsel %vm1321, %v3673, 0.0
      %v3749 = vadd.f32 %v3747, %v3748
      %v3750 = vsel %vm1321, %v3676, 0.0
      %v3751 = vadd.f32 %v3749, %v3750
      %v3752 = vsel %vm1321, %v3679, 0.0
      %v3753 = vadd.f32 %v3751, %v3752
      %v3754 = vsel %vm1321, %v3682, 0.0
      %v3755 = vadd.f32 %v3753, %v3754
      %v3756 = vsel %vm1321, %v3685, 0.0
      %v3757 = vadd.f32 %v3755, %v3756
      %v3758 = vsel %vm1321, %v3688, 0.0
      %v3759 = vadd.f32 %v3757, %v3758
      %v3760 = vsel %vm1321, %v3691, 0.0
      %v3761 = vadd.f32 %v3759, %v3760
      %v3762 = vsel %vm1321, %v3694, 0.0
      %v3763 = vadd.f32 %v3761, %v3762
      %v3764 = vsel %vm1321, %v3697, 0.0
      %v3765 = vadd.f32 %v3763, %v3764
      %v3766 = vsel %vm1321, %v3700, 0.0
      %v3767 = vadd.f32 %v3765, %v3766
      %v3768 = vsel %vm1321, %v3703, 0.0
      %v3769 = vadd.f32 %v3767, %v3768
      %v3770 = vsel %vm1321, %v3706, 0.0
      %v3771 = vadd.f32 %v3769, %v3770
      %v3772 = vsel %vm1321, %v3709, 0.0
      %v3773 = vadd.f32 %v3771, %v3772
      %v3774 = vrot.slane %v3773, 4
      %v3775 = vadd.f32 %v3773, %v3774
      %v3776 = vrot.slane %v3775, 2
      %v3777 = vadd.f32 %v3775, %v3776
      %v3778 = vrot.slane %v3777, 1
      %v3779 = vadd.f32 %v3777, %v3778
      %v3780 = vmul.f32 %v3616, %v3616
      %v3781 = vmul.f32 %v3619, %v3619
      %v3782 = vmul.f32 %v3622, %v3622
      %v3783 = vmul.f32 %v3625, %v3625
      %v3784 = vmul.f32 %v3628, %v3628
      %v3785 = vmul.f32 %v3631, %v3631
      %v3786 = vmul.f32 %v3634, %v3634
      %v3787 = vmul.f32 %v3637, %v3637
      %v3788 = vmul.f32 %v3640, %v3640
      %v3789 = vmul.f32 %v3643, %v3643
      %v3790 = vmul.f32 %v3646, %v3646
      %v3791 = vmul.f32 %v3649, %v3649
      %v3792 = vmul.f32 %v3652, %v3652
      %v3793 = vmul.f32 %v3655, %v3655
      %v3794 = vmul.f32 %v3658, %v3658
      %v3795 = vmul.f32 %v3661, %v3661
      %v3796 = vmul.f32 %v3664, %v3664
      %v3797 = vmul.f32 %v3667, %v3667
      %v3798 = vmul.f32 %v3670, %v3670
      %v3799 = vmul.f32 %v3673, %v3673
      %v3800 = vmul.f32 %v3676, %v3676
      %v3801 = vmul.f32 %v3679, %v3679
      %v3802 = vmul.f32 %v3682, %v3682
      %v3803 = vmul.f32 %v3685, %v3685
      %v3804 = vmul.f32 %v3688, %v3688
      %v3805 = vmul.f32 %v3691, %v3691
      %v3806 = vmul.f32 %v3694, %v3694
      %v3807 = vmul.f32 %v3697, %v3697
      %v3808 = vmul.f32 %v3700, %v3700
      %v3809 = vmul.f32 %v3703, %v3703
      %v3810 = vmul.f32 %v3706, %v3706
      %v3811 = vmul.f32 %v3709, %v3709
      %v3812 = vsel %vm1321, %v3780, 0.0
      %v3813 = vsel %vm1321, %v3781, 0.0
      %v3814 = vadd.f32 %v3812, %v3813
      %v3815 = vsel %vm1321, %v3782, 0.0
      %v3816 = vadd.f32 %v3814, %v3815
      %v3817 = vsel %vm1321, %v3783, 0.0
      %v3818 = vadd.f32 %v3816, %v3817
      %v3819 = vsel %vm1321, %v3784, 0.0
      %v3820 = vadd.f32 %v3818, %v3819
      %v3821 = vsel %vm1321, %v3785, 0.0
      %v3822 = vadd.f32 %v3820, %v3821
      %v3823 = vsel %vm1321, %v3786, 0.0
      %v3824 = vadd.f32 %v3822, %v3823
      %v3825 = vsel %vm1321, %v3787, 0.0
      %v3826 = vadd.f32 %v3824, %v3825
      %v3827 = vsel %vm1321, %v3788, 0.0
      %v3828 = vadd.f32 %v3826, %v3827
      %v3829 = vsel %vm1321, %v3789, 0.0
      %v3830 = vadd.f32 %v3828, %v3829
      %v3831 = vsel %vm1321, %v3790, 0.0
      %v3832 = vadd.f32 %v3830, %v3831
      %v3833 = vsel %vm1321, %v3791, 0.0
      %v3834 = vadd.f32 %v3832, %v3833
      %v3835 = vsel %vm1321, %v3792, 0.0
      %v3836 = vadd.f32 %v3834, %v3835
      %v3837 = vsel %vm1321, %v3793, 0.0
      %v3838 = vadd.f32 %v3836, %v3837
      %v3839 = vsel %vm1321, %v3794, 0.0
      %v3840 = vadd.f32 %v3838, %v3839
      %v3841 = vsel %vm1321, %v3795, 0.0
      %v3842 = vadd.f32 %v3840, %v3841
      %v3843 = vsel %vm1321, %v3796, 0.0
      %v3844 = vadd.f32 %v3842, %v3843
      %v3845 = vsel %vm1321, %v3797, 0.0
      %v3846 = vadd.f32 %v3844, %v3845
      %v3847 = vsel %vm1321, %v3798, 0.0
      %v3848 = vadd.f32 %v3846, %v3847
      %v3849 = vsel %vm1321, %v3799, 0.0
      %v3850 = vadd.f32 %v3848, %v3849
      %v3851 = vsel %vm1321, %v3800, 0.0
      %v3852 = vadd.f32 %v3850, %v3851
      %v3853 = vsel %vm1321, %v3801, 0.0
      %v3854 = vadd.f32 %v3852, %v3853
      %v3855 = vsel %vm1321, %v3802, 0.0
      %v3856 = vadd.f32 %v3854, %v3855
      %v3857 = vsel %vm1321, %v3803, 0.0
      %v3858 = vadd.f32 %v3856, %v3857
      %v3859 = vsel %vm1321, %v3804, 0.0
      %v3860 = vadd.f32 %v3858, %v3859
      %v3861 = vsel %vm1321, %v3805, 0.0
      %v3862 = vadd.f32 %v3860, %v3861
      %v3863 = vsel %vm1321, %v3806, 0.0
      %v3864 = vadd.f32 %v3862, %v3863
      %v3865 = vsel %vm1321, %v3807, 0.0
      %v3866 = vadd.f32 %v3864, %v3865
      %v3867 = vsel %vm1321, %v3808, 0.0
      %v3868 = vadd.f32 %v3866, %v3867
      %v3869 = vsel %vm1321, %v3809, 0.0
      %v3870 = vadd.f32 %v3868, %v3869
      %v3871 = vsel %vm1321, %v3810, 0.0
      %v3872 = vadd.f32 %v3870, %v3871
      %v3873 = vsel %vm1321, %v3811, 0.0
      %v3874 = vadd.f32 %v3872, %v3873
      %v3875 = vrot.slane %v3874, 4
      %v3876 = vadd.f32 %v3874, %v3875
      %v3877 = vrot.slane %v3876, 2
      %v3878 = vadd.f32 %v3876, %v3877
      %v3879 = vrot.slane %v3878, 1
      %v3880 = vadd.f32 %v3878, %v3879
      %v3881 = vmul.f32 %v3779, 0.00390625
      %v3882 = vmul.f32 %v3880, 0.00390625
      %v3883 = vmul.f32 %v3881, %v3881
      %v3884 = vsub.f32 %v3882, %v3883
      %v3885 = vmax.f32 %v3884, 0.0
      %v3886 = vsub.f32 %v3616, %v3881
      %v3887 = vsub.f32 %v3619, %v3881
      %v3888 = vsub.f32 %v3622, %v3881
      %v3889 = vsub.f32 %v3625, %v3881
      %v3890 = vsub.f32 %v3628, %v3881
      %v3891 = vsub.f32 %v3631, %v3881
      %v3892 = vsub.f32 %v3634, %v3881
      %v3893 = vsub.f32 %v3637, %v3881
      %v3894 = vsub.f32 %v3640, %v3881
      %v3895 = vsub.f32 %v3643, %v3881
      %v3896 = vsub.f32 %v3646, %v3881
      %v3897 = vsub.f32 %v3649, %v3881
      %v3898 = vsub.f32 %v3652, %v3881
      %v3899 = vsub.f32 %v3655, %v3881
      %v3900 = vsub.f32 %v3658, %v3881
      %v3901 = vsub.f32 %v3661, %v3881
      %v3902 = vsub.f32 %v3664, %v3881
      %v3903 = vsub.f32 %v3667, %v3881
      %v3904 = vsub.f32 %v3670, %v3881
      %v3905 = vsub.f32 %v3673, %v3881
      %v3906 = vsub.f32 %v3676, %v3881
      %v3907 = vsub.f32 %v3679, %v3881
      %v3908 = vsub.f32 %v3682, %v3881
      %v3909 = vsub.f32 %v3685, %v3881
      %v3910 = vsub.f32 %v3688, %v3881
      %v3911 = vsub.f32 %v3691, %v3881
      %v3912 = vsub.f32 %v3694, %v3881
      %v3913 = vsub.f32 %v3697, %v3881
      %v3914 = vsub.f32 %v3700, %v3881
      %v3915 = vsub.f32 %v3703, %v3881
      %v3916 = vsub.f32 %v3706, %v3881
      %v3917 = vsub.f32 %v3709, %v3881
      %v3918 = vadd.f32 %v3885, 1e-05
      %v3919 = vrsqrt.pop %v3918
      %v3920 = vmul.f32 %v3919, %v3918
      %v3921 = vmul.f32 %v3920, %v3919
      %v3922 = vmul.f32 0.5, %v3921
      %v3923 = vsub.f32 1.5, %v3922
      %v3924 = vmul.f32 %v3919, %v3923
      %vm3925 = vweird.f32 %v3918
      %vm3926 = vweird.f32 %v3919
      %vm3927 = vmor %vm3925, %vm3926
      %v3928 = vsel %vm3927, %v3919, %v3924
      %v3929 = vmul.f32 %v3886, %v3928
      %v3930 = vmul.f32 %v3887, %v3928
      %v3931 = vmul.f32 %v3888, %v3928
      %v3932 = vmul.f32 %v3889, %v3928
      %v3933 = vmul.f32 %v3890, %v3928
      %v3934 = vmul.f32 %v3891, %v3928
      %v3935 = vmul.f32 %v3892, %v3928
      %v3936 = vmul.f32 %v3893, %v3928
      %v3937 = vmul.f32 %v3894, %v3928
      %v3938 = vmul.f32 %v3895, %v3928
      %v3939 = vmul.f32 %v3896, %v3928
      %v3940 = vmul.f32 %v3897, %v3928
      %v3941 = vmul.f32 %v3898, %v3928
      %v3942 = vmul.f32 %v3899, %v3928
      %v3943 = vmul.f32 %v3900, %v3928
      %v3944 = vmul.f32 %v3901, %v3928
      %v3945 = vmul.f32 %v3902, %v3928
      %v3946 = vmul.f32 %v3903, %v3928
      %v3947 = vmul.f32 %v3904, %v3928
      %v3948 = vmul.f32 %v3905, %v3928
      %v3949 = vmul.f32 %v3906, %v3928
      %v3950 = vmul.f32 %v3907, %v3928
      %v3951 = vmul.f32 %v3908, %v3928
      %v3952 = vmul.f32 %v3909, %v3928
      %v3953 = vmul.f32 %v3910, %v3928
      %v3954 = vmul.f32 %v3911, %v3928
      %v3955 = vmul.f32 %v3912, %v3928
      %v3956 = vmul.f32 %v3913, %v3928
      %v3957 = vmul.f32 %v3914, %v3928
      %v3958 = vmul.f32 %v3915, %v3928
      %v3959 = vmul.f32 %v3916, %v3928
      %v3960 = vmul.f32 %v3917, %v3928
      %v3961 = vadd.f32 %v3929, %v336
      %v3962 = vadd.f32 %v3930, %v338
      %v3963 = vadd.f32 %v3931, %v341
      %v3964 = vadd.f32 %v3932, %v343
      %v3965 = vadd.f32 %v3933, %v346
      %v3966 = vadd.f32 %v3934, %v348
      %v3967 = vadd.f32 %v3935, %v351
      %v3968 = vadd.f32 %v3936, %v353
      %v3969 = vadd.f32 %v3937, %v356
      %v3970 = vadd.f32 %v3938, %v358
      %v3971 = vadd.f32 %v3939, %v361
      %v3972 = vadd.f32 %v3940, %v363
      %v3973 = vadd.f32 %v3941, %v366
      %v3974 = vadd.f32 %v3942, %v368
      %v3975 = vadd.f32 %v3943, %v371
      %v3976 = vadd.f32 %v3944, %v373
      %v3977 = vadd.f32 %v3945, %v376
      %v3978 = vadd.f32 %v3946, %v378
      %v3979 = vadd.f32 %v3947, %v381
      %v3980 = vadd.f32 %v3948, %v383
      %v3981 = vadd.f32 %v3949, %v386
      %v3982 = vadd.f32 %v3950, %v388
      %v3983 = vadd.f32 %v3951, %v391
      %v3984 = vadd.f32 %v3952, %v393
      %v3985 = vadd.f32 %v3953, %v396
      %v3986 = vadd.f32 %v3954, %v398
      %v3987 = vadd.f32 %v3955, %v401
      %v3988 = vadd.f32 %v3956, %v403
      %v3989 = vadd.f32 %v3957, %v406
      %v3990 = vadd.f32 %v3958, %v408
      %v3991 = vadd.f32 %v3959, %v411
      %v3992 = vadd.f32 %v3960, %v413
      %3993 = vst.msk [vmem:[%s224] sm:$0xff] %vm1321, %v3961
      %3994 = vst.msk [vmem:[%s224 + $0x8] sm:$0xff] %vm1321, %v3962
      %3995 = vst.msk [vmem:[%s224 + $0x10] sm:$0xff] %vm1321, %v3963
      %3996 = vst.msk [vmem:[%s224 + $0x18] sm:$0xff] %vm1321, %v3964
      %3997 = vst.msk [vmem:[%s224 + $0x20] sm:$0xff] %vm1321, %v3965
      %3998 = vst.msk [vmem:[%s224 + $0x28] sm:$0xff] %vm1321, %v3966
      %3999 = vst.msk [vmem:[%s224 + $0x30] sm:$0xff] %vm1321, %v3967
      %4000 = vst.msk [vmem:[%s224 + $0x38] sm:$0xff] %vm1321, %v3968
      %4001 = vst.msk [vmem:[%s224 + $0x40] sm:$0xff] %vm1321, %v3969
      %4002 = vst.msk [vmem:[%s224 + $0x48] sm:$0xff] %vm1321, %v3970
      %4003 = vst.msk [vmem:[%s224 + $0x50] sm:$0xff] %vm1321, %v3971
      %4004 = vst.msk [vmem:[%s224 + $0x58] sm:$0xff] %vm1321, %v3972
      %4005 = vst.msk [vmem:[%s224 + $0x60] sm:$0xff] %vm1321, %v3973
      %4006 = vst.msk [vmem:[%s224 + $0x68] sm:$0xff] %vm1321, %v3974
      %4007 = vst.msk [vmem:[%s224 + $0x70] sm:$0xff] %vm1321, %v3975
      %4008 = vst.msk [vmem:[%s224 + $0x78] sm:$0xff] %vm1321, %v3976
      %4009 = vst.msk [vmem:[%s224 + $0x80] sm:$0xff] %vm1321, %v3977
      %4010 = vst.msk [vmem:[%s224 + $0x88] sm:$0xff] %vm1321, %v3978
      %4011 = vst.msk [vmem:[%s224 + $0x90] sm:$0xff] %vm1321, %v3979
      %4012 = vst.msk [vmem:[%s224 + $0x98] sm:$0xff] %vm1321, %v3980
      %4013 = vst.msk [vmem:[%s224 + $0xa0] sm:$0xff] %vm1321, %v3981
      %4014 = vst.msk [vmem:[%s224 + $0xa8] sm:$0xff] %vm1321, %v3982
      %4015 = vst.msk [vmem:[%s224 + $0xb0] sm:$0xff] %vm1321, %v3983
      %4016 = vst.msk [vmem:[%s224 + $0xb8] sm:$0xff] %vm1321, %v3984
      %4017 = vst.msk [vmem:[%s224 + $0xc0] sm:$0xff] %vm1321, %v3985
      %4018 = vst.msk [vmem:[%s224 + $0xc8] sm:$0xff] %vm1321, %v3986
      %4019 = vst.msk [vmem:[%s224 + $0xd0] sm:$0xff] %vm1321, %v3987
      %4020 = vst.msk [vmem:[%s224 + $0xd8] sm:$0xff] %vm1321, %v3988
      %4021 = vst.msk [vmem:[%s224 + $0xe0] sm:$0xff] %vm1321, %v3989
      %4022 = vst.msk [vmem:[%s224 + $0xe8] sm:$0xff] %vm1321, %v3990
      %4023 = vst.msk [vmem:[%s224 + $0xf0] sm:$0xff] %vm1321, %v3991
      %4024 = vst.msk [vmem:[%s224 + $0xf8] sm:$0xff] %vm1321, %v3992
      %p4025 = scmp.lt.s32.totalorder %s16, 1
      %s4026 = scalar_select %p4025, %s16, 1
      %s4027 = smul.addr %s4026, 32
      %s4028 = smul.addr %s4027, 8
      %s4029 = scalar_lea.vmem %s5, %s4028
      // Predicated region
      $region41: #{tpu_custom_call.1} parent=39 // pred_check
        %p4030 = pneg %p144
      $region42: #{tpu_custom_call.1} parent=39 // pred_check_branch
        %4032 = sbr.rel (%p4030) target = $region44
      $region43: #{tpu_custom_call.1} parent=39 // pred_region
        _
      $region44: #{tpu_custom_call.1} parent=39 // pred_fallthru
        _
    $region40: #{tpu_custom_call.1} parent=5 // pred_fallthru
      _
    %p4033 = scmp.le.s32.totalorder 2, %s11
    // Predicated region
    $region45: #{tpu_custom_call.1} parent=5 // pred_check
      %p4034 = pneg %p4033
    $region46: #{tpu_custom_call.1} parent=5 // pred_check_branch
      %4036 = sbr.rel (%p4034) target = $region48
    $region47: #{tpu_custom_call.1} parent=5 // pred_region
      %s4037 = ssub.s32 %s11, 2
      // Predicated region
      $region49: #{tpu_custom_call.1} parent=47 // pred_check
        %p4038 = pneg %p150
      $region50: #{tpu_custom_call.1} parent=47 // pred_check_branch
        %4040 = sbr.rel (%p4038) target = $region52
      $region51: #{tpu_custom_call.1} parent=47 // pred_region
        %p4041 = scmp.lt.s32.totalorder %s17, 1
        %s4042 = scalar_select %p4041, %s17, 1
        %s4043 = smul.addr %s4042, 32
        %s4044 = smul.addr %s4043, 8
        %s4045 = scalar_lea.vmem %s5, %s4044
      $region52: #{tpu_custom_call.1} parent=47 // pred_fallthru
        _
    $region48: #{tpu_custom_call.1} parent=5 // pred_fallthru
      _
  $region6: #{tpu_custom_call.1} parent=0 // loop_footer
    %s15 = sadd.s32 1, %s11
  $region7: #{tpu_custom_call.1} parent=0 // loop_footer_branch
    %10 = sbr.rel target = $region3
  $region8: #{tpu_custom_call.1} parent=0 // loop_exit
    _

</llo_original>
